<compile_context>
chip_gen: v7x
topology: tpu7x:2x2x1
jax: 0.10.0
libtpu: 0.0.40
codegen_flags: <defaults>
</compile_context>

<pallas_src>
import functools

import jax
import jax.numpy as jnp
from jax.experimental import pallas as pl
from jax.experimental.pallas import tpu as pltpu


# ----------------------------------------------------------------------------
# Fused forward kernel builder
# ----------------------------------------------------------------------------
def _full_spec(shape):
    zeros = (0,) * len(shape)
    return pl.BlockSpec(shape, lambda i: zeros)


def build_forward(n, c0, h, w, c1, c2, c3, n_hidden, n_cls_pad):
    ws = w                          # stored width of every activation row
    s = h * w + 2                   # constant per-sample lane stride (+2 wrap pad)
    lanes = n * s                   # lane extent of every activation buffer
    h1, h2, h3 = h - 2, h - 4, h - 6
    stage_rows = 9 * max(c0, c1, c2)
    k_fc1 = c3 * h3 * ws            # fc1 contraction length (zero-padded cols)

    def kernel(x_ref, w1_ref, b1_ref, w2_ref, b2_ref, w3_ref, b3_ref,
               wf1_hbm, bf1_ref, wf2_ref, bf2_ref,
               o_ref,
               a1_ref, a2_ref, a3_ref, stage_ref, fc1_in_ref, wf1_vmem, dma_sem):

        # Overlap the dominant (~320 KB) fc1-weight DMA with the conv stack.
        wf1_copy = pltpu.make_async_copy(wf1_hbm, wf1_vmem, dma_sem.at[0])
        wf1_copy.start()

        def conv_relu(src_ref, dst_ref, w_ref, b_ref, h_in, cin, cout):
            """3x3 valid conv + bias + ReLU, channel-major, all samples at once.

            Tap folding: the 9 lane-shifted views of the source are stacked on
            the sublane axis of the bf16 staging buffer, so the whole conv is
            ONE MXU matmul with K = 9*cin."""
            length = (n - 1) * s + (h_in - 2) * ws
            for ki in range(3):
                for kj in range(3):
                    t = ki * 3 + kj
                    off = ki * ws + kj
                    stage_ref[t * cin:(t + 1) * cin, 0:length] = \
                        src_ref[:, off:off + length]
            acc = jnp.dot(w_ref[...], stage_ref[0:9 * cin, 0:length],
                          preferred_element_type=jnp.float32)
            acc = jnp.maximum(acc + b_ref[...], 0.0)
            dst_ref[:, 0:length] = acc.astype(dst_ref.dtype)
            # Zero every readable-but-unwritten lane (wrap pad + tail) so the
            # wrap-tolerant scheme stays finite and shape-robust.
            dst_ref[:, length:lanes] = jnp.zeros((cout, lanes - length),
                                                 dst_ref.dtype)

        conv_relu(x_ref, a1_ref, w1_ref, b1_ref, h, c0, c1)    # c0 -> c1
        conv_relu(a1_ref, a2_ref, w2_ref, b2_ref, h1, c1, c2)  # c1 -> c2
        conv_relu(a2_ref, a3_ref, w3_ref, b3_ref, h2, c2, c3)  # c2 -> c3

        # fc1 LHS: repack the per-sample (c3, h3*ws) slabs into one
        # (n, c3*h3*ws) bf16 row-major operand (order matches the host-side
        # fc1 weight packing) -> a single K=1280 matmul with M=n.
        for smp in range(n):
            base = smp * s
            for c in range(c3):
                fc1_in_ref[smp:smp + 1, c * h3 * ws:(c + 1) * h3 * ws] = \
                    a3_ref[c:c + 1, base:base + h3 * ws]

        wf1_copy.wait()
        y1 = jnp.dot(fc1_in_ref[...], wf1_vmem[...],
                     preferred_element_type=jnp.float32)
        y1 = jnp.maximum(y1 + bf1_ref[...], 0.0)

        # fc2 + softmax; lane-dense (n, 128) output, single store.  Padded
        # class columns carry a -1e30 bias -> exactly 0 probability.
        logits = jnp.dot(y1.astype(jnp.bfloat16), wf2_ref[...],
                         preferred_element_type=jnp.float32) + bf2_ref[...]
        m = jnp.max(logits, axis=-1, keepdims=True)
        e = jnp.exp(logits - m)
        probs = e / jnp.sum(e, axis=-1, keepdims=True)   # exact; rows sum to 1
        o_ref[...] = probs.astype(o_ref.dtype)

    in_specs = [
        _full_spec((c0, lanes)),                          # x (bf16, channel-major)
        _full_spec((c1, 9 * c0)), _full_spec((c1, 1)),    # conv1 W (tap-folded) + b
        _full_spec((c2, 9 * c1)), _full_spec((c2, 1)),    # conv2
        _full_spec((c3, 9 * c2)), _full_spec((c3, 1)),    # conv3
        pl.BlockSpec(memory_space=pl.ANY),                # fc1 W stays in HBM
        _full_spec((1, n_hidden)),                        # fc1 b
        _full_spec((n_hidden, n_cls_pad)),                # fc2 W (zero-padded cols)
        _full_spec((1, n_cls_pad)),                       # fc2 b (-1e30 pad cols)
    ]

    # Advisory cost estimate (VMEM-internal activation traffic not included).
    macs = 0
    for cin, cout, h_in in ((c0, c1, h), (c1, c2, h1), (c2, c3, h2)):
        macs += 9 * cin * cout * ((n - 1) * s + (h_in - 2) * ws)
    macs += n * (k_fc1 * n_hidden + n_hidden * n_cls_pad)
    bytes_in = (2 * c0 * lanes
                + 2 * (9 * c0 * c1 + 9 * c1 * c2 + 9 * c2 * c3
                       + k_fc1 * n_hidden + n_hidden * n_cls_pad)
                + 4 * (c1 + c2 + c3 + n_hidden + n_cls_pad))
    cost = pl.CostEstimate(flops=int(2 * macs),
                           transcendentals=int(n * n_cls_pad),
                           bytes_accessed=int(bytes_in + 4 * n * n_cls_pad))

    return pl.pallas_call(
        kernel,
        out_shape=jax.ShapeDtypeStruct((n, n_cls_pad), jnp.float32),
        grid=(1,),
        in_specs=in_specs,
        out_specs=_full_spec((n, n_cls_pad)),
        scratch_shapes=[
            pltpu.VMEM((c1, lanes), jnp.bfloat16),          # act1
            pltpu.VMEM((c2, lanes), jnp.bfloat16),          # act2
            pltpu.VMEM((c3, lanes), jnp.bfloat16),          # act3
            pltpu.VMEM((stage_rows, lanes), jnp.bfloat16),  # im2col-lite staging
            pltpu.VMEM((n, k_fc1), jnp.bfloat16),           # fc1 LHS staging
            pltpu.VMEM((k_fc1, n_hidden), jnp.bfloat16),    # fc1 W landing buffer
            pltpu.SemaphoreType.DMA((1,)),                  # fc1 W DMA semaphore
        ],
        compiler_params=pltpu.CompilerParams(
            dimension_semantics=("arbitrary",),
            vmem_limit_bytes=16 * 1024 * 1024,
        ),
        cost_estimate=cost,
    )


# ----------------------------------------------------------------------------
# Parameters: torch layout (matches init_model) + kernel-layout packing (glue)
# ----------------------------------------------------------------------------
def _xavier_uniform(key, out_f, in_f):
    bound = (6.0 / (in_f + out_f)) ** 0.5
    return jax.random.uniform(key, (out_f, in_f), jnp.float32, -bound, bound)


def make_torch_params(key, in_ch, h, w, n_classes):
    h3, w3 = h - 6, w - 6
    flat = 8 * h3 * w3                      # torch flattens CHW
    k = jax.random.split(key, 5)
    return dict(
        conv1_w=jax.random.normal(k[0], (32, in_ch, 3, 3), jnp.float32),
        conv1_b=jnp.zeros((32,), jnp.float32),
        conv2_w=jax.random.normal(k[1], (16, 32, 3, 3), jnp.float32),
        conv2_b=jnp.zeros((16,), jnp.float32),
        conv3_w=jax.random.normal(k[2], (8, 16, 3, 3), jnp.float32),
        conv3_b=jnp.zeros((8,), jnp.float32),
        fc1_w=_xavier_uniform(k[3], 128, flat),
        fc1_b=jnp.zeros((128,), jnp.float32),
        fc2_w=_xavier_uniform(k[4], n_classes, 128),
        fc2_b=jnp.zeros((n_classes,), jnp.float32),
    )


def pack_params(tp, h, w, n_cls_pad=128):
    """Torch-layout params -> kernel layout (bf16 weights, tap/flatten reorder)."""
    ws = w
    h3, w3 = h - 6, w - 6
    n_hidden = tp["fc1_w"].shape[0]
    c3 = tp["conv3_w"].shape[0]
    n_classes = tp["fc2_w"].shape[0]

    def conv_taps(w_oihw):
        co, ci, kh, kw = w_oihw.shape
        # (co, ci, kh, kw) -> (co, kh*kw*ci); column index = (ki*3+kj)*ci + c
        return jnp.transpose(w_oihw, (0, 2, 3, 1)).reshape(co, kh * kw * ci) \
                  .astype(jnp.bfloat16)

    # fc1: torch weight (n_hidden, c3*h3*w3) in CHW flatten order ->
    # (c3*h3*ws, n_hidden) with zero rows at the padded lane columns x >= w3.
    wf = tp["fc1_w"].reshape(n_hidden, c3, h3, w3)
    wf = jnp.transpose(wf, (1, 2, 3, 0))                       # (c3, h3, w3, hid)
    wf = jnp.pad(wf, ((0, 0), (0, 0), (0, ws - w3), (0, 0)))   # (c3, h3, ws, hid)
    wfc1 = wf.reshape(c3 * h3 * ws, n_hidden).astype(jnp.bfloat16)

    # fc2: (n_classes, 128) -> (128, 128) zero-padded columns; padded bias -1e30.
    pad_c = n_cls_pad - n_classes
    wfc2 = jnp.pad(jnp.transpose(tp["fc2_w"]), ((0, 0), (0, pad_c))) \
              .astype(jnp.bfloat16)
    bfc2 = jnp.concatenate(
        [tp["fc2_b"], jnp.full((pad_c,), -1e30, jnp.float32)]).reshape(1, -1)

    return dict(
        w1=conv_taps(tp["conv1_w"]), b1=tp["conv1_b"].reshape(-1, 1),
        w2=conv_taps(tp["conv2_w"]), b2=tp["conv2_b"].reshape(-1, 1),
        w3=conv_taps(tp["conv3_w"]), b3=tp["conv3_b"].reshape(-1, 1),
        wfc1=wfc1, bfc1=tp["fc1_b"].reshape(1, -1),
        wfc2=wfc2, bfc2=bfc2,
    )


# ----------------------------------------------------------------------------
# Forward pass (== CNNClassifier.forward)
# ----------------------------------------------------------------------------
@functools.partial(jax.jit, static_argnames=("n_classes",))
def cnn_forward(x_nchw, params, *, n_classes):
    n, c0, h, w = x_nchw.shape
    c1 = params["w1"].shape[0]
    c2 = params["w2"].shape[0]
    c3 = params["w3"].shape[0]
    n_hidden = params["wfc1"].shape[1]
    n_cls_pad = params["wfc2"].shape[1]

    # Layout plumbing only: NCHW f32 -> channel-major bf16
    # (C, batch * (H*W + 2-lane wrap pad)).
    x_cm = jnp.transpose(x_nchw, (1, 0, 2, 3)).reshape(c0, n, h * w)
    x_cm = jnp.pad(x_cm, ((0, 0), (0, 0), (0, 2))) \
              .reshape(c0, n * (h * w + 2)).astype(jnp.bfloat16)

    fwd = build_forward(n, c0, h, w, c1, c2, c3, n_hidden, n_cls_pad)
    probs_padded = fwd(x_cm,
                       params["w1"], params["b1"],
                       params["w2"], params["b2"],
                       params["w3"], params["b3"],
                       params["wfc1"], params["bfc1"],
                       params["wfc2"], params["bfc2"])
    return probs_padded[:, :n_classes]


# ----------------------------------------------------------------------------
# Pure-JAX reference (torch-layout weights, same bf16 matmul numerics)
# ----------------------------------------------------------------------------
def cnn_forward_ref(x_nchw, tp):
    x = jnp.transpose(x_nchw, (0, 2, 3, 1)).astype(jnp.float32)  # NCHW -> NHWC

    def conv(x, w, b):
        y = jax.lax.conv_general_dilated(
            x.astype(jnp.bfloat16), w.astype(jnp.bfloat16),
            window_strides=(1, 1), padding="VALID",
            dimension_numbers=("NHWC", "OIHW", "NHWC"),
            preferred_element_type=jnp.float32)
        return jnp.maximum(y + b.reshape(1, 1, 1, -1), 0.0)

    x = conv(x, tp["conv1_w"], tp["conv1_b"])
    x = conv(x, tp["conv2_w"], tp["conv2_b"])
    x = conv(x, tp["conv3_w"], tp["conv3_b"])
    x = jnp.transpose(x, (0, 3, 1, 2)).reshape(x.shape[0], -1)   # torch CHW flatten
    x = jnp.maximum(
        jnp.dot(x.astype(jnp.bfloat16), tp["fc1_w"].T.astype(jnp.bfloat16),
                preferred_element_type=jnp.float32) + tp["fc1_b"], 0.0)
    logits = jnp.dot(x.astype(jnp.bfloat16), tp["fc2_w"].T.astype(jnp.bfloat16),
                     preferred_element_type=jnp.float32) + tp["fc2_b"]
    return jax.nn.softmax(logits, axis=-1)


if __name__ == "__main__":
    key = jax.random.PRNGKey(0)
    kx, kp = jax.random.split(key)

    # input_dim = (16, 16, 4) -> conv1 in_channels = 4; n_classes = 10
    batch, in_ch, spatial, n_classes = 2, 4, 16, 10
    x = jax.random.normal(kx, (batch, in_ch, spatial, spatial), jnp.float32)

    tparams = make_torch_params(kp, in_ch, spatial, spatial, n_classes)
    params = pack_params(tparams, spatial, spatial)

    probs = jax.block_until_ready(cnn_forward(x, params, n_classes=n_classes))

    assert probs.shape == (batch, n_classes)
    assert bool(jnp.all(jnp.isfinite(probs)))
    assert bool(jnp.allclose(jnp.sum(probs, axis=-1), 1.0, atol=1e-3))

    ref = cnn_forward_ref(x, tparams)
    assert bool(jnp.allclose(probs, ref, atol=2e-2)), "mismatch vs. JAX reference"

    print("KERNEL_OK")
</pallas_src>

<mosaic_0001>
module attributes {stable_mosaic.version = 11 : i64} {
  func.func @kernel(%arg0: i32, %arg1: memref<4x516xbf16, #tpu.memory_space<vmem>>, %arg2: memref<32x36xbf16, #tpu.memory_space<vmem>>, %arg3: memref<32x1xf32, #tpu.memory_space<vmem>>, %arg4: memref<16x288xbf16, #tpu.memory_space<vmem>>, %arg5: memref<16x1xf32, #tpu.memory_space<vmem>>, %arg6: memref<8x144xbf16, #tpu.memory_space<vmem>>, %arg7: memref<8x1xf32, #tpu.memory_space<vmem>>, %arg8: memref<1280x128xbf16, #tpu.memory_space<any>>, %arg9: memref<1x128xf32, #tpu.memory_space<vmem>>, %arg10: memref<128x128xbf16, #tpu.memory_space<vmem>>, %arg11: memref<1x128xf32, #tpu.memory_space<vmem>>, %arg12: memref<2x128xf32, #tpu.memory_space<vmem>>, %arg13: memref<32x516xbf16, #tpu.memory_space<vmem>>, %arg14: memref<16x516xbf16, #tpu.memory_space<vmem>>, %arg15: memref<8x516xbf16, #tpu.memory_space<vmem>>, %arg16: memref<288x516xbf16, #tpu.memory_space<vmem>>, %arg17: memref<2x1280xbf16, #tpu.memory_space<vmem>>, %arg18: memref<1280x128xbf16, #tpu.memory_space<vmem>>, %arg19: memref<1x!tpu.dma_semaphore, #tpu.memory_space<semaphore_mem>>) attributes {dimension_semantics = [#tpu.dimension_semantics<arbitrary>], iteration_bounds = array<i64: 1>, scalar_prefetch = 0 : i64, scratch_operands = 7 : i64, tpu.core_type = #tpu.core_type<tc>, window_params = [{pipeline_mode = #tpu.pipeline_mode<synchronous>, transform_indices = @transform_0, window_bounds = array<i64: 4, 516>}, {pipeline_mode = #tpu.pipeline_mode<synchronous>, transform_indices = @transform_1, window_bounds = array<i64: 32, 36>}, {pipeline_mode = #tpu.pipeline_mode<synchronous>, transform_indices = @transform_2, window_bounds = array<i64: 32, 1>}, {pipeline_mode = #tpu.pipeline_mode<synchronous>, transform_indices = @transform_3, window_bounds = array<i64: 16, 288>}, {pipeline_mode = #tpu.pipeline_mode<synchronous>, transform_indices = @transform_4, window_bounds = array<i64: 16, 1>}, {pipeline_mode = #tpu.pipeline_mode<synchronous>, transform_indices = @transform_5, window_bounds = array<i64: 8, 144>}, {pipeline_mode = #tpu.pipeline_mode<synchronous>, transform_indices = @transform_6, window_bounds = array<i64: 8, 1>}, {}, {pipeline_mode = #tpu.pipeline_mode<synchronous>, transform_indices = @transform_8, window_bounds = array<i64: 1, 128>}, {pipeline_mode = #tpu.pipeline_mode<synchronous>, transform_indices = @transform_9, window_bounds = array<i64: 128, 128>}, {pipeline_mode = #tpu.pipeline_mode<synchronous>, transform_indices = @transform_10, window_bounds = array<i64: 1, 128>}, {pipeline_mode = #tpu.pipeline_mode<synchronous>, transform_indices = @transform_11, window_bounds = array<i64: 2, 128>}]} {
    %c0_i32 = arith.constant 0 : i32
    %0 = tpu.memref_slice %arg19[%c0_i32] : memref<1x!tpu.dma_semaphore, #tpu.memory_space<semaphore_mem>> -> memref<1x!tpu.dma_semaphore, #tpu.memory_space<semaphore_mem>>
    %1 = tpu.memref_squeeze %0 : memref<1x!tpu.dma_semaphore, #tpu.memory_space<semaphore_mem>> -> memref<!tpu.dma_semaphore, #tpu.memory_space<semaphore_mem>>
    tpu.enqueue_dma source(%arg8 : memref<1280x128xbf16, #tpu.memory_space<any>>) target(%arg18 : memref<1280x128xbf16, #tpu.memory_space<vmem>>) target_semaphore(%1 : memref<!tpu.dma_semaphore, #tpu.memory_space<semaphore_mem>>)
    %c0 = arith.constant 0 : index
    %c0_0 = arith.constant 0 : index
    %2 = vector.load %arg1[%c0, %c0_0] : memref<4x516xbf16, #tpu.memory_space<vmem>>, vector<4x482xbf16>
    %c0_1 = arith.constant 0 : index
    %c0_2 = arith.constant 0 : index
    %3 = vector.load %arg16[%c0_1, %c0_2] : memref<288x516xbf16, #tpu.memory_space<vmem>>, vector<4x482xbf16>
    tpu.vector_store %arg16[%c0_1, %c0_2], %2 {strides = array<i32>} : memref<288x516xbf16, #tpu.memory_space<vmem>>, vector<4x482xbf16>,
    %c0_3 = arith.constant 0 : index
    %c1 = arith.constant 1 : index
    %4 = vector.load %arg1[%c0_3, %c1] : memref<4x516xbf16, #tpu.memory_space<vmem>>, vector<4x482xbf16>
    %c4 = arith.constant 4 : index
    %c0_4 = arith.constant 0 : index
    %5 = vector.load %arg16[%c4, %c0_4] : memref<288x516xbf16, #tpu.memory_space<vmem>>, vector<4x482xbf16>
    tpu.vector_store %arg16[%c4, %c0_4], %4 {strides = array<i32>} : memref<288x516xbf16, #tpu.memory_space<vmem>>, vector<4x482xbf16>,
    %c0_5 = arith.constant 0 : index
    %c2 = arith.constant 2 : index
    %6 = vector.load %arg1[%c0_5, %c2] : memref<4x516xbf16, #tpu.memory_space<vmem>>, vector<4x482xbf16>
    %c8 = arith.constant 8 : index
    %c0_6 = arith.constant 0 : index
    %7 = vector.load %arg16[%c8, %c0_6] : memref<288x516xbf16, #tpu.memory_space<vmem>>, vector<4x482xbf16>
    tpu.vector_store %arg16[%c8, %c0_6], %6 {strides = array<i32>} : memref<288x516xbf16, #tpu.memory_space<vmem>>, vector<4x482xbf16>,
    %c0_7 = arith.constant 0 : index
    %c16 = arith.constant 16 : index
    %8 = vector.load %arg1[%c0_7, %c16] : memref<4x516xbf16, #tpu.memory_space<vmem>>, vector<4x482xbf16>
    %c12 = arith.constant 12 : index
    %c0_8 = arith.constant 0 : index
    %9 = vector.load %arg16[%c12, %c0_8] : memref<288x516xbf16, #tpu.memory_space<vmem>>, vector<4x482xbf16>
    tpu.vector_store %arg16[%c12, %c0_8], %8 {strides = array<i32>} : memref<288x516xbf16, #tpu.memory_space<vmem>>, vector<4x482xbf16>,
    %c0_9 = arith.constant 0 : index
    %c17 = arith.constant 17 : index
    %10 = vector.load %arg1[%c0_9, %c17] : memref<4x516xbf16, #tpu.memory_space<vmem>>, vector<4x482xbf16>
    %c16_10 = arith.constant 16 : index
    %c0_11 = arith.constant 0 : index
    %11 = vector.load %arg16[%c16_10, %c0_11] : memref<288x516xbf16, #tpu.memory_space<vmem>>, vector<4x482xbf16>
    tpu.vector_store %arg16[%c16_10, %c0_11], %10 {strides = array<i32>} : memref<288x516xbf16, #tpu.memory_space<vmem>>, vector<4x482xbf16>,
    %c0_12 = arith.constant 0 : index
    %c18 = arith.constant 18 : index
    %12 = vector.load %arg1[%c0_12, %c18] : memref<4x516xbf16, #tpu.memory_space<vmem>>, vector<4x482xbf16>
    %c20 = arith.constant 20 : index
    %c0_13 = arith.constant 0 : index
    %13 = vector.load %arg16[%c20, %c0_13] : memref<288x516xbf16, #tpu.memory_space<vmem>>, vector<4x482xbf16>
    tpu.vector_store %arg16[%c20, %c0_13], %12 {strides = array<i32>} : memref<288x516xbf16, #tpu.memory_space<vmem>>, vector<4x482xbf16>,
    %c0_14 = arith.constant 0 : index
    %c32 = arith.constant 32 : index
    %14 = vector.load %arg1[%c0_14, %c32] : memref<4x516xbf16, #tpu.memory_space<vmem>>, vector<4x482xbf16>
    %c24 = arith.constant 24 : index
    %c0_15 = arith.constant 0 : index
    %15 = vector.load %arg16[%c24, %c0_15] : memref<288x516xbf16, #tpu.memory_space<vmem>>, vector<4x482xbf16>
    tpu.vector_store %arg16[%c24, %c0_15], %14 {strides = array<i32>} : memref<288x516xbf16, #tpu.memory_space<vmem>>, vector<4x482xbf16>,
    %c0_16 = arith.constant 0 : index
    %c33 = arith.constant 33 : index
    %16 = vector.load %arg1[%c0_16, %c33] : memref<4x516xbf16, #tpu.memory_space<vmem>>, vector<4x482xbf16>
    %c28 = arith.constant 28 : index
    %c0_17 = arith.constant 0 : index
    %17 = vector.load %arg16[%c28, %c0_17] : memref<288x516xbf16, #tpu.memory_space<vmem>>, vector<4x482xbf16>
    tpu.vector_store %arg16[%c28, %c0_17], %16 {strides = array<i32>} : memref<288x516xbf16, #tpu.memory_space<vmem>>, vector<4x482xbf16>,
    %c0_18 = arith.constant 0 : index
    %c34 = arith.constant 34 : index
    %18 = vector.load %arg1[%c0_18, %c34] : memref<4x516xbf16, #tpu.memory_space<vmem>>, vector<4x482xbf16>
    %c32_19 = arith.constant 32 : index
    %c0_20 = arith.constant 0 : index
    %19 = vector.load %arg16[%c32_19, %c0_20] : memref<288x516xbf16, #tpu.memory_space<vmem>>, vector<4x482xbf16>
    tpu.vector_store %arg16[%c32_19, %c0_20], %18 {strides = array<i32>} : memref<288x516xbf16, #tpu.memory_space<vmem>>, vector<4x482xbf16>,
    %c0_21 = arith.constant 0 : index
    %c0_22 = arith.constant 0 : index
    %20 = vector.load %arg2[%c0_21, %c0_22] : memref<32x36xbf16, #tpu.memory_space<vmem>>, vector<32x36xbf16>
    %c0_23 = arith.constant 0 : index
    %c0_24 = arith.constant 0 : index
    %21 = vector.load %arg16[%c0_23, %c0_24] : memref<288x516xbf16, #tpu.memory_space<vmem>>, vector<36x482xbf16>
    %cst = arith.constant dense<0.000000e+00> : vector<32x482xf32>
    %22 = tpu.matmul %20, %21, %cst {dimension_numbers = #tpu.dot_dimension_numbers<[1], [0], [0], [1], [0, 0, 1, 1], [], []>} : vector<32x36xbf16>, vector<36x482xbf16>, vector<32x482xf32> -> vector<32x482xf32>
    %c0_25 = arith.constant 0 : index
    %c0_26 = arith.constant 0 : index
    %23 = vector.load %arg3[%c0_25, %c0_26] : memref<32x1xf32, #tpu.memory_space<vmem>>, vector<32x1xf32>
    %24 = vector.broadcast %23 : vector<32x1xf32> to vector<32x482xf32>
    %25 = arith.addf %22, %24 : vector<32x482xf32>
    %cst_27 = arith.constant 0.000000e+00 : f32
    %26 = vector.broadcast %cst_27 : f32 to vector<32x482xf32>
    %27 = arith.maximumf %25, %26 : vector<32x482xf32>
    %28 = arith.truncf %27 : vector<32x482xf32> to vector<32x482xbf16>
    %c0_28 = arith.constant 0 : index
    %c0_29 = arith.constant 0 : index
    %29 = vector.load %arg13[%c0_28, %c0_29] : memref<32x516xbf16, #tpu.memory_space<vmem>>, vector<32x482xbf16>
    tpu.vector_store %arg13[%c0_28, %c0_29], %28 {strides = array<i32>} : memref<32x516xbf16, #tpu.memory_space<vmem>>, vector<32x482xbf16>,
    %cst_30 = arith.constant 0.000000e+00 : bf16
    %30 = vector.broadcast %cst_30 : bf16 to vector<32x34xbf16>
    %c0_31 = arith.constant 0 : index
    %c482 = arith.constant 482 : index
    %31 = vector.load %arg13[%c0_31, %c482] : memref<32x516xbf16, #tpu.memory_space<vmem>>, vector<32x34xbf16>
    tpu.vector_store %arg13[%c0_31, %c482], %30 {strides = array<i32>} : memref<32x516xbf16, #tpu.memory_space<vmem>>, vector<32x34xbf16>,
    %c0_32 = arith.constant 0 : index
    %c0_33 = arith.constant 0 : index
    %32 = vector.load %arg13[%c0_32, %c0_33] : memref<32x516xbf16, #tpu.memory_space<vmem>>, vector<32x450xbf16>
    %c0_34 = arith.constant 0 : index
    %c0_35 = arith.constant 0 : index
    %33 = vector.load %arg16[%c0_34, %c0_35] : memref<288x516xbf16, #tpu.memory_space<vmem>>, vector<32x450xbf16>
    tpu.vector_store %arg16[%c0_34, %c0_35], %32 {strides = array<i32>} : memref<288x516xbf16, #tpu.memory_space<vmem>>, vector<32x450xbf16>,
    %c0_36 = arith.constant 0 : index
    %c1_37 = arith.constant 1 : index
    %34 = vector.load %arg13[%c0_36, %c1_37] : memref<32x516xbf16, #tpu.memory_space<vmem>>, vector<32x450xbf16>
    %c32_38 = arith.constant 32 : index
    %c0_39 = arith.constant 0 : index
    %35 = vector.load %arg16[%c32_38, %c0_39] : memref<288x516xbf16, #tpu.memory_space<vmem>>, vector<32x450xbf16>
    tpu.vector_store %arg16[%c32_38, %c0_39], %34 {strides = array<i32>} : memref<288x516xbf16, #tpu.memory_space<vmem>>, vector<32x450xbf16>,
    %c0_40 = arith.constant 0 : index
    %c2_41 = arith.constant 2 : index
    %36 = vector.load %arg13[%c0_40, %c2_41] : memref<32x516xbf16, #tpu.memory_space<vmem>>, vector<32x450xbf16>
    %c64 = arith.constant 64 : index
    %c0_42 = arith.constant 0 : index
    %37 = vector.load %arg16[%c64, %c0_42] : memref<288x516xbf16, #tpu.memory_space<vmem>>, vector<32x450xbf16>
    tpu.vector_store %arg16[%c64, %c0_42], %36 {strides = array<i32>} : memref<288x516xbf16, #tpu.memory_space<vmem>>, vector<32x450xbf16>,
    %c0_43 = arith.constant 0 : index
    %c16_44 = arith.constant 16 : index
    %38 = vector.load %arg13[%c0_43, %c16_44] : memref<32x516xbf16, #tpu.memory_space<vmem>>, vector<32x450xbf16>
    %c96 = arith.constant 96 : index
    %c0_45 = arith.constant 0 : index
    %39 = vector.load %arg16[%c96, %c0_45] : memref<288x516xbf16, #tpu.memory_space<vmem>>, vector<32x450xbf16>
    tpu.vector_store %arg16[%c96, %c0_45], %38 {strides = array<i32>} : memref<288x516xbf16, #tpu.memory_space<vmem>>, vector<32x450xbf16>,
    %c0_46 = arith.constant 0 : index
    %c17_47 = arith.constant 17 : index
    %40 = vector.load %arg13[%c0_46, %c17_47] : memref<32x516xbf16, #tpu.memory_space<vmem>>, vector<32x450xbf16>
    %c128 = arith.constant 128 : index
    %c0_48 = arith.constant 0 : index
    %41 = vector.load %arg16[%c128, %c0_48] : memref<288x516xbf16, #tpu.memory_space<vmem>>, vector<32x450xbf16>
    tpu.vector_store %arg16[%c128, %c0_48], %40 {strides = array<i32>} : memref<288x516xbf16, #tpu.memory_space<vmem>>, vector<32x450xbf16>,
    %c0_49 = arith.constant 0 : index
    %c18_50 = arith.constant 18 : index
    %42 = vector.load %arg13[%c0_49, %c18_50] : memref<32x516xbf16, #tpu.memory_space<vmem>>, vector<32x450xbf16>
    %c160 = arith.constant 160 : index
    %c0_51 = arith.constant 0 : index
    %43 = vector.load %arg16[%c160, %c0_51] : memref<288x516xbf16, #tpu.memory_space<vmem>>, vector<32x450xbf16>
    tpu.vector_store %arg16[%c160, %c0_51], %42 {strides = array<i32>} : memref<288x516xbf16, #tpu.memory_space<vmem>>, vector<32x450xbf16>,
    %c0_52 = arith.constant 0 : index
    %c32_53 = arith.constant 32 : index
    %44 = vector.load %arg13[%c0_52, %c32_53] : memref<32x516xbf16, #tpu.memory_space<vmem>>, vector<32x450xbf16>
    %c192 = arith.constant 192 : index
    %c0_54 = arith.constant 0 : index
    %45 = vector.load %arg16[%c192, %c0_54] : memref<288x516xbf16, #tpu.memory_space<vmem>>, vector<32x450xbf16>
    tpu.vector_store %arg16[%c192, %c0_54], %44 {strides = array<i32>} : memref<288x516xbf16, #tpu.memory_space<vmem>>, vector<32x450xbf16>,
    %c0_55 = arith.constant 0 : index
    %c33_56 = arith.constant 33 : index
    %46 = vector.load %arg13[%c0_55, %c33_56] : memref<32x516xbf16, #tpu.memory_space<vmem>>, vector<32x450xbf16>
    %c224 = arith.constant 224 : index
    %c0_57 = arith.constant 0 : index
    %47 = vector.load %arg16[%c224, %c0_57] : memref<288x516xbf16, #tpu.memory_space<vmem>>, vector<32x450xbf16>
    tpu.vector_store %arg16[%c224, %c0_57], %46 {strides = array<i32>} : memref<288x516xbf16, #tpu.memory_space<vmem>>, vector<32x450xbf16>,
    %c0_58 = arith.constant 0 : index
    %c34_59 = arith.constant 34 : index
    %48 = vector.load %arg13[%c0_58, %c34_59] : memref<32x516xbf16, #tpu.memory_space<vmem>>, vector<32x450xbf16>
    %c256 = arith.constant 256 : index
    %c0_60 = arith.constant 0 : index
    %49 = vector.load %arg16[%c256, %c0_60] : memref<288x516xbf16, #tpu.memory_space<vmem>>, vector<32x450xbf16>
    tpu.vector_store %arg16[%c256, %c0_60], %48 {strides = array<i32>} : memref<288x516xbf16, #tpu.memory_space<vmem>>, vector<32x450xbf16>,
    %c0_61 = arith.constant 0 : index
    %c0_62 = arith.constant 0 : index
    %50 = vector.load %arg4[%c0_61, %c0_62] : memref<16x288xbf16, #tpu.memory_space<vmem>>, vector<16x288xbf16>
    %c0_63 = arith.constant 0 : index
    %c0_64 = arith.constant 0 : index
    %51 = vector.load %arg16[%c0_63, %c0_64] : memref<288x516xbf16, #tpu.memory_space<vmem>>, vector<288x450xbf16>
    %cst_65 = arith.constant dense<0.000000e+00> : vector<16x450xf32>
    %52 = tpu.matmul %50, %51, %cst_65 {dimension_numbers = #tpu.dot_dimension_numbers<[1], [0], [0], [1], [0, 0, 1, 1], [], []>} : vector<16x288xbf16>, vector<288x450xbf16>, vector<16x450xf32> -> vector<16x450xf32>
    %c0_66 = arith.constant 0 : index
    %c0_67 = arith.constant 0 : index
    %53 = vector.load %arg5[%c0_66, %c0_67] : memref<16x1xf32, #tpu.memory_space<vmem>>, vector<16x1xf32>
    %54 = vector.broadcast %53 : vector<16x1xf32> to vector<16x450xf32>
    %55 = arith.addf %52, %54 : vector<16x450xf32>
    %cst_68 = arith.constant 0.000000e+00 : f32
    %56 = vector.broadcast %cst_68 : f32 to vector<16x450xf32>
    %57 = arith.maximumf %55, %56 : vector<16x450xf32>
    %58 = arith.truncf %57 : vector<16x450xf32> to vector<16x450xbf16>
    %c0_69 = arith.constant 0 : index
    %c0_70 = arith.constant 0 : index
    %59 = vector.load %arg14[%c0_69, %c0_70] : memref<16x516xbf16, #tpu.memory_space<vmem>>, vector<16x450xbf16>
    tpu.vector_store %arg14[%c0_69, %c0_70], %58 {strides = array<i32>} : memref<16x516xbf16, #tpu.memory_space<vmem>>, vector<16x450xbf16>,
    %cst_71 = arith.constant 0.000000e+00 : bf16
    %60 = vector.broadcast %cst_71 : bf16 to vector<16x66xbf16>
    %c0_72 = arith.constant 0 : index
    %c450 = arith.constant 450 : index
    %61 = vector.load %arg14[%c0_72, %c450] : memref<16x516xbf16, #tpu.memory_space<vmem>>, vector<16x66xbf16>
    tpu.vector_store %arg14[%c0_72, %c450], %60 {strides = array<i32>} : memref<16x516xbf16, #tpu.memory_space<vmem>>, vector<16x66xbf16>,
    %c0_73 = arith.constant 0 : index
    %c0_74 = arith.constant 0 : index
    %62 = vector.load %arg14[%c0_73, %c0_74] : memref<16x516xbf16, #tpu.memory_space<vmem>>, vector<16x418xbf16>
    %c0_75 = arith.constant 0 : index
    %c0_76 = arith.constant 0 : index
    %63 = vector.load %arg16[%c0_75, %c0_76] : memref<288x516xbf16, #tpu.memory_space<vmem>>, vector<16x418xbf16>
    tpu.vector_store %arg16[%c0_75, %c0_76], %62 {strides = array<i32>} : memref<288x516xbf16, #tpu.memory_space<vmem>>, vector<16x418xbf16>,
    %c0_77 = arith.constant 0 : index
    %c1_78 = arith.constant 1 : index
    %64 = vector.load %arg14[%c0_77, %c1_78] : memref<16x516xbf16, #tpu.memory_space<vmem>>, vector<16x418xbf16>
    %c16_79 = arith.constant 16 : index
    %c0_80 = arith.constant 0 : index
    %65 = vector.load %arg16[%c16_79, %c0_80] : memref<288x516xbf16, #tpu.memory_space<vmem>>, vector<16x418xbf16>
    tpu.vector_store %arg16[%c16_79, %c0_80], %64 {strides = array<i32>} : memref<288x516xbf16, #tpu.memory_space<vmem>>, vector<16x418xbf16>,
    %c0_81 = arith.constant 0 : index
    %c2_82 = arith.constant 2 : index
    %66 = vector.load %arg14[%c0_81, %c2_82] : memref<16x516xbf16, #tpu.memory_space<vmem>>, vector<16x418xbf16>
    %c32_83 = arith.constant 32 : index
    %c0_84 = arith.constant 0 : index
    %67 = vector.load %arg16[%c32_83, %c0_84] : memref<288x516xbf16, #tpu.memory_space<vmem>>, vector<16x418xbf16>
    tpu.vector_store %arg16[%c32_83, %c0_84], %66 {strides = array<i32>} : memref<288x516xbf16, #tpu.memory_space<vmem>>, vector<16x418xbf16>,
    %c0_85 = arith.constant 0 : index
    %c16_86 = arith.constant 16 : index
    %68 = vector.load %arg14[%c0_85, %c16_86] : memref<16x516xbf16, #tpu.memory_space<vmem>>, vector<16x418xbf16>
    %c48 = arith.constant 48 : index
    %c0_87 = arith.constant 0 : index
    %69 = vector.load %arg16[%c48, %c0_87] : memref<288x516xbf16, #tpu.memory_space<vmem>>, vector<16x418xbf16>
    tpu.vector_store %arg16[%c48, %c0_87], %68 {strides = array<i32>} : memref<288x516xbf16, #tpu.memory_space<vmem>>, vector<16x418xbf16>,
    %c0_88 = arith.constant 0 : index
    %c17_89 = arith.constant 17 : index
    %70 = vector.load %arg14[%c0_88, %c17_89] : memref<16x516xbf16, #tpu.memory_space<vmem>>, vector<16x418xbf16>
    %c64_90 = arith.constant 64 : index
    %c0_91 = arith.constant 0 : index
    %71 = vector.load %arg16[%c64_90, %c0_91] : memref<288x516xbf16, #tpu.memory_space<vmem>>, vector<16x418xbf16>
    tpu.vector_store %arg16[%c64_90, %c0_91], %70 {strides = array<i32>} : memref<288x516xbf16, #tpu.memory_space<vmem>>, vector<16x418xbf16>,
    %c0_92 = arith.constant 0 : index
    %c18_93 = arith.constant 18 : index
    %72 = vector.load %arg14[%c0_92, %c18_93] : memref<16x516xbf16, #tpu.memory_space<vmem>>, vector<16x418xbf16>
    %c80 = arith.constant 80 : index
    %c0_94 = arith.constant 0 : index
    %73 = vector.load %arg16[%c80, %c0_94] : memref<288x516xbf16, #tpu.memory_space<vmem>>, vector<16x418xbf16>
    tpu.vector_store %arg16[%c80, %c0_94], %72 {strides = array<i32>} : memref<288x516xbf16, #tpu.memory_space<vmem>>, vector<16x418xbf16>,
    %c0_95 = arith.constant 0 : index
    %c32_96 = arith.constant 32 : index
    %74 = vector.load %arg14[%c0_95, %c32_96] : memref<16x516xbf16, #tpu.memory_space<vmem>>, vector<16x418xbf16>
    %c96_97 = arith.constant 96 : index
    %c0_98 = arith.constant 0 : index
    %75 = vector.load %arg16[%c96_97, %c0_98] : memref<288x516xbf16, #tpu.memory_space<vmem>>, vector<16x418xbf16>
    tpu.vector_store %arg16[%c96_97, %c0_98], %74 {strides = array<i32>} : memref<288x516xbf16, #tpu.memory_space<vmem>>, vector<16x418xbf16>,
    %c0_99 = arith.constant 0 : index
    %c33_100 = arith.constant 33 : index
    %76 = vector.load %arg14[%c0_99, %c33_100] : memref<16x516xbf16, #tpu.memory_space<vmem>>, vector<16x418xbf16>
    %c112 = arith.constant 112 : index
    %c0_101 = arith.constant 0 : index
    %77 = vector.load %arg16[%c112, %c0_101] : memref<288x516xbf16, #tpu.memory_space<vmem>>, vector<16x418xbf16>
    tpu.vector_store %arg16[%c112, %c0_101], %76 {strides = array<i32>} : memref<288x516xbf16, #tpu.memory_space<vmem>>, vector<16x418xbf16>,
    %c0_102 = arith.constant 0 : index
    %c34_103 = arith.constant 34 : index
    %78 = vector.load %arg14[%c0_102, %c34_103] : memref<16x516xbf16, #tpu.memory_space<vmem>>, vector<16x418xbf16>
    %c128_104 = arith.constant 128 : index
    %c0_105 = arith.constant 0 : index
    %79 = vector.load %arg16[%c128_104, %c0_105] : memref<288x516xbf16, #tpu.memory_space<vmem>>, vector<16x418xbf16>
    tpu.vector_store %arg16[%c128_104, %c0_105], %78 {strides = array<i32>} : memref<288x516xbf16, #tpu.memory_space<vmem>>, vector<16x418xbf16>,
    %c0_106 = arith.constant 0 : index
    %c0_107 = arith.constant 0 : index
    %80 = vector.load %arg6[%c0_106, %c0_107] : memref<8x144xbf16, #tpu.memory_space<vmem>>, vector<8x144xbf16>
    %c0_108 = arith.constant 0 : index
    %c0_109 = arith.constant 0 : index
    %81 = vector.load %arg16[%c0_108, %c0_109] : memref<288x516xbf16, #tpu.memory_space<vmem>>, vector<144x418xbf16>
    %cst_110 = arith.constant dense<0.000000e+00> : vector<8x418xf32>
    %82 = tpu.matmul %80, %81, %cst_110 {dimension_numbers = #tpu.dot_dimension_numbers<[1], [0], [0], [1], [0, 0, 1, 1], [], []>} : vector<8x144xbf16>, vector<144x418xbf16>, vector<8x418xf32> -> vector<8x418xf32>
    %c0_111 = arith.constant 0 : index
    %c0_112 = arith.constant 0 : index
    %83 = vector.load %arg7[%c0_111, %c0_112] : memref<8x1xf32, #tpu.memory_space<vmem>>, vector<8x1xf32>
    %84 = vector.broadcast %83 : vector<8x1xf32> to vector<8x418xf32>
    %85 = arith.addf %82, %84 : vector<8x418xf32>
    %cst_113 = arith.constant 0.000000e+00 : f32
    %86 = vector.broadcast %cst_113 : f32 to vector<8x418xf32>
    %87 = arith.maximumf %85, %86 : vector<8x418xf32>
    %88 = arith.truncf %87 : vector<8x418xf32> to vector<8x418xbf16>
    %c0_114 = arith.constant 0 : index
    %c0_115 = arith.constant 0 : index
    %89 = vector.load %arg15[%c0_114, %c0_115] : memref<8x516xbf16, #tpu.memory_space<vmem>>, vector<8x418xbf16>
    tpu.vector_store %arg15[%c0_114, %c0_115], %88 {strides = array<i32>} : memref<8x516xbf16, #tpu.memory_space<vmem>>, vector<8x418xbf16>,
    %cst_116 = arith.constant 0.000000e+00 : bf16
    %90 = vector.broadcast %cst_116 : bf16 to vector<8x98xbf16>
    %c0_117 = arith.constant 0 : index
    %c418 = arith.constant 418 : index
    %91 = vector.load %arg15[%c0_117, %c418] : memref<8x516xbf16, #tpu.memory_space<vmem>>, vector<8x98xbf16>
    tpu.vector_store %arg15[%c0_117, %c418], %90 {strides = array<i32>} : memref<8x516xbf16, #tpu.memory_space<vmem>>, vector<8x98xbf16>,
    %c0_118 = arith.constant 0 : index
    %c0_119 = arith.constant 0 : index
    %92 = vector.load %arg15[%c0_118, %c0_119] : memref<8x516xbf16, #tpu.memory_space<vmem>>, vector<1x160xbf16>
    %c0_120 = arith.constant 0 : index
    %c0_121 = arith.constant 0 : index
    %93 = vector.load %arg17[%c0_120, %c0_121] : memref<2x1280xbf16, #tpu.memory_space<vmem>>, vector<1x160xbf16>
    tpu.vector_store %arg17[%c0_120, %c0_121], %92 {strides = array<i32>} : memref<2x1280xbf16, #tpu.memory_space<vmem>>, vector<1x160xbf16>,
    %c1_122 = arith.constant 1 : index
    %c0_123 = arith.constant 0 : index
    %94 = vector.load %arg15[%c1_122, %c0_123] : memref<8x516xbf16, #tpu.memory_space<vmem>>, vector<1x160xbf16>
    %c0_124 = arith.constant 0 : index
    %c160_125 = arith.constant 160 : index
    %95 = vector.load %arg17[%c0_124, %c160_125] : memref<2x1280xbf16, #tpu.memory_space<vmem>>, vector<1x160xbf16>
    tpu.vector_store %arg17[%c0_124, %c160_125], %94 {strides = array<i32>} : memref<2x1280xbf16, #tpu.memory_space<vmem>>, vector<1x160xbf16>,
    %c2_126 = arith.constant 2 : index
    %c0_127 = arith.constant 0 : index
    %96 = vector.load %arg15[%c2_126, %c0_127] : memref<8x516xbf16, #tpu.memory_space<vmem>>, vector<1x160xbf16>
    %c0_128 = arith.constant 0 : index
    %c320 = arith.constant 320 : index
    %97 = vector.load %arg17[%c0_128, %c320] : memref<2x1280xbf16, #tpu.memory_space<vmem>>, vector<1x160xbf16>
    tpu.vector_store %arg17[%c0_128, %c320], %96 {strides = array<i32>} : memref<2x1280xbf16, #tpu.memory_space<vmem>>, vector<1x160xbf16>,
    %c3 = arith.constant 3 : index
    %c0_129 = arith.constant 0 : index
    %98 = vector.load %arg15[%c3, %c0_129] : memref<8x516xbf16, #tpu.memory_space<vmem>>, vector<1x160xbf16>
    %c0_130 = arith.constant 0 : index
    %c480 = arith.constant 480 : index
    %99 = vector.load %arg17[%c0_130, %c480] : memref<2x1280xbf16, #tpu.memory_space<vmem>>, vector<1x160xbf16>
    tpu.vector_store %arg17[%c0_130, %c480], %98 {strides = array<i32>} : memref<2x1280xbf16, #tpu.memory_space<vmem>>, vector<1x160xbf16>,
    %c4_131 = arith.constant 4 : index
    %c0_132 = arith.constant 0 : index
    %100 = vector.load %arg15[%c4_131, %c0_132] : memref<8x516xbf16, #tpu.memory_space<vmem>>, vector<1x160xbf16>
    %c0_133 = arith.constant 0 : index
    %c640 = arith.constant 640 : index
    %101 = vector.load %arg17[%c0_133, %c640] : memref<2x1280xbf16, #tpu.memory_space<vmem>>, vector<1x160xbf16>
    tpu.vector_store %arg17[%c0_133, %c640], %100 {strides = array<i32>} : memref<2x1280xbf16, #tpu.memory_space<vmem>>, vector<1x160xbf16>,
    %c5 = arith.constant 5 : index
    %c0_134 = arith.constant 0 : index
    %102 = vector.load %arg15[%c5, %c0_134] : memref<8x516xbf16, #tpu.memory_space<vmem>>, vector<1x160xbf16>
    %c0_135 = arith.constant 0 : index
    %c800 = arith.constant 800 : index
    %103 = vector.load %arg17[%c0_135, %c800] : memref<2x1280xbf16, #tpu.memory_space<vmem>>, vector<1x160xbf16>
    tpu.vector_store %arg17[%c0_135, %c800], %102 {strides = array<i32>} : memref<2x1280xbf16, #tpu.memory_space<vmem>>, vector<1x160xbf16>,
    %c6 = arith.constant 6 : index
    %c0_136 = arith.constant 0 : index
    %104 = vector.load %arg15[%c6, %c0_136] : memref<8x516xbf16, #tpu.memory_space<vmem>>, vector<1x160xbf16>
    %c0_137 = arith.constant 0 : index
    %c960 = arith.constant 960 : index
    %105 = vector.load %arg17[%c0_137, %c960] : memref<2x1280xbf16, #tpu.memory_space<vmem>>, vector<1x160xbf16>
    tpu.vector_store %arg17[%c0_137, %c960], %104 {strides = array<i32>} : memref<2x1280xbf16, #tpu.memory_space<vmem>>, vector<1x160xbf16>,
    %c7 = arith.constant 7 : index
    %c0_138 = arith.constant 0 : index
    %106 = vector.load %arg15[%c7, %c0_138] : memref<8x516xbf16, #tpu.memory_space<vmem>>, vector<1x160xbf16>
    %c0_139 = arith.constant 0 : index
    %c1120 = arith.constant 1120 : index
    %107 = vector.load %arg17[%c0_139, %c1120] : memref<2x1280xbf16, #tpu.memory_space<vmem>>, vector<1x160xbf16>
    tpu.vector_store %arg17[%c0_139, %c1120], %106 {strides = array<i32>} : memref<2x1280xbf16, #tpu.memory_space<vmem>>, vector<1x160xbf16>,
    %c0_140 = arith.constant 0 : index
    %c258 = arith.constant 258 : index
    %108 = vector.load %arg15[%c0_140, %c258] : memref<8x516xbf16, #tpu.memory_space<vmem>>, vector<1x160xbf16>
    %c1_141 = arith.constant 1 : index
    %c0_142 = arith.constant 0 : index
    %109 = vector.load %arg17[%c1_141, %c0_142] : memref<2x1280xbf16, #tpu.memory_space<vmem>>, vector<1x160xbf16>
    tpu.vector_store %arg17[%c1_141, %c0_142], %108 {strides = array<i32>} : memref<2x1280xbf16, #tpu.memory_space<vmem>>, vector<1x160xbf16>,
    %c1_143 = arith.constant 1 : index
    %c258_144 = arith.constant 258 : index
    %110 = vector.load %arg15[%c1_143, %c258_144] : memref<8x516xbf16, #tpu.memory_space<vmem>>, vector<1x160xbf16>
    %c1_145 = arith.constant 1 : index
    %c160_146 = arith.constant 160 : index
    %111 = vector.load %arg17[%c1_145, %c160_146] : memref<2x1280xbf16, #tpu.memory_space<vmem>>, vector<1x160xbf16>
    tpu.vector_store %arg17[%c1_145, %c160_146], %110 {strides = array<i32>} : memref<2x1280xbf16, #tpu.memory_space<vmem>>, vector<1x160xbf16>,
    %c2_147 = arith.constant 2 : index
    %c258_148 = arith.constant 258 : index
    %112 = vector.load %arg15[%c2_147, %c258_148] : memref<8x516xbf16, #tpu.memory_space<vmem>>, vector<1x160xbf16>
    %c1_149 = arith.constant 1 : index
    %c320_150 = arith.constant 320 : index
    %113 = vector.load %arg17[%c1_149, %c320_150] : memref<2x1280xbf16, #tpu.memory_space<vmem>>, vector<1x160xbf16>
    tpu.vector_store %arg17[%c1_149, %c320_150], %112 {strides = array<i32>} : memref<2x1280xbf16, #tpu.memory_space<vmem>>, vector<1x160xbf16>,
    %c3_151 = arith.constant 3 : index
    %c258_152 = arith.constant 258 : index
    %114 = vector.load %arg15[%c3_151, %c258_152] : memref<8x516xbf16, #tpu.memory_space<vmem>>, vector<1x160xbf16>
    %c1_153 = arith.constant 1 : index
    %c480_154 = arith.constant 480 : index
    %115 = vector.load %arg17[%c1_153, %c480_154] : memref<2x1280xbf16, #tpu.memory_space<vmem>>, vector<1x160xbf16>
    tpu.vector_store %arg17[%c1_153, %c480_154], %114 {strides = array<i32>} : memref<2x1280xbf16, #tpu.memory_space<vmem>>, vector<1x160xbf16>,
    %c4_155 = arith.constant 4 : index
    %c258_156 = arith.constant 258 : index
    %116 = vector.load %arg15[%c4_155, %c258_156] : memref<8x516xbf16, #tpu.memory_space<vmem>>, vector<1x160xbf16>
    %c1_157 = arith.constant 1 : index
    %c640_158 = arith.constant 640 : index
    %117 = vector.load %arg17[%c1_157, %c640_158] : memref<2x1280xbf16, #tpu.memory_space<vmem>>, vector<1x160xbf16>
    tpu.vector_store %arg17[%c1_157, %c640_158], %116 {strides = array<i32>} : memref<2x1280xbf16, #tpu.memory_space<vmem>>, vector<1x160xbf16>,
    %c5_159 = arith.constant 5 : index
    %c258_160 = arith.constant 258 : index
    %118 = vector.load %arg15[%c5_159, %c258_160] : memref<8x516xbf16, #tpu.memory_space<vmem>>, vector<1x160xbf16>
    %c1_161 = arith.constant 1 : index
    %c800_162 = arith.constant 800 : index
    %119 = vector.load %arg17[%c1_161, %c800_162] : memref<2x1280xbf16, #tpu.memory_space<vmem>>, vector<1x160xbf16>
    tpu.vector_store %arg17[%c1_161, %c800_162], %118 {strides = array<i32>} : memref<2x1280xbf16, #tpu.memory_space<vmem>>, vector<1x160xbf16>,
    %c6_163 = arith.constant 6 : index
    %c258_164 = arith.constant 258 : index
    %120 = vector.load %arg15[%c6_163, %c258_164] : memref<8x516xbf16, #tpu.memory_space<vmem>>, vector<1x160xbf16>
    %c1_165 = arith.constant 1 : index
    %c960_166 = arith.constant 960 : index
    %121 = vector.load %arg17[%c1_165, %c960_166] : memref<2x1280xbf16, #tpu.memory_space<vmem>>, vector<1x160xbf16>
    tpu.vector_store %arg17[%c1_165, %c960_166], %120 {strides = array<i32>} : memref<2x1280xbf16, #tpu.memory_space<vmem>>, vector<1x160xbf16>,
    %c7_167 = arith.constant 7 : index
    %c258_168 = arith.constant 258 : index
    %122 = vector.load %arg15[%c7_167, %c258_168] : memref<8x516xbf16, #tpu.memory_space<vmem>>, vector<1x160xbf16>
    %c1_169 = arith.constant 1 : index
    %c1120_170 = arith.constant 1120 : index
    %123 = vector.load %arg17[%c1_169, %c1120_170] : memref<2x1280xbf16, #tpu.memory_space<vmem>>, vector<1x160xbf16>
    tpu.vector_store %arg17[%c1_169, %c1120_170], %122 {strides = array<i32>} : memref<2x1280xbf16, #tpu.memory_space<vmem>>, vector<1x160xbf16>,
    %c0_i32_171 = arith.constant 0 : i32
    %124 = tpu.memref_slice %arg19[%c0_i32_171] : memref<1x!tpu.dma_semaphore, #tpu.memory_space<semaphore_mem>> -> memref<1x!tpu.dma_semaphore, #tpu.memory_space<semaphore_mem>>
    %125 = tpu.memref_squeeze %124 : memref<1x!tpu.dma_semaphore, #tpu.memory_space<semaphore_mem>> -> memref<!tpu.dma_semaphore, #tpu.memory_space<semaphore_mem>>
    tpu.wait_dma2 semaphore(%125 : memref<!tpu.dma_semaphore, #tpu.memory_space<semaphore_mem>>) src(%arg8 : memref<1280x128xbf16, #tpu.memory_space<any>>) dst(%arg18 : memref<1280x128xbf16, #tpu.memory_space<vmem>>)
    %c0_172 = arith.constant 0 : index
    %c0_173 = arith.constant 0 : index
    %126 = vector.load %arg17[%c0_172, %c0_173] : memref<2x1280xbf16, #tpu.memory_space<vmem>>, vector<2x1280xbf16>
    %c0_174 = arith.constant 0 : index
    %c0_175 = arith.constant 0 : index
    %127 = vector.load %arg18[%c0_174, %c0_175] : memref<1280x128xbf16, #tpu.memory_space<vmem>>, vector<1280x128xbf16>
    %cst_176 = arith.constant dense<0.000000e+00> : vector<2x128xf32>
    %128 = tpu.matmul %126, %127, %cst_176 {dimension_numbers = #tpu.dot_dimension_numbers<[1], [0], [0], [1], [0, 0, 1, 1], [], []>} : vector<2x1280xbf16>, vector<1280x128xbf16>, vector<2x128xf32> -> vector<2x128xf32>
    %c0_177 = arith.constant 0 : index
    %c0_178 = arith.constant 0 : index
    %129 = vector.load %arg9[%c0_177, %c0_178] : memref<1x128xf32, #tpu.memory_space<vmem>>, vector<1x128xf32>
    %130 = vector.broadcast %129 : vector<1x128xf32> to vector<2x128xf32>
    %131 = arith.addf %128, %130 : vector<2x128xf32>
    %cst_179 = arith.constant 0.000000e+00 : f32
    %132 = vector.broadcast %cst_179 : f32 to vector<2x128xf32>
    %133 = arith.maximumf %131, %132 : vector<2x128xf32>
    %134 = arith.truncf %133 : vector<2x128xf32> to vector<2x128xbf16>
    %c0_180 = arith.constant 0 : index
    %c0_181 = arith.constant 0 : index
    %135 = vector.load %arg10[%c0_180, %c0_181] : memref<128x128xbf16, #tpu.memory_space<vmem>>, vector<128x128xbf16>
    %cst_182 = arith.constant dense<0.000000e+00> : vector<2x128xf32>
    %136 = tpu.matmul %134, %135, %cst_182 {dimension_numbers = #tpu.dot_dimension_numbers<[1], [0], [0], [1], [0, 0, 1, 1], [], []>} : vector<2x128xbf16>, vector<128x128xbf16>, vector<2x128xf32> -> vector<2x128xf32>
    %c0_183 = arith.constant 0 : index
    %c0_184 = arith.constant 0 : index
    %137 = vector.load %arg11[%c0_183, %c0_184] : memref<1x128xf32, #tpu.memory_space<vmem>>, vector<1x128xf32>
    %138 = vector.broadcast %137 : vector<1x128xf32> to vector<2x128xf32>
    %139 = arith.addf %136, %138 : vector<2x128xf32>
    %cst_185 = arith.constant dense<0xFF800000> : vector<2xf32>
    %140 = vector.multi_reduction <maximumf>, %139, %cst_185 [1] : vector<2x128xf32> to vector<2xf32>
    %141 = vector.shape_cast %140 : vector<2xf32> to vector<2x1xf32>
    %142 = vector.broadcast %141 : vector<2x1xf32> to vector<2x128xf32>
    %143 = arith.subf %139, %142 : vector<2x128xf32>
    %144 = math.exp %143 : vector<2x128xf32>
    %cst_186 = arith.constant dense<0.000000e+00> : vector<2xf32>
    %145 = vector.multi_reduction <add>, %144, %cst_186 [1] : vector<2x128xf32> to vector<2xf32>
    %146 = vector.shape_cast %145 : vector<2xf32> to vector<2x1xf32>
    %147 = vector.broadcast %146 : vector<2x1xf32> to vector<2x128xf32>
    %148 = arith.divf %144, %147 : vector<2x128xf32>
    %c0_187 = arith.constant 0 : index
    %c0_188 = arith.constant 0 : index
    %149 = vector.load %arg12[%c0_187, %c0_188] : memref<2x128xf32, #tpu.memory_space<vmem>>, vector<2x128xf32>
    tpu.vector_store %arg12[%c0_187, %c0_188], %148 {strides = array<i32>} : memref<2x128xf32, #tpu.memory_space<vmem>>, vector<2x128xf32>,
    return
  }
  func.func @transform_0(%arg0: i32) -> (i32, i32) {
    %c0_i32 = arith.constant 0 : i32
    %c0_i32_0 = arith.constant 0 : i32
    %c0_i32_1 = arith.constant 0 : i32
    return %c0_i32, %c0_i32_0 : i32, i32
  }
  func.func @transform_1(%arg0: i32) -> (i32, i32) {
    %c0_i32 = arith.constant 0 : i32
    %c0_i32_0 = arith.constant 0 : i32
    %c0_i32_1 = arith.constant 0 : i32
    return %c0_i32, %c0_i32_0 : i32, i32
  }
  func.func @transform_2(%arg0: i32) -> (i32, i32) {
    %c0_i32 = arith.constant 0 : i32
    %c0_i32_0 = arith.constant 0 : i32
    %c0_i32_1 = arith.constant 0 : i32
    return %c0_i32, %c0_i32_0 : i32, i32
  }
  func.func @transform_3(%arg0: i32) -> (i32, i32) {
    %c0_i32 = arith.constant 0 : i32
    %c0_i32_0 = arith.constant 0 : i32
    %c0_i32_1 = arith.constant 0 : i32
    return %c0_i32, %c0_i32_0 : i32, i32
  }
  func.func @transform_4(%arg0: i32) -> (i32, i32) {
    %c0_i32 = arith.constant 0 : i32
    %c0_i32_0 = arith.constant 0 : i32
    %c0_i32_1 = arith.constant 0 : i32
    return %c0_i32, %c0_i32_0 : i32, i32
  }
  func.func @transform_5(%arg0: i32) -> (i32, i32) {
    %c0_i32 = arith.constant 0 : i32
    %c0_i32_0 = arith.constant 0 : i32
    %c0_i32_1 = arith.constant 0 : i32
    return %c0_i32, %c0_i32_0 : i32, i32
  }
  func.func @transform_6(%arg0: i32) -> (i32, i32) {
    %c0_i32 = arith.constant 0 : i32
    %c0_i32_0 = arith.constant 0 : i32
    %c0_i32_1 = arith.constant 0 : i32
    return %c0_i32, %c0_i32_0 : i32, i32
  }
  func.func @transform_8(%arg0: i32) -> (i32, i32) {
    %c0_i32 = arith.constant 0 : i32
    %c0_i32_0 = arith.constant 0 : i32
    %c0_i32_1 = arith.constant 0 : i32
    return %c0_i32, %c0_i32_0 : i32, i32
  }
  func.func @transform_9(%arg0: i32) -> (i32, i32) {
    %c0_i32 = arith.constant 0 : i32
    %c0_i32_0 = arith.constant 0 : i32
    %c0_i32_1 = arith.constant 0 : i32
    return %c0_i32, %c0_i32_0 : i32, i32
  }
  func.func @transform_10(%arg0: i32) -> (i32, i32) {
    %c0_i32 = arith.constant 0 : i32
    %c0_i32_0 = arith.constant 0 : i32
    %c0_i32_1 = arith.constant 0 : i32
    return %c0_i32, %c0_i32_0 : i32, i32
  }
  func.func @transform_11(%arg0: i32) -> (i32, i32) {
    %c0_i32 = arith.constant 0 : i32
    %c0_i32_0 = arith.constant 0 : i32
    %c0_i32_1 = arith.constant 0 : i32
    return %c0_i32, %c0_i32_0 : i32, i32
  }
}

</mosaic_0001>

<llo_original>
// kernel: cnn_forward.1
$region0: #{cnn_forward.1}
  #allocation0 [shape = 'u32[]', space=smem, size = 0x4, offset = 0x4, fixed_abs, tag = 'smem constant byte address 0x4 - core index']
  #allocation1 [shape = 'u32[144,128]{1,0:T(1,128)}', space=vmem, size = 0x12000, scoped, tag = 'internal scratch']
  #allocation2 [shape = 'bf16[32,516]{1,0:T(16,128)(2,1)}', space=vmem, size = 0xa000, scoped, tag = 'scratch operand']
  #allocation3 [shape = 'bf16[16,516]{1,0:T(16,128)(2,1)}', space=vmem, size = 0x5000, scoped, tag = 'scratch operand']
  #allocation4 [shape = 'bf16[8,516]{1,0:T(8,128)(2,1)}', space=vmem, size = 0x2800, scoped, tag = 'scratch operand']
  #allocation5 [shape = 'bf16[288,516]{1,0:T(16,128)(2,1)}', space=vmem, size = 0x5a000, scoped, tag = 'scratch operand']
  #allocation6 [shape = 'bf16[2,1280]{1,0:T(2,128)(2,1)}', space=vmem, size = 0x1400, scoped, tag = 'scratch operand']
  #allocation7 [shape = 'bf16[1280,128]{1,0:T(16,128)(2,1)}', space=vmem, size = 0x50000, scoped, tag = 'scratch operand']
  #allocation8 [shape = 's32[1]{0}', space=sflag, size = 0x4, scoped, tag = 'scratch operand']
  #allocation11 [shape = 's32[]', space=sflag, size = 0x4, offset = 0, fixed_abs, tag = 'sflag constant byte address 0x0 - dummy sync flag']
  #allocation12 [shape = 's32[]', space=sflag, size = 0x4, offset = 0, fixed_abs, tag = 'sflag constant byte address 0x0 - dummy sync flag']
  #allocation13 [shape = 'u32[]', space=smem, size = 0x4, offset = 0x44, fixed_abs, tag = 'smem constant byte address 0x44 - assertion arg 0']
  #allocation14 [shape = 'u32[]', space=smem, size = 0x4, offset = 0x48, fixed_abs, tag = 'smem constant byte address 0x48 - assertion arg 1']
  %s0 = inlined_call_operand.vmem [shape: bf16[4,516], index: 0, kind: input, shape index: {}]
  %s1 = inlined_call_operand.vmem [shape: bf16[32,36], index: 1, kind: input, shape index: {}]
  %s2 = inlined_call_operand.vmem [shape: f32[32,1], index: 2, kind: input, shape index: {}]
  %s3 = inlined_call_operand.vmem [shape: bf16[16,288], index: 3, kind: input, shape index: {}]
  %s4 = inlined_call_operand.vmem [shape: f32[16,1], index: 4, kind: input, shape index: {}]
  %s5 = inlined_call_operand.vmem [shape: bf16[8,144], index: 5, kind: input, shape index: {}]
  %s6 = inlined_call_operand.vmem [shape: f32[8,1], index: 6, kind: input, shape index: {}]
  %s7 = inlined_call_operand.hbm [shape: bf16[1280,128], index: 7, kind: input, shape index: {}]
  %s8 = inlined_call_operand.vmem [shape: f32[1,128], index: 8, kind: input, shape index: {}]
  %s9 = inlined_call_operand.vmem [shape: bf16[128,128], index: 9, kind: input, shape index: {}]
  %s10 = inlined_call_operand.vmem [shape: f32[1,128], index: 10, kind: input, shape index: {}]
  %s11 = inlined_call_operand.hbm [shape: f32[2,128], index: 11, kind: output, shape index: {}]
  %s12 = sld [smem:[#allocation0]]
  $region54: #{cnn_forward.1} parent=0
    _
  %s14 = ssub.s32 1, %s12
  %s15 = scalar_select 0, %s14, %s12
  $region1: #{cnn_forward.1} parent=0
    #allocation9 [shape = 'u8[1024]{0}', space=vmem, size = 0x400, scoped, tag = 'output window, operand 0, single buffered']
    #allocation10 [shape = 's32[1]{0}', space=sflag, size = 0x4, scoped, tag = 'scoped memory for cnn_forward.1']
    %16 = vsyncpa [#allocation10], 0
    // Predicated region
    $region2: #{cnn_forward.1} parent=1 // pred_check
      _
    $region3: #{cnn_forward.1} parent=1 // pred_check_branch
      %18 = sbr.rel (0) target = $region5
    $region4: #{cnn_forward.1} parent=1 // pred_region
      _
    $region5: #{cnn_forward.1} parent=1 // pred_fallthru
      _
    // Predicated region
    $region6: #{cnn_forward.1} parent=1 // pred_check
      _
    $region7: #{cnn_forward.1} parent=1 // pred_check_branch
      %20 = sbr.rel (0) target = $region9
    $region8: #{cnn_forward.1} parent=1 // pred_region
      _
    $region9: #{cnn_forward.1} parent=1 // pred_fallthru
      _
    // Predicated region
    $region10: #{cnn_forward.1} parent=1 // pred_check
      _
    $region11: #{cnn_forward.1} parent=1 // pred_check_branch
      %22 = sbr.rel (0) target = $region13
    $region12: #{cnn_forward.1} parent=1 // pred_region
      _
    $region13: #{cnn_forward.1} parent=1 // pred_fallthru
      _
    // Predicated region
    $region14: #{cnn_forward.1} parent=1 // pred_check
      _
    $region15: #{cnn_forward.1} parent=1 // pred_check_branch
      %24 = sbr.rel (0) target = $region17
    $region16: #{cnn_forward.1} parent=1 // pred_region
      _
    $region17: #{cnn_forward.1} parent=1 // pred_fallthru
      _
    // Predicated region
    $region18: #{cnn_forward.1} parent=1 // pred_check
      _
    $region19: #{cnn_forward.1} parent=1 // pred_check_branch
      %26 = sbr.rel (0) target = $region21
    $region20: #{cnn_forward.1} parent=1 // pred_region
      _
    $region21: #{cnn_forward.1} parent=1 // pred_fallthru
      _
    // Predicated region
    $region22: #{cnn_forward.1} parent=1 // pred_check
      _
    $region23: #{cnn_forward.1} parent=1 // pred_check_branch
      %28 = sbr.rel (0) target = $region25
    $region24: #{cnn_forward.1} parent=1 // pred_region
      _
    $region25: #{cnn_forward.1} parent=1 // pred_fallthru
      _
    // Predicated region
    $region26: #{cnn_forward.1} parent=1 // pred_check
      _
    $region27: #{cnn_forward.1} parent=1 // pred_check_branch
      %30 = sbr.rel (0) target = $region29
    $region28: #{cnn_forward.1} parent=1 // pred_region
      _
    $region29: #{cnn_forward.1} parent=1 // pred_fallthru
      _
    // Predicated region
    $region30: #{cnn_forward.1} parent=1 // pred_check
      _
    $region31: #{cnn_forward.1} parent=1 // pred_check_branch
      %32 = sbr.rel (0) target = $region33
    $region32: #{cnn_forward.1} parent=1 // pred_region
      _
    $region33: #{cnn_forward.1} parent=1 // pred_fallthru
      _
    // Predicated region
    $region34: #{cnn_forward.1} parent=1 // pred_check
      _
    $region35: #{cnn_forward.1} parent=1 // pred_check_branch
      %34 = sbr.rel (0) target = $region37
    $region36: #{cnn_forward.1} parent=1 // pred_region
      _
    $region37: #{cnn_forward.1} parent=1 // pred_fallthru
      _
    // Predicated region
    $region38: #{cnn_forward.1} parent=1 // pred_check
      _
    $region39: #{cnn_forward.1} parent=1 // pred_check_branch
      %36 = sbr.rel (0) target = $region41
    $region40: #{cnn_forward.1} parent=1 // pred_region
      _
    $region41: #{cnn_forward.1} parent=1 // pred_fallthru
      _
    // Predicated region
    $region42: #{cnn_forward.1} parent=1 // pred_check
      _
    $region43: #{cnn_forward.1} parent=1 // pred_check_branch
      %39 = sbr.rel target = $region45
    $region44: #{cnn_forward.1} parent=1 // pred_region
      %40 = sst [smem:[#allocation13]] [#allocation12]
      %41 = sst [smem:[#allocation14]] [#allocation11]
    $region45: #{cnn_forward.1} parent=1 // pred_fallthru
      _
    %43 = shalt.err (0)
    %s45 = sshll.u32 [#allocation7], 4
    %s46 = int_to_ptr.vmem [resolvable:$true] %s45
    %48 = dma.hbm_to_vmem [thread:$0]  %s7, 10240, %s46, [#allocation8]
    %v49 = vld [vmem:[%s0] sm:$0xff]
    %v51 = vcombine.high %v49, %v49
    %v53 = vunpack.c.l.s4 1983009808
    %v54 = vunpack.c.0.s8 %v53
    %v55 = vlaneseq
    %v56 = vshrl.u32 %v55, 7
    %v57 = vsub.s32 %v54, %v56
    %v58 = vrot.slane %v49, %v57
    %v60 = vunpack.c.l.s4 1983009808
    %v61 = vunpack.c.0.s8 %v60
    %v62 = vlaneseq
    %v63 = vshrl.u32 %v62, 7
    %v64 = vsub.s32 %v61, %v63
    %v65 = vrot.slane %v51, %v64
    %v66 = vcombine.high %v58, %v58
    %v67 = vcombine.high %v65, %v65
    %72 = vst [vmem:[#allocation5] sm:$0x3] %v58
    %73 = vst [vmem:[#allocation5 + $0x8] sm:$0x3] %v66
    %74 = vst [vmem:[#allocation5 + $0x10] sm:$0x3] %v65
    %vm75 = vcmask 795648
    %76 = vst.msk [vmem:[#allocation5 + $0x18] sm:$0x3] %vm75, %v67
    %v77 = vld [vmem:[%s0] sm:$0xff]
    %v79 = vcombine.low %v77, %v77
    %v81 = vunpack.c.l.s4 1983009808
    %v82 = vunpack.c.0.s8 %v81
    %v83 = vlaneseq
    %v84 = vshrl.u32 %v83, 7
    %v85 = vsub.s32 %v82, %v84
    %v86 = vrot.slane %v79, %v85
    %v88 = vunpack.c.l.s4 1983009808
    %v89 = vunpack.c.0.s8 %v88
    %v90 = vlaneseq
    %v91 = vshrl.u32 %v90, 7
    %v92 = vsub.s32 %v89, %v91
    %v93 = vrot.slane %v77, %v92
    %v94 = vcombine.high %v86, %v86
    %v95 = vcombine.high %v93, %v93
    %96 = vrot.lane.b32.xlu0 %v86, 127
    %v97 = vpop.permute.xlu0 %96
    %98 = vrot.lane.b32.xlu0 %v94, 127
    %v99 = vpop.permute.xlu0 %98
    %100 = vrot.lane.b32.xlu0 %v93, 127
    %v101 = vpop.permute.xlu0 %100
    %102 = vrot.lane.b32.xlu0 %v95, 127
    %v103 = vpop.permute.xlu0 %102
    %vm104 = vcmask 1039360
    %v105 = vsel %vm104, %v97, %v99
    %v106 = vsel %vm104, %v99, %v101
    %v107 = vsel %vm104, %v101, %v103
    %112 = vst [vmem:[#allocation5] sm:$0xc] %v105
    %113 = vst [vmem:[#allocation5 + $0x8] sm:$0xc] %v106
    %114 = vst [vmem:[#allocation5 + $0x10] sm:$0xc] %v107
    %vm115 = vcmask 797698
    %116 = vst.msk [vmem:[#allocation5 + $0x18] sm:$0xc] %vm115, %v103
    %v117 = vld [vmem:[%s0] sm:$0xff]
    %v119 = vcombine.high %v117, %v117
    %v121 = vunpack.c.l.s4 1983009808
    %v122 = vunpack.c.0.s8 %v121
    %v123 = vlaneseq
    %v124 = vshrl.u32 %v123, 7
    %v125 = vsub.s32 %v122, %v124
    %v126 = vrot.slane %v117, %v125
    %v128 = vunpack.c.l.s4 1983009808
    %v129 = vunpack.c.0.s8 %v128
    %v130 = vlaneseq
    %v131 = vshrl.u32 %v130, 7
    %v132 = vsub.s32 %v129, %v131
    %v133 = vrot.slane %v119, %v132
    %v134 = vcombine.low %v126, %v126
    %v135 = vcombine.low %v133, %v133
    %136 = vrot.lane.b32.xlu0 %v134, 126
    %v137 = vpop.permute.xlu0 %136
    %138 = vrot.lane.b32.xlu0 %v126, 126
    %v139 = vpop.permute.xlu0 %138
    %140 = vrot.lane.b32.xlu0 %v135, 126
    %v141 = vpop.permute.xlu0 %140
    %142 = vrot.lane.b32.xlu0 %v133, 126
    %v143 = vpop.permute.xlu0 %142
    %vm144 = vcmask 1031168
    %v145 = vsel %vm144, %v137, %v139
    %v146 = vsel %vm144, %v139, %v141
    %v147 = vsel %vm144, %v141, %v143
    %152 = vst [vmem:[#allocation5] sm:$0x30] %v145
    %153 = vst [vmem:[#allocation5 + $0x8] sm:$0x30] %v146
    %154 = vst [vmem:[#allocation5 + $0x10] sm:$0x30] %v147
    %vm155 = vcmask 799748
    %156 = vst.msk [vmem:[#allocation5 + $0x18] sm:$0x30] %vm155, %v143
    %v157 = vld [vmem:[%s0] sm:$0xff]
    %v159 = vcombine.low %v157, %v157
    %v161 = vunpack.c.l.s4 1983009808
    %v162 = vunpack.c.0.s8 %v161
    %v163 = vlaneseq
    %v164 = vshrl.u32 %v163, 7
    %v165 = vsub.s32 %v162, %v164
    %v166 = vrot.slane %v159, %v165
    %v168 = vunpack.c.l.s4 1983009808
    %v169 = vunpack.c.0.s8 %v168
    %v170 = vlaneseq
    %v171 = vshrl.u32 %v170, 7
    %v172 = vsub.s32 %v169, %v171
    %v173 = vrot.slane %v157, %v172
    %v174 = vcombine.low %v166, %v166
    %v175 = vcombine.low %v173, %v173
    %176 = vrot.lane.b32.xlu0 %v174, 112
    %v177 = vpop.permute.xlu0 %176
    %178 = vrot.lane.b32.xlu0 %v166, 112
    %v179 = vpop.permute.xlu0 %178
    %180 = vrot.lane.b32.xlu0 %v175, 112
    %v181 = vpop.permute.xlu0 %180
    %182 = vrot.lane.b32.xlu0 %v173, 112
    %v183 = vpop.permute.xlu0 %182
    %vm184 = vcmask 916480
    %v185 = vsel %vm184, %v177, %v179
    %v186 = vsel %vm184, %v179, %v181
    %v187 = vsel %vm184, %v181, %v183
    %192 = vst [vmem:[#allocation5] sm:$0xc0] %v185
    %193 = vst [vmem:[#allocation5 + $0x8] sm:$0xc0] %v186
    %194 = vst [vmem:[#allocation5 + $0x10] sm:$0xc0] %v187
    %vm195 = vcmask 801798
    %196 = vst.msk [vmem:[#allocation5 + $0x18] sm:$0xc0] %vm195, %v183
    %v197 = vld [vmem:[%s0] sm:$0xff]
    %v199 = vcombine.high %v197, %v197
    %v201 = vunpack.c.l.s4 1983009808
    %v202 = vunpack.c.0.s8 %v201
    %v203 = vlaneseq
    %v204 = vshrl.u32 %v203, 7
    %v205 = vsub.s32 %v202, %v204
    %v206 = vrot.slane %v197, %v205
    %v208 = vunpack.c.l.s4 1983009808
    %v209 = vunpack.c.0.s8 %v208
    %v210 = vlaneseq
    %v211 = vshrl.u32 %v210, 7
    %v212 = vsub.s32 %v209, %v211
    %v213 = vrot.slane %v199, %v212
    %v214 = vcombine.high %v206, %v206
    %v215 = vcombine.high %v213, %v213
    %216 = vrot.lane.b32.xlu0 %v206, 111
    %v217 = vpop.permute.xlu0 %216
    %218 = vrot.lane.b32.xlu0 %v214, 111
    %v219 = vpop.permute.xlu0 %218
    %220 = vrot.lane.b32.xlu0 %v213, 111
    %v221 = vpop.permute.xlu0 %220
    %222 = vrot.lane.b32.xlu0 %v215, 111
    %v223 = vpop.permute.xlu0 %222
    %vm224 = vcmask 908288
    %v225 = vsel %vm224, %v217, %v219
    %v226 = vsel %vm224, %v219, %v221
    %v227 = vsel %vm224, %v221, %v223
    %232 = vst [vmem:[#allocation5 + $0x28] sm:$0x3] %v225
    %233 = vst [vmem:[#allocation5 + $0x30] sm:$0x3] %v226
    %234 = vst [vmem:[#allocation5 + $0x38] sm:$0x3] %v227
    %235 = vst.msk [vmem:[#allocation5 + $0x40] sm:$0x3] %vm75, %v223
    %v236 = vld [vmem:[%s0] sm:$0xff]
    %v238 = vcombine.low %v236, %v236
    %v240 = vunpack.c.l.s4 1983009808
    %v241 = vunpack.c.0.s8 %v240
    %v242 = vlaneseq
    %v243 = vshrl.u32 %v242, 7
    %v244 = vsub.s32 %v241, %v243
    %v245 = vrot.slane %v238, %v244
    %v247 = vunpack.c.l.s4 1983009808
    %v248 = vunpack.c.0.s8 %v247
    %v249 = vlaneseq
    %v250 = vshrl.u32 %v249, 7
    %v251 = vsub.s32 %v248, %v250
    %v252 = vrot.slane %v236, %v251
    %v253 = vcombine.high %v245, %v245
    %v254 = vcombine.high %v252, %v252
    %255 = vrot.lane.b32.xlu0 %v245, 110
    %v256 = vpop.permute.xlu0 %255
    %257 = vrot.lane.b32.xlu0 %v253, 110
    %v258 = vpop.permute.xlu0 %257
    %259 = vrot.lane.b32.xlu0 %v252, 110
    %v260 = vpop.permute.xlu0 %259
    %261 = vrot.lane.b32.xlu0 %v254, 110
    %v262 = vpop.permute.xlu0 %261
    %vm263 = vcmask 900096
    %v264 = vsel %vm263, %v256, %v258
    %v265 = vsel %vm263, %v258, %v260
    %v266 = vsel %vm263, %v260, %v262
    %271 = vst [vmem:[#allocation5 + $0x28] sm:$0xc] %v264
    %272 = vst [vmem:[#allocation5 + $0x30] sm:$0xc] %v265
    %273 = vst [vmem:[#allocation5 + $0x38] sm:$0xc] %v266
    %274 = vst.msk [vmem:[#allocation5 + $0x40] sm:$0xc] %vm115, %v262
    %v275 = vld [vmem:[%s0] sm:$0xff]
    %v276 = vld [vmem:[%s0 + $0x8] sm:$0x3]
    %v279 = vcombine.high %v275, %v275
    %v281 = vunpack.c.l.s4 1983009808
    %v282 = vunpack.c.0.s8 %v281
    %v283 = vlaneseq
    %v284 = vshrl.u32 %v283, 7
    %v285 = vsub.s32 %v282, %v284
    %v286 = vrot.slane %v275, %v285
    %v288 = vunpack.c.l.s4 1983009808
    %v289 = vunpack.c.0.s8 %v288
    %v290 = vlaneseq
    %v291 = vshrl.u32 %v290, 7
    %v292 = vsub.s32 %v289, %v291
    %v293 = vrot.slane %v279, %v292
    %v294 = vcombine.low %v286, %v286
    %v295 = vcombine.low %v293, %v293
    %v297 = vunpack.c.l.s4 1983009808
    %v298 = vunpack.c.0.s8 %v297
    %v299 = vlaneseq
    %v300 = vshrl.u32 %v299, 7
    %v301 = vsub.s32 %v298, %v300
    %v302 = vrot.slane %v276, %v301
    %v303 = vcombine.low %v302, %v302
    %304 = vrot.lane.b32.xlu0 %v294, 96
    %v305 = vpop.permute.xlu0 %304
    %306 = vrot.lane.b32.xlu0 %v286, 96
    %v307 = vpop.permute.xlu0 %306
    %308 = vrot.lane.b32.xlu0 %v295, 96
    %v309 = vpop.permute.xlu0 %308
    %310 = vrot.lane.b32.xlu0 %v293, 96
    %v311 = vpop.permute.xlu0 %310
    %312 = vrot.lane.b32.xlu0 %v303, 96
    %v313 = vpop.permute.xlu0 %312
    %vm314 = vcmask 785408
    %v315 = vsel %vm314, %v305, %v307
    %v316 = vsel %vm314, %v307, %v309
    %v317 = vsel %vm314, %v309, %v311
    %v318 = vsel %vm314, %v311, %v313
    %323 = vst [vmem:[#allocation5 + $0x28] sm:$0x30] %v315
    %324 = vst [vmem:[#allocation5 + $0x30] sm:$0x30] %v316
    %325 = vst [vmem:[#allocation5 + $0x38] sm:$0x30] %v317
    %326 = vst.msk [vmem:[#allocation5 + $0x40] sm:$0x30] %vm155, %v318
    %v327 = vld [vmem:[%s0] sm:$0xff]
    %v328 = vld [vmem:[%s0 + $0x8] sm:$0x3]
    %v331 = vcombine.low %v327, %v327
    %v333 = vunpack.c.l.s4 1983009808
    %v334 = vunpack.c.0.s8 %v333
    %v335 = vlaneseq
    %v336 = vshrl.u32 %v335, 7
    %v337 = vsub.s32 %v334, %v336
    %v338 = vrot.slane %v331, %v337
    %v340 = vunpack.c.l.s4 1983009808
    %v341 = vunpack.c.0.s8 %v340
    %v342 = vlaneseq
    %v343 = vshrl.u32 %v342, 7
    %v344 = vsub.s32 %v341, %v343
    %v345 = vrot.slane %v327, %v344
    %v346 = vcombine.low %v338, %v338
    %v347 = vcombine.low %v345, %v345
    %v348 = vcombine.low %v328, %v328
    %v350 = vunpack.c.l.s4 1983009808
    %v351 = vunpack.c.0.s8 %v350
    %v352 = vlaneseq
    %v353 = vshrl.u32 %v352, 7
    %v354 = vsub.s32 %v351, %v353
    %v355 = vrot.slane %v348, %v354
    %v356 = vcombine.low %v355, %v355
    %357 = vrot.lane.b32.xlu0 %v346, 95
    %v358 = vpop.permute.xlu0 %357
    %359 = vrot.lane.b32.xlu0 %v338, 95
    %v360 = vpop.permute.xlu0 %359
    %361 = vrot.lane.b32.xlu0 %v347, 95
    %v362 = vpop.permute.xlu0 %361
    %363 = vrot.lane.b32.xlu0 %v345, 95
    %v364 = vpop.permute.xlu0 %363
    %365 = vrot.lane.b32.xlu0 %v356, 95
    %v366 = vpop.permute.xlu0 %365
    %vm367 = vcmask 777216
    %v368 = vsel %vm367, %v358, %v360
    %v369 = vsel %vm367, %v360, %v362
    %v370 = vsel %vm367, %v362, %v364
    %v371 = vsel %vm367, %v364, %v366
    %376 = vst [vmem:[#allocation5 + $0x28] sm:$0xc0] %v368
    %377 = vst [vmem:[#allocation5 + $0x30] sm:$0xc0] %v369
    %378 = vst [vmem:[#allocation5 + $0x38] sm:$0xc0] %v370
    %379 = vst.msk [vmem:[#allocation5 + $0x40] sm:$0xc0] %vm195, %v371
    %v380 = vld [vmem:[%s0] sm:$0xff]
    %v381 = vld [vmem:[%s0 + $0x8] sm:$0x3]
    %v384 = vcombine.high %v380, %v380
    %v386 = vunpack.c.l.s4 1983009808
    %v387 = vunpack.c.0.s8 %v386
    %v388 = vlaneseq
    %v389 = vshrl.u32 %v388, 7
    %v390 = vsub.s32 %v387, %v389
    %v391 = vrot.slane %v380, %v390
    %v393 = vunpack.c.l.s4 1983009808
    %v394 = vunpack.c.0.s8 %v393
    %v395 = vlaneseq
    %v396 = vshrl.u32 %v395, 7
    %v397 = vsub.s32 %v394, %v396
    %v398 = vrot.slane %v384, %v397
    %v399 = vcombine.high %v391, %v391
    %v400 = vcombine.high %v398, %v398
    %v402 = vunpack.c.l.s4 1983009808
    %v403 = vunpack.c.0.s8 %v402
    %v404 = vlaneseq
    %v405 = vshrl.u32 %v404, 7
    %v406 = vsub.s32 %v403, %v405
    %v407 = vrot.slane %v381, %v406
    %408 = vrot.lane.b32.xlu0 %v391, 94
    %v409 = vpop.permute.xlu0 %408
    %410 = vrot.lane.b32.xlu0 %v399, 94
    %v411 = vpop.permute.xlu0 %410
    %412 = vrot.lane.b32.xlu0 %v398, 94
    %v413 = vpop.permute.xlu0 %412
    %414 = vrot.lane.b32.xlu0 %v400, 94
    %v415 = vpop.permute.xlu0 %414
    %416 = vrot.lane.b32.xlu0 %v407, 94
    %v417 = vpop.permute.xlu0 %416
    %vm418 = vcmask 769024
    %v419 = vsel %vm418, %v409, %v411
    %v420 = vsel %vm418, %v411, %v413
    %v421 = vsel %vm418, %v413, %v415
    %v422 = vsel %vm418, %v415, %v417
    %427 = vst [vmem:[#allocation5 + $0x50] sm:$0x3] %v419
    %428 = vst [vmem:[#allocation5 + $0x58] sm:$0x3] %v420
    %429 = vst [vmem:[#allocation5 + $0x60] sm:$0x3] %v421
    %430 = vst.msk [vmem:[#allocation5 + $0x68] sm:$0x3] %vm75, %v422
    %v431 = vld [vmem:[%s1] sm:$0xf]
    %v432 = vld [vmem:[%s1 + $0x4] sm:$0xf]
    %v433 = vld [vmem:[%s1 + $0x8] sm:$0xf]
    %v434 = vld [vmem:[%s1 + $0xc] sm:$0xf]
    %v435 = vld [vmem:[#allocation5] sm:$0xff]
    %v436 = vld [vmem:[#allocation5 + $0x8] sm:$0xff]
    %v437 = vld [vmem:[#allocation5 + $0x10] sm:$0xff]
    %v438 = vld [vmem:[#allocation5 + $0x18] sm:$0xff]
    %v439 = vld [vmem:[#allocation5 + $0x28] sm:$0xff]
    %v440 = vld [vmem:[#allocation5 + $0x30] sm:$0xff]
    %v441 = vld [vmem:[#allocation5 + $0x38] sm:$0xff]
    %v442 = vld [vmem:[#allocation5 + $0x40] sm:$0xff]
    %v443 = vld [vmem:[#allocation5 + $0x50] sm:$0x3]
    %v444 = vld [vmem:[#allocation5 + $0x58] sm:$0x3]
    %v445 = vld [vmem:[#allocation5 + $0x60] sm:$0x3]
    %v446 = vld [vmem:[#allocation5 + $0x68] sm:$0x3]
    %v447 = vld [vmem:[%s2] sm:$0xff]
    %v448 = vld [vmem:[%s2 + $0x8] sm:$0xff]
    %v449 = vld [vmem:[%s2 + $0x10] sm:$0xff]
    %v450 = vld [vmem:[%s2 + $0x18] sm:$0xff]
    %452 = vset.pattern.permute.xlu0 0
    %453 = vperm.xlu0 %452, %v447
    %v454 = vpop.permute.xlu0 %453
    %457 = vset.pattern.permute.xlu0 0
    %458 = vperm.xlu0 %457, %v448
    %v459 = vpop.permute.xlu0 %458
    %462 = vset.pattern.permute.xlu0 0
    %463 = vperm.xlu0 %462, %v449
    %v464 = vpop.permute.xlu0 %463
    %467 = vset.pattern.permute.xlu0 0
    %468 = vperm.xlu0 %467, %v450
    %v469 = vpop.permute.xlu0 %468
    %v475 = vunpack.c.l.b16 %v431
    %v476 = vunpack.c.l.b16 %v432
    %v477 = vunpack.c.l.b16 %v433
    %v478 = vunpack.c.l.b16 %v434
    %v479 = vpack.c.b16 %v476, %v475
    %v480 = vpack.c.b16 %v478, %v477
    %vm481 = vcmask 293888
    %v483 = vsel %vm481, %v479, 0
    %v486 = vsel %vm481, %v480, 0
    %vm488 = vcmask 1041408
    %v490 = vsel %vm488, %v443, 0
    %v493 = vsel %vm488, %v444, 0
    %v496 = vsel %vm488, %v445, 0
    %v499 = vsel %vm488, %v446, 0
    %501 = vmatprep.subr.bf16.mxu0 %v436
    %502 = vmatpush1.bf16.msra.mxu0 %v435
    %503 = vmatprep.subr.bf16.mxu0 %v440
    %504 = vmatpush1.bf16.msra.mxu0 %v439
    %505 = vmatprep.subr.bf16.mxu0 %v493
    %506 = vmatpush1.bf16.msra.mxu0 %v490
    %507 = vmatprep.subr.bf16.mxu0 0
    %508 = vmatpush1.bf16.msra.mxu0 0
    %509 = vmatprep.subr.bf16.mxu0 0
    %510 = vmatpush1.bf16.msra.mxu0 0
    %511 = vmatprep.subr.bf16.mxu0 0
    %512 = vmatpush1.bf16.msra.mxu0 0
    %513 = vmatprep.subr.bf16.mxu0 0
    %514 = vmatpush1.bf16.msra.mxu0 0
    %515 = vmatprep.subr.bf16.mxu0 0
    %516 = vmatpush1.bf16.msra.mxu0 0
    %517 = vmatprep.subr.bf16.mxu0 0
    %518 = vmatpush1.bf16.msra.mxu0 0
    %519 = vmatprep.subr.bf16.mxu0 0
    %520 = vmatpush1.bf16.msra.mxu0 0
    %521 = vmatprep.subr.bf16.mxu0 0
    %522 = vmatpush1.bf16.msra.mxu0 0
    %523 = vmatprep.subr.bf16.mxu0 0
    %524 = vmatpush1.bf16.msra.mxu0 0
    %525 = vmatprep.subr.bf16.mxu0 0
    %526 = vmatpush1.bf16.msra.mxu0 0
    %527 = vmatprep.subr.bf16.mxu0 0
    %528 = vmatpush1.bf16.msra.mxu0 0
    %529 = vmatprep.subr.bf16.mxu0 0
    %530 = vmatpush1.bf16.msra.mxu0 0
    %531 = vmatprep.subr.bf16.mxu0 0
    %532 = vmatpush1.bf16.msra.mxu0 0
    %533 = vmatprep.mubr.bf16.mxu0 0
    %534 = vmatmul.mubr.bf16.gmra.mrb[0].mxu0 %v483
    %v535 = vpop.f32.mrb[0].mxu0
    %v536 = vadd.f32 %v454, %v535
    %v537 = vpop.f32.mrb[0].mxu0
    %v538 = vadd.f32 %v454, %v537
    %v539 = vpop.f32.mrb[0].mxu0
    %v540 = vadd.f32 %v459, %v539
    %v541 = vpop.f32.mrb[0].mxu0
    %v542 = vadd.f32 %v459, %v541
    %543 = vmatprep.mubr.bf16.mxu0 0
    %544 = vmatmul.mubr.bf16.gmra.mrb[0].mxu0 %v486
    %v545 = vpop.f32.mrb[0].mxu0
    %v546 = vadd.f32 %v464, %v545
    %v547 = vpop.f32.mrb[0].mxu0
    %v548 = vadd.f32 %v464, %v547
    %v549 = vpop.f32.mrb[0].mxu0
    %v550 = vadd.f32 %v469, %v549
    %v551 = vpop.f32.mrb[0].mxu0
    %v552 = vadd.f32 %v469, %v551
    %553 = vdwg.mxu0
    %554 = vmatprep.subr.bf16.mxu0 %v438
    %555 = vmatpush1.bf16.msra.mxu0 %v437
    %556 = vmatprep.subr.bf16.mxu0 %v442
    %557 = vmatpush1.bf16.msra.mxu0 %v441
    %558 = vmatprep.subr.bf16.mxu0 %v499
    %559 = vmatpush1.bf16.msra.mxu0 %v496
    %560 = vmatprep.subr.bf16.mxu0 0
    %561 = vmatpush1.bf16.msra.mxu0 0
    %562 = vmatprep.subr.bf16.mxu0 0
    %563 = vmatpush1.bf16.msra.mxu0 0
    %564 = vmatprep.subr.bf16.mxu0 0
    %565 = vmatpush1.bf16.msra.mxu0 0
    %566 = vmatprep.subr.bf16.mxu0 0
    %567 = vmatpush1.bf16.msra.mxu0 0
    %568 = vmatprep.subr.bf16.mxu0 0
    %569 = vmatpush1.bf16.msra.mxu0 0
    %570 = vmatprep.subr.bf16.mxu0 0
    %571 = vmatpush1.bf16.msra.mxu0 0
    %572 = vmatprep.subr.bf16.mxu0 0
    %573 = vmatpush1.bf16.msra.mxu0 0
    %574 = vmatprep.subr.bf16.mxu0 0
    %575 = vmatpush1.bf16.msra.mxu0 0
    %576 = vmatprep.subr.bf16.mxu0 0
    %577 = vmatpush1.bf16.msra.mxu0 0
    %578 = vmatprep.subr.bf16.mxu0 0
    %579 = vmatpush1.bf16.msra.mxu0 0
    %580 = vmatprep.subr.bf16.mxu0 0
    %581 = vmatpush1.bf16.msra.mxu0 0
    %582 = vmatprep.subr.bf16.mxu0 0
    %583 = vmatpush1.bf16.msra.mxu0 0
    %584 = vmatprep.subr.bf16.mxu0 0
    %585 = vmatpush1.bf16.msra.mxu0 0
    %586 = vmatprep.mubr.bf16.mxu0 0
    %587 = vmatmul.mubr.bf16.gmra.mrb[0].mxu0 %v483
    %v588 = vpop.f32.mrb[0].mxu0
    %v589 = vadd.f32 %v454, %v588
    %v590 = vpop.f32.mrb[0].mxu0
    %v591 = vadd.f32 %v454, %v590
    %v592 = vpop.f32.mrb[0].mxu0
    %v593 = vadd.f32 %v459, %v592
    %v594 = vpop.f32.mrb[0].mxu0
    %v595 = vadd.f32 %v459, %v594
    %596 = vmatprep.mubr.bf16.mxu0 0
    %597 = vmatmul.mubr.bf16.gmra.mrb[0].mxu0 %v486
    %v598 = vpop.f32.mrb[0].mxu0
    %v599 = vadd.f32 %v464, %v598
    %v600 = vpop.f32.mrb[0].mxu0
    %v601 = vadd.f32 %v464, %v600
    %v602 = vpop.f32.mrb[0].mxu0
    %v603 = vadd.f32 %v469, %v602
    %v604 = vpop.f32.mrb[0].mxu0
    %v605 = vadd.f32 %v469, %v604
    %606 = vdwg.mxu0
    %v607 = vmax.f32 %v536, 0.0
    %v608 = vmax.f32 %v538, 0.0
    %v609 = vmax.f32 %v589, 0.0
    %v610 = vmax.f32 %v591, 0.0
    %v611 = vmax.f32 %v540, 0.0
    %v612 = vmax.f32 %v542, 0.0
    %v613 = vmax.f32 %v593, 0.0
    %v614 = vmax.f32 %v595, 0.0
    %v615 = vmax.f32 %v546, 0.0
    %v616 = vmax.f32 %v548, 0.0
    %v617 = vmax.f32 %v599, 0.0
    %v618 = vmax.f32 %v601, 0.0
    %v619 = vmax.f32 %v550, 0.0
    %v620 = vmax.f32 %v552, 0.0
    %v621 = vmax.f32 %v603, 0.0
    %v622 = vmax.f32 %v605, 0.0
    %v623 = vpack.c.bf16 %v611, %v607
    %v624 = vpack.c.bf16 %v612, %v608
    %v625 = vpack.c.bf16 %v613, %v609
    %v626 = vpack.c.bf16 %v614, %v610
    %v627 = vpack.c.bf16 %v619, %v615
    %v628 = vpack.c.bf16 %v620, %v616
    %v629 = vpack.c.bf16 %v621, %v617
    %v630 = vpack.c.bf16 %v622, %v618
    %631 = vst [vmem:[#allocation2] sm:$0xff] %v623
    %632 = vst [vmem:[#allocation2 + $0x8] sm:$0xff] %v624
    %633 = vst [vmem:[#allocation2 + $0x10] sm:$0xff] %v625
    %vm634 = vcmask 801792
    %635 = vst.msk [vmem:[#allocation2 + $0x18] sm:$0xff] %vm634, %v626
    %636 = vst [vmem:[#allocation2 + $0x28] sm:$0xff] %v627
    %637 = vst [vmem:[#allocation2 + $0x30] sm:$0xff] %v628
    %638 = vst [vmem:[#allocation2 + $0x38] sm:$0xff] %v629
    %639 = vst.msk [vmem:[#allocation2 + $0x40] sm:$0xff] %vm634, %v630
    %vm640 = vcmask 1048336
    %641 = vst.msk [vmem:[#allocation2 + $0x18] sm:$0xff] %vm640, 0
    %vm642 = vcmask 31744
    %643 = vst.msk [vmem:[#allocation2 + $0x20] sm:$0xff] %vm642, 0
    %644 = vst.msk [vmem:[#allocation2 + $0x40] sm:$0xff] %vm640, 0
    %645 = vst.msk [vmem:[#allocation2 + $0x48] sm:$0xff] %vm642, 0
    %v646 = vld [vmem:[#allocation2] sm:$0xff]
    %v647 = vld [vmem:[#allocation2 + $0x8] sm:$0xff]
    %v648 = vld [vmem:[#allocation2 + $0x10] sm:$0xff]
    %v649 = vld [vmem:[#allocation2 + $0x18] sm:$0xff]
    %v650 = vld [vmem:[#allocation2 + $0x28] sm:$0xff]
    %v651 = vld [vmem:[#allocation2 + $0x30] sm:$0xff]
    %v652 = vld [vmem:[#allocation2 + $0x38] sm:$0xff]
    %v653 = vld [vmem:[#allocation2 + $0x40] sm:$0xff]
    %654 = vst [vmem:[#allocation5] sm:$0xff] %v646
    %655 = vst [vmem:[#allocation5 + $0x8] sm:$0xff] %v647
    %656 = vst [vmem:[#allocation5 + $0x10] sm:$0xff] %v648
    %vm657 = vcmask 539648
    %658 = vst.msk [vmem:[#allocation5 + $0x18] sm:$0xff] %vm657, %v649
    %659 = vst [vmem:[#allocation5 + $0x28] sm:$0xff] %v650
    %660 = vst [vmem:[#allocation5 + $0x30] sm:$0xff] %v651
    %661 = vst [vmem:[#allocation5 + $0x38] sm:$0xff] %v652
    %662 = vst.msk [vmem:[#allocation5 + $0x40] sm:$0xff] %vm657, %v653
    %v663 = vld [vmem:[#allocation2] sm:$0xff]
    %v664 = vld [vmem:[#allocation2 + $0x8] sm:$0xff]
    %v665 = vld [vmem:[#allocation2 + $0x10] sm:$0xff]
    %v666 = vld [vmem:[#allocation2 + $0x18] sm:$0xff]
    %v667 = vld [vmem:[#allocation2 + $0x28] sm:$0xff]
    %v668 = vld [vmem:[#allocation2 + $0x30] sm:$0xff]
    %v669 = vld [vmem:[#allocation2 + $0x38] sm:$0xff]
    %v670 = vld [vmem:[#allocation2 + $0x40] sm:$0xff]
    %679 = vrot.lane.b32.xlu0 %v663, 127
    %v680 = vpop.permute.xlu0 %679
    %681 = vrot.lane.b32.xlu0 %v664, 127
    %v682 = vpop.permute.xlu0 %681
    %683 = vrot.lane.b32.xlu0 %v665, 127
    %v684 = vpop.permute.xlu0 %683
    %685 = vrot.lane.b32.xlu0 %v666, 127
    %v686 = vpop.permute.xlu0 %685
    %687 = vrot.lane.b32.xlu0 %v667, 127
    %v688 = vpop.permute.xlu0 %687
    %689 = vrot.lane.b32.xlu0 %v668, 127
    %v690 = vpop.permute.xlu0 %689
    %691 = vrot.lane.b32.xlu0 %v669, 127
    %v692 = vpop.permute.xlu0 %691
    %693 = vrot.lane.b32.xlu0 %v670, 127
    %v694 = vpop.permute.xlu0 %693
    %v695 = vsel %vm104, %v680, %v682
    %v696 = vsel %vm104, %v682, %v684
    %v697 = vsel %vm104, %v684, %v686
    %v698 = vsel %vm104, %v688, %v690
    %v699 = vsel %vm104, %v690, %v692
    %v700 = vsel %vm104, %v692, %v694
    %709 = vst [vmem:[#allocation5 + $0x50] sm:$0xff] %v695
    %710 = vst [vmem:[#allocation5 + $0x58] sm:$0xff] %v696
    %711 = vst [vmem:[#allocation5 + $0x60] sm:$0xff] %v697
    %712 = vst.msk [vmem:[#allocation5 + $0x68] sm:$0xff] %vm657, %v686
    %713 = vst [vmem:[#allocation5 + $0x78] sm:$0xff] %v698
    %714 = vst [vmem:[#allocation5 + $0x80] sm:$0xff] %v699
    %715 = vst [vmem:[#allocation5 + $0x88] sm:$0xff] %v700
    %716 = vst.msk [vmem:[#allocation5 + $0x90] sm:$0xff] %vm657, %v694
    %v717 = vld [vmem:[#allocation2] sm:$0xff]
    %v718 = vld [vmem:[#allocation2 + $0x8] sm:$0xff]
    %v719 = vld [vmem:[#allocation2 + $0x10] sm:$0xff]
    %v720 = vld [vmem:[#allocation2 + $0x18] sm:$0xff]
    %v721 = vld [vmem:[#allocation2 + $0x28] sm:$0xff]
    %v722 = vld [vmem:[#allocation2 + $0x30] sm:$0xff]
    %v723 = vld [vmem:[#allocation2 + $0x38] sm:$0xff]
    %v724 = vld [vmem:[#allocation2 + $0x40] sm:$0xff]
    %733 = vrot.lane.b32.xlu0 %v717, 126
    %v734 = vpop.permute.xlu0 %733
    %735 = vrot.lane.b32.xlu0 %v718, 126
    %v736 = vpop.permute.xlu0 %735
    %737 = vrot.lane.b32.xlu0 %v719, 126
    %v738 = vpop.permute.xlu0 %737
    %739 = vrot.lane.b32.xlu0 %v720, 126
    %v740 = vpop.permute.xlu0 %739
    %741 = vrot.lane.b32.xlu0 %v721, 126
    %v742 = vpop.permute.xlu0 %741
    %743 = vrot.lane.b32.xlu0 %v722, 126
    %v744 = vpop.permute.xlu0 %743
    %745 = vrot.lane.b32.xlu0 %v723, 126
    %v746 = vpop.permute.xlu0 %745
    %747 = vrot.lane.b32.xlu0 %v724, 126
    %v748 = vpop.permute.xlu0 %747
    %v749 = vsel %vm144, %v734, %v736
    %v750 = vsel %vm144, %v736, %v738
    %v751 = vsel %vm144, %v738, %v740
    %v752 = vsel %vm144, %v742, %v744
    %v753 = vsel %vm144, %v744, %v746
    %v754 = vsel %vm144, %v746, %v748
    %763 = vst [vmem:[#allocation5 + $0xa0] sm:$0xff] %v749
    %764 = vst [vmem:[#allocation5 + $0xa8] sm:$0xff] %v750
    %765 = vst [vmem:[#allocation5 + $0xb0] sm:$0xff] %v751
    %766 = vst.msk [vmem:[#allocation5 + $0xb8] sm:$0xff] %vm657, %v740
    %767 = vst [vmem:[#allocation5 + $0xc8] sm:$0xff] %v752
    %768 = vst [vmem:[#allocation5 + $0xd0] sm:$0xff] %v753
    %769 = vst [vmem:[#allocation5 + $0xd8] sm:$0xff] %v754
    %770 = vst.msk [vmem:[#allocation5 + $0xe0] sm:$0xff] %vm657, %v748
    %v771 = vld [vmem:[#allocation2] sm:$0xff]
    %v772 = vld [vmem:[#allocation2 + $0x8] sm:$0xff]
    %v773 = vld [vmem:[#allocation2 + $0x10] sm:$0xff]
    %v774 = vld [vmem:[#allocation2 + $0x18] sm:$0xff]
    %v775 = vld [vmem:[#allocation2 + $0x28] sm:$0xff]
    %v776 = vld [vmem:[#allocation2 + $0x30] sm:$0xff]
    %v777 = vld [vmem:[#allocation2 + $0x38] sm:$0xff]
    %v778 = vld [vmem:[#allocation2 + $0x40] sm:$0xff]
    %787 = vrot.lane.b32.xlu0 %v771, 112
    %v788 = vpop.permute.xlu0 %787
    %789 = vrot.lane.b32.xlu0 %v772, 112
    %v790 = vpop.permute.xlu0 %789
    %791 = vrot.lane.b32.xlu0 %v773, 112
    %v792 = vpop.permute.xlu0 %791
    %793 = vrot.lane.b32.xlu0 %v774, 112
    %v794 = vpop.permute.xlu0 %793
    %795 = vrot.lane.b32.xlu0 %v775, 112
    %v796 = vpop.permute.xlu0 %795
    %797 = vrot.lane.b32.xlu0 %v776, 112
    %v798 = vpop.permute.xlu0 %797
    %799 = vrot.lane.b32.xlu0 %v777, 112
    %v800 = vpop.permute.xlu0 %799
    %801 = vrot.lane.b32.xlu0 %v778, 112
    %v802 = vpop.permute.xlu0 %801
    %v803 = vsel %vm184, %v788, %v790
    %v804 = vsel %vm184, %v790, %v792
    %v805 = vsel %vm184, %v792, %v794
    %v806 = vsel %vm184, %v796, %v798
    %v807 = vsel %vm184, %v798, %v800
    %v808 = vsel %vm184, %v800, %v802
    %817 = vst [vmem:[#allocation5 + $0xf0] sm:$0xff] %v803
    %818 = vst [vmem:[#allocation5 + $0xf8] sm:$0xff] %v804
    %819 = vst [vmem:[#allocation5 + $0x100] sm:$0xff] %v805
    %820 = vst.msk [vmem:[#allocation5 + $0x108] sm:$0xff] %vm657, %v794
    %821 = vst [vmem:[#allocation5 + $0x118] sm:$0xff] %v806
    %822 = vst [vmem:[#allocation5 + $0x120] sm:$0xff] %v807
    %823 = vst [vmem:[#allocation5 + $0x128] sm:$0xff] %v808
    %824 = vst.msk [vmem:[#allocation5 + $0x130] sm:$0xff] %vm657, %v802
    %v825 = vld [vmem:[#allocation2] sm:$0xff]
    %v826 = vld [vmem:[#allocation2 + $0x8] sm:$0xff]
    %v827 = vld [vmem:[#allocation2 + $0x10] sm:$0xff]
    %v828 = vld [vmem:[#allocation2 + $0x18] sm:$0xff]
    %v829 = vld [vmem:[#allocation2 + $0x28] sm:$0xff]
    %v830 = vld [vmem:[#allocation2 + $0x30] sm:$0xff]
    %v831 = vld [vmem:[#allocation2 + $0x38] sm:$0xff]
    %v832 = vld [vmem:[#allocation2 + $0x40] sm:$0xff]
    %841 = vrot.lane.b32.xlu0 %v825, 111
    %v842 = vpop.permute.xlu0 %841
    %843 = vrot.lane.b32.xlu0 %v826, 111
    %v844 = vpop.permute.xlu0 %843
    %845 = vrot.lane.b32.xlu0 %v827, 111
    %v846 = vpop.permute.xlu0 %845
    %847 = vrot.lane.b32.xlu0 %v828, 111
    %v848 = vpop.permute.xlu0 %847
    %849 = vrot.lane.b32.xlu0 %v829, 111
    %v850 = vpop.permute.xlu0 %849
    %851 = vrot.lane.b32.xlu0 %v830, 111
    %v852 = vpop.permute.xlu0 %851
    %853 = vrot.lane.b32.xlu0 %v831, 111
    %v854 = vpop.permute.xlu0 %853
    %855 = vrot.lane.b32.xlu0 %v832, 111
    %v856 = vpop.permute.xlu0 %855
    %v857 = vsel %vm224, %v842, %v844
    %v858 = vsel %vm224, %v844, %v846
    %v859 = vsel %vm224, %v846, %v848
    %v860 = vsel %vm224, %v850, %v852
    %v861 = vsel %vm224, %v852, %v854
    %v862 = vsel %vm224, %v854, %v856
    %871 = vst [vmem:[#allocation5 + $0x140] sm:$0xff] %v857
    %872 = vst [vmem:[#allocation5 + $0x148] sm:$0xff] %v858
    %873 = vst [vmem:[#allocation5 + $0x150] sm:$0xff] %v859
    %874 = vst.msk [vmem:[#allocation5 + $0x158] sm:$0xff] %vm657, %v848
    %875 = vst [vmem:[#allocation5 + $0x168] sm:$0xff] %v860
    %876 = vst [vmem:[#allocation5 + $0x170] sm:$0xff] %v861
    %877 = vst [vmem:[#allocation5 + $0x178] sm:$0xff] %v862
    %878 = vst.msk [vmem:[#allocation5 + $0x180] sm:$0xff] %vm657, %v856
    %v879 = vld [vmem:[#allocation2] sm:$0xff]
    %v880 = vld [vmem:[#allocation2 + $0x8] sm:$0xff]
    %v881 = vld [vmem:[#allocation2 + $0x10] sm:$0xff]
    %v882 = vld [vmem:[#allocation2 + $0x18] sm:$0xff]
    %v883 = vld [vmem:[#allocation2 + $0x28] sm:$0xff]
    %v884 = vld [vmem:[#allocation2 + $0x30] sm:$0xff]
    %v885 = vld [vmem:[#allocation2 + $0x38] sm:$0xff]
    %v886 = vld [vmem:[#allocation2 + $0x40] sm:$0xff]
    %895 = vrot.lane.b32.xlu0 %v879, 110
    %v896 = vpop.permute.xlu0 %895
    %897 = vrot.lane.b32.xlu0 %v880, 110
    %v898 = vpop.permute.xlu0 %897
    %899 = vrot.lane.b32.xlu0 %v881, 110
    %v900 = vpop.permute.xlu0 %899
    %901 = vrot.lane.b32.xlu0 %v882, 110
    %v902 = vpop.permute.xlu0 %901
    %903 = vrot.lane.b32.xlu0 %v883, 110
    %v904 = vpop.permute.xlu0 %903
    %905 = vrot.lane.b32.xlu0 %v884, 110
    %v906 = vpop.permute.xlu0 %905
    %907 = vrot.lane.b32.xlu0 %v885, 110
    %v908 = vpop.permute.xlu0 %907
    %909 = vrot.lane.b32.xlu0 %v886, 110
    %v910 = vpop.permute.xlu0 %909
    %v911 = vsel %vm263, %v896, %v898
    %v912 = vsel %vm263, %v898, %v900
    %v913 = vsel %vm263, %v900, %v902
    %v914 = vsel %vm263, %v904, %v906
    %v915 = vsel %vm263, %v906, %v908
    %v916 = vsel %vm263, %v908, %v910
    %925 = vst [vmem:[#allocation5 + $0x190] sm:$0xff] %v911
    %926 = vst [vmem:[#allocation5 + $0x198] sm:$0xff] %v912
    %927 = vst [vmem:[#allocation5 + $0x1a0] sm:$0xff] %v913
    %928 = vst.msk [vmem:[#allocation5 + $0x1a8] sm:$0xff] %vm657, %v902
    %929 = vst [vmem:[#allocation5 + $0x1b8] sm:$0xff] %v914
    %930 = vst [vmem:[#allocation5 + $0x1c0] sm:$0xff] %v915
    %931 = vst [vmem:[#allocation5 + $0x1c8] sm:$0xff] %v916
    %932 = vst.msk [vmem:[#allocation5 + $0x1d0] sm:$0xff] %vm657, %v910
    %v933 = vld [vmem:[#allocation2] sm:$0xff]
    %v934 = vld [vmem:[#allocation2 + $0x8] sm:$0xff]
    %v935 = vld [vmem:[#allocation2 + $0x10] sm:$0xff]
    %v936 = vld [vmem:[#allocation2 + $0x18] sm:$0xff]
    %v937 = vld [vmem:[#allocation2 + $0x28] sm:$0xff]
    %v938 = vld [vmem:[#allocation2 + $0x30] sm:$0xff]
    %v939 = vld [vmem:[#allocation2 + $0x38] sm:$0xff]
    %v940 = vld [vmem:[#allocation2 + $0x40] sm:$0xff]
    %949 = vrot.lane.b32.xlu0 %v933, 96
    %v950 = vpop.permute.xlu0 %949
    %951 = vrot.lane.b32.xlu0 %v934, 96
    %v952 = vpop.permute.xlu0 %951
    %953 = vrot.lane.b32.xlu0 %v935, 96
    %v954 = vpop.permute.xlu0 %953
    %955 = vrot.lane.b32.xlu0 %v936, 96
    %v956 = vpop.permute.xlu0 %955
    %957 = vrot.lane.b32.xlu0 %v937, 96
    %v958 = vpop.permute.xlu0 %957
    %959 = vrot.lane.b32.xlu0 %v938, 96
    %v960 = vpop.permute.xlu0 %959
    %961 = vrot.lane.b32.xlu0 %v939, 96
    %v962 = vpop.permute.xlu0 %961
    %963 = vrot.lane.b32.xlu0 %v940, 96
    %v964 = vpop.permute.xlu0 %963
    %v965 = vsel %vm314, %v950, %v952
    %v966 = vsel %vm314, %v952, %v954
    %v967 = vsel %vm314, %v954, %v956
    %v968 = vsel %vm314, %v958, %v960
    %v969 = vsel %vm314, %v960, %v962
    %v970 = vsel %vm314, %v962, %v964
    %979 = vst [vmem:[#allocation5 + $0x1e0] sm:$0xff] %v965
    %980 = vst [vmem:[#allocation5 + $0x1e8] sm:$0xff] %v966
    %981 = vst [vmem:[#allocation5 + $0x1f0] sm:$0xff] %v967
    %982 = vst.msk [vmem:[#allocation5 + $0x1f8] sm:$0xff] %vm657, %v956
    %983 = vst [vmem:[#allocation5 + $0x208] sm:$0xff] %v968
    %984 = vst [vmem:[#allocation5 + $0x210] sm:$0xff] %v969
    %985 = vst [vmem:[#allocation5 + $0x218] sm:$0xff] %v970
    %986 = vst.msk [vmem:[#allocation5 + $0x220] sm:$0xff] %vm657, %v964
    %v987 = vld [vmem:[#allocation2] sm:$0xff]
    %v988 = vld [vmem:[#allocation2 + $0x8] sm:$0xff]
    %v989 = vld [vmem:[#allocation2 + $0x10] sm:$0xff]
    %v990 = vld [vmem:[#allocation2 + $0x18] sm:$0xff]
    %v991 = vld [vmem:[#allocation2 + $0x28] sm:$0xff]
    %v992 = vld [vmem:[#allocation2 + $0x30] sm:$0xff]
    %v993 = vld [vmem:[#allocation2 + $0x38] sm:$0xff]
    %v994 = vld [vmem:[#allocation2 + $0x40] sm:$0xff]
    %1003 = vrot.lane.b32.xlu0 %v987, 95
    %v1004 = vpop.permute.xlu0 %1003
    %1005 = vrot.lane.b32.xlu0 %v988, 95
    %v1006 = vpop.permute.xlu0 %1005
    %1007 = vrot.lane.b32.xlu0 %v989, 95
    %v1008 = vpop.permute.xlu0 %1007
    %1009 = vrot.lane.b32.xlu0 %v990, 95
    %v1010 = vpop.permute.xlu0 %1009
    %1011 = vrot.lane.b32.xlu0 %v991, 95
    %v1012 = vpop.permute.xlu0 %1011
    %1013 = vrot.lane.b32.xlu0 %v992, 95
    %v1014 = vpop.permute.xlu0 %1013
    %1015 = vrot.lane.b32.xlu0 %v993, 95
    %v1016 = vpop.permute.xlu0 %1015
    %1017 = vrot.lane.b32.xlu0 %v994, 95
    %v1018 = vpop.permute.xlu0 %1017
    %v1019 = vsel %vm367, %v1004, %v1006
    %v1020 = vsel %vm367, %v1006, %v1008
    %v1021 = vsel %vm367, %v1008, %v1010
    %v1022 = vsel %vm367, %v1012, %v1014
    %v1023 = vsel %vm367, %v1014, %v1016
    %v1024 = vsel %vm367, %v1016, %v1018
    %1033 = vst [vmem:[#allocation5 + $0x230] sm:$0xff] %v1019
    %1034 = vst [vmem:[#allocation5 + $0x238] sm:$0xff] %v1020
    %1035 = vst [vmem:[#allocation5 + $0x240] sm:$0xff] %v1021
    %1036 = vst.msk [vmem:[#allocation5 + $0x248] sm:$0xff] %vm657, %v1010
    %1037 = vst [vmem:[#allocation5 + $0x258] sm:$0xff] %v1022
    %1038 = vst [vmem:[#allocation5 + $0x260] sm:$0xff] %v1023
    %1039 = vst [vmem:[#allocation5 + $0x268] sm:$0xff] %v1024
    %1040 = vst.msk [vmem:[#allocation5 + $0x270] sm:$0xff] %vm657, %v1018
    %v1041 = vld [vmem:[#allocation2] sm:$0xff]
    %v1042 = vld [vmem:[#allocation2 + $0x8] sm:$0xff]
    %v1043 = vld [vmem:[#allocation2 + $0x10] sm:$0xff]
    %v1044 = vld [vmem:[#allocation2 + $0x18] sm:$0xff]
    %v1045 = vld [vmem:[#allocation2 + $0x28] sm:$0xff]
    %v1046 = vld [vmem:[#allocation2 + $0x30] sm:$0xff]
    %v1047 = vld [vmem:[#allocation2 + $0x38] sm:$0xff]
    %v1048 = vld [vmem:[#allocation2 + $0x40] sm:$0xff]
    %1057 = vrot.lane.b32.xlu0 %v1041, 94
    %v1058 = vpop.permute.xlu0 %1057
    %1059 = vrot.lane.b32.xlu0 %v1042, 94
    %v1060 = vpop.permute.xlu0 %1059
    %1061 = vrot.lane.b32.xlu0 %v1043, 94
    %v1062 = vpop.permute.xlu0 %1061
    %1063 = vrot.lane.b32.xlu0 %v1044, 94
    %v1064 = vpop.permute.xlu0 %1063
    %1065 = vrot.lane.b32.xlu0 %v1045, 94
    %v1066 = vpop.permute.xlu0 %1065
    %1067 = vrot.lane.b32.xlu0 %v1046, 94
    %v1068 = vpop.permute.xlu0 %1067
    %1069 = vrot.lane.b32.xlu0 %v1047, 94
    %v1070 = vpop.permute.xlu0 %1069
    %1071 = vrot.lane.b32.xlu0 %v1048, 94
    %v1072 = vpop.permute.xlu0 %1071
    %v1073 = vsel %vm418, %v1058, %v1060
    %v1074 = vsel %vm418, %v1060, %v1062
    %v1075 = vsel %vm418, %v1062, %v1064
    %v1076 = vsel %vm418, %v1066, %v1068
    %v1077 = vsel %vm418, %v1068, %v1070
    %v1078 = vsel %vm418, %v1070, %v1072
    %1087 = vst [vmem:[#allocation5 + $0x280] sm:$0xff] %v1073
    %1088 = vst [vmem:[#allocation5 + $0x288] sm:$0xff] %v1074
    %1089 = vst [vmem:[#allocation5 + $0x290] sm:$0xff] %v1075
    %1090 = vst.msk [vmem:[#allocation5 + $0x298] sm:$0xff] %vm657, %v1064
    %1091 = vst [vmem:[#allocation5 + $0x2a8] sm:$0xff] %v1076
    %1092 = vst [vmem:[#allocation5 + $0x2b0] sm:$0xff] %v1077
    %1093 = vst [vmem:[#allocation5 + $0x2b8] sm:$0xff] %v1078
    %1094 = vst.msk [vmem:[#allocation5 + $0x2c0] sm:$0xff] %vm657, %v1072
    %v1095 = vld [vmem:[%s3] sm:$0xff]
    %v1096 = vld [vmem:[%s3 + $0x8] sm:$0xf]
    %v1097 = vld [vmem:[%s3 + $0xc] sm:$0xff]
    %v1098 = vld [vmem:[%s3 + $0x14] sm:$0xf]
    %v1099 = vld [vmem:[#allocation5] sm:$0xff]
    %v1100 = vld [vmem:[#allocation5 + $0x8] sm:$0xff]
    %v1101 = vld [vmem:[#allocation5 + $0x10] sm:$0xff]
    %v1102 = vld [vmem:[#allocation5 + $0x18] sm:$0xff]
    %v1103 = vld [vmem:[#allocation5 + $0x28] sm:$0xff]
    %v1104 = vld [vmem:[#allocation5 + $0x30] sm:$0xff]
    %v1105 = vld [vmem:[#allocation5 + $0x38] sm:$0xff]
    %v1106 = vld [vmem:[#allocation5 + $0x40] sm:$0xff]
    %v1107 = vld [vmem:[#allocation5 + $0x50] sm:$0xff]
    %v1108 = vld [vmem:[#allocation5 + $0x58] sm:$0xff]
    %v1109 = vld [vmem:[#allocation5 + $0x60] sm:$0xff]
    %v1110 = vld [vmem:[#allocation5 + $0x68] sm:$0xff]
    %v1111 = vld [vmem:[#allocation5 + $0x78] sm:$0xff]
    %v1112 = vld [vmem:[#allocation5 + $0x80] sm:$0xff]
    %v1113 = vld [vmem:[#allocation5 + $0x88] sm:$0xff]
    %v1114 = vld [vmem:[#allocation5 + $0x90] sm:$0xff]
    %v1115 = vld [vmem:[#allocation5 + $0xa0] sm:$0xff]
    %v1116 = vld [vmem:[#allocation5 + $0xa8] sm:$0xff]
    %v1117 = vld [vmem:[#allocation5 + $0xb0] sm:$0xff]
    %v1118 = vld [vmem:[#allocation5 + $0xb8] sm:$0xff]
    %v1119 = vld [vmem:[#allocation5 + $0xc8] sm:$0xff]
    %v1120 = vld [vmem:[#allocation5 + $0xd0] sm:$0xff]
    %v1121 = vld [vmem:[#allocation5 + $0xd8] sm:$0xff]
    %v1122 = vld [vmem:[#allocation5 + $0xe0] sm:$0xff]
    %v1123 = vld [vmem:[#allocation5 + $0xf0] sm:$0xff]
    %v1124 = vld [vmem:[#allocation5 + $0xf8] sm:$0xff]
    %v1125 = vld [vmem:[#allocation5 + $0x100] sm:$0xff]
    %v1126 = vld [vmem:[#allocation5 + $0x108] sm:$0xff]
    %v1127 = vld [vmem:[#allocation5 + $0x118] sm:$0xff]
    %v1128 = vld [vmem:[#allocation5 + $0x120] sm:$0xff]
    %v1129 = vld [vmem:[#allocation5 + $0x128] sm:$0xff]
    %v1130 = vld [vmem:[#allocation5 + $0x130] sm:$0xff]
    %v1131 = vld [vmem:[#allocation5 + $0x140] sm:$0xff]
    %v1132 = vld [vmem:[#allocation5 + $0x148] sm:$0xff]
    %v1133 = vld [vmem:[#allocation5 + $0x150] sm:$0xff]
    %v1134 = vld [vmem:[#allocation5 + $0x158] sm:$0xff]
    %v1135 = vld [vmem:[#allocation5 + $0x168] sm:$0xff]
    %v1136 = vld [vmem:[#allocation5 + $0x170] sm:$0xff]
    %v1137 = vld [vmem:[#allocation5 + $0x178] sm:$0xff]
    %v1138 = vld [vmem:[#allocation5 + $0x180] sm:$0xff]
    %v1139 = vld [vmem:[#allocation5 + $0x190] sm:$0xff]
    %v1140 = vld [vmem:[#allocation5 + $0x198] sm:$0xff]
    %v1141 = vld [vmem:[#allocation5 + $0x1a0] sm:$0xff]
    %v1142 = vld [vmem:[#allocation5 + $0x1a8] sm:$0xff]
    %v1143 = vld [vmem:[#allocation5 + $0x1b8] sm:$0xff]
    %v1144 = vld [vmem:[#allocation5 + $0x1c0] sm:$0xff]
    %v1145 = vld [vmem:[#allocation5 + $0x1c8] sm:$0xff]
    %v1146 = vld [vmem:[#allocation5 + $0x1d0] sm:$0xff]
    %v1147 = vld [vmem:[#allocation5 + $0x1e0] sm:$0xff]
    %v1148 = vld [vmem:[#allocation5 + $0x1e8] sm:$0xff]
    %v1149 = vld [vmem:[#allocation5 + $0x1f0] sm:$0xff]
    %v1150 = vld [vmem:[#allocation5 + $0x1f8] sm:$0xff]
    %v1151 = vld [vmem:[#allocation5 + $0x208] sm:$0xff]
    %v1152 = vld [vmem:[#allocation5 + $0x210] sm:$0xff]
    %v1153 = vld [vmem:[#allocation5 + $0x218] sm:$0xff]
    %v1154 = vld [vmem:[#allocation5 + $0x220] sm:$0xff]
    %v1155 = vld [vmem:[#allocation5 + $0x230] sm:$0xff]
    %v1156 = vld [vmem:[#allocation5 + $0x238] sm:$0xff]
    %v1157 = vld [vmem:[#allocation5 + $0x240] sm:$0xff]
    %v1158 = vld [vmem:[#allocation5 + $0x248] sm:$0xff]
    %v1159 = vld [vmem:[#allocation5 + $0x258] sm:$0xff]
    %v1160 = vld [vmem:[#allocation5 + $0x260] sm:$0xff]
    %v1161 = vld [vmem:[#allocation5 + $0x268] sm:$0xff]
    %v1162 = vld [vmem:[#allocation5 + $0x270] sm:$0xff]
    %v1163 = vld [vmem:[#allocation5 + $0x280] sm:$0xff]
    %v1164 = vld [vmem:[#allocation5 + $0x288] sm:$0xff]
    %v1165 = vld [vmem:[#allocation5 + $0x290] sm:$0xff]
    %v1166 = vld [vmem:[#allocation5 + $0x298] sm:$0xff]
    %v1167 = vld [vmem:[#allocation5 + $0x2a8] sm:$0xff]
    %v1168 = vld [vmem:[#allocation5 + $0x2b0] sm:$0xff]
    %v1169 = vld [vmem:[#allocation5 + $0x2b8] sm:$0xff]
    %v1170 = vld [vmem:[#allocation5 + $0x2c0] sm:$0xff]
    %v1171 = vld [vmem:[%s4] sm:$0xff]
    %v1172 = vld [vmem:[%s4 + $0x8] sm:$0xff]
    %1174 = vset.pattern.permute.xlu0 0
    %1175 = vperm.xlu0 %1174, %v1171
    %v1176 = vpop.permute.xlu0 %1175
    %1179 = vset.pattern.permute.xlu0 0
    %1180 = vperm.xlu0 %1179, %v1172
    %v1181 = vpop.permute.xlu0 %1180
    %v1187 = vunpack.c.l.b16 %v1095
    %v1188 = vunpack.c.h.b16 %v1095
    %v1189 = vunpack.c.l.b16 %v1096
    %v1190 = vunpack.c.l.b16 %v1097
    %v1191 = vunpack.c.h.b16 %v1097
    %v1192 = vunpack.c.l.b16 %v1098
    %v1193 = vpack.c.b16 %v1190, %v1187
    %v1194 = vpack.c.b16 %v1191, %v1188
    %v1195 = vpack.c.b16 %v1192, %v1189
    %vm1198 = vcmask 261120
    %v1200 = vsel %vm1198, %v1195, 0
    %1202 = vmatprep.subr.bf16.mxu0 %v1100
    %1203 = vmatpush1.bf16.msra.mxu0 %v1099
    %1204 = vmatprep.subr.bf16.mxu0 %v1104
    %1205 = vmatpush1.bf16.msra.mxu0 %v1103
    %1206 = vmatprep.subr.bf16.mxu0 %v1108
    %1207 = vmatpush1.bf16.msra.mxu0 %v1107
    %1208 = vmatprep.subr.bf16.mxu0 %v1112
    %1209 = vmatpush1.bf16.msra.mxu0 %v1111
    %1210 = vmatprep.subr.bf16.mxu0 %v1116
    %1211 = vmatpush1.bf16.msra.mxu0 %v1115
    %1212 = vmatprep.subr.bf16.mxu0 %v1120
    %1213 = vmatpush1.bf16.msra.mxu0 %v1119
    %1214 = vmatprep.subr.bf16.mxu0 %v1124
    %1215 = vmatpush1.bf16.msra.mxu0 %v1123
    %1216 = vmatprep.subr.bf16.mxu0 %v1128
    %1217 = vmatpush1.bf16.msra.mxu0 %v1127
    %1218 = vmatprep.subr.bf16.mxu0 %v1132
    %1219 = vmatpush1.bf16.msra.mxu0 %v1131
    %1220 = vmatprep.subr.bf16.mxu0 %v1136
    %1221 = vmatpush1.bf16.msra.mxu0 %v1135
    %1222 = vmatprep.subr.bf16.mxu0 %v1140
    %1223 = vmatpush1.bf16.msra.mxu0 %v1139
    %1224 = vmatprep.subr.bf16.mxu0 %v1144
    %1225 = vmatpush1.bf16.msra.mxu0 %v1143
    %1226 = vmatprep.subr.bf16.mxu0 %v1148
    %1227 = vmatpush1.bf16.msra.mxu0 %v1147
    %1228 = vmatprep.subr.bf16.mxu0 %v1152
    %1229 = vmatpush1.bf16.msra.mxu0 %v1151
    %1230 = vmatprep.subr.bf16.mxu0 %v1156
    %1231 = vmatpush1.bf16.msra.mxu0 %v1155
    %1232 = vmatprep.subr.bf16.mxu0 %v1160
    %1233 = vmatpush1.bf16.msra.mxu0 %v1159
    %1234 = vmatprep.mubr.bf16.mxu0 %v1194
    %1235 = vmatmul.mubr.bf16.gmra.mrb[0].mxu0 %v1193
    %v1236 = vpop.f32.mrb[0].mxu0
    %v1237 = vadd.f32 %v1176, %v1236
    %v1238 = vpop.f32.mrb[0].mxu0
    %v1239 = vadd.f32 %v1176, %v1238
    %v1240 = vpop.f32.mrb[0].mxu0
    %v1241 = vadd.f32 %v1181, %v1240
    %v1242 = vpop.f32.mrb[0].mxu0
    %v1243 = vadd.f32 %v1181, %v1242
    %1244 = vdwg.mxu0
    %1245 = vmatprep.subr.bf16.mxu0 %v1164
    %1246 = vmatpush1.bf16.msra.mxu0 %v1163
    %1247 = vmatprep.subr.bf16.mxu0 %v1168
    %1248 = vmatpush1.bf16.msra.mxu0 %v1167
    %1249 = vmatprep.subr.bf16.mxu0 0
    %1250 = vmatpush1.bf16.msra.mxu0 0
    %1251 = vmatprep.subr.bf16.mxu0 0
    %1252 = vmatpush1.bf16.msra.mxu0 0
    %1253 = vmatprep.subr.bf16.mxu0 0
    %1254 = vmatpush1.bf16.msra.mxu0 0
    %1255 = vmatprep.subr.bf16.mxu0 0
    %1256 = vmatpush1.bf16.msra.mxu0 0
    %1257 = vmatprep.subr.bf16.mxu0 0
    %1258 = vmatpush1.bf16.msra.mxu0 0
    %1259 = vmatprep.subr.bf16.mxu0 0
    %1260 = vmatpush1.bf16.msra.mxu0 0
    %1261 = vmatprep.subr.bf16.mxu0 0
    %1262 = vmatpush1.bf16.msra.mxu0 0
    %1263 = vmatprep.subr.bf16.mxu0 0
    %1264 = vmatpush1.bf16.msra.mxu0 0
    %1265 = vmatprep.subr.bf16.mxu0 0
    %1266 = vmatpush1.bf16.msra.mxu0 0
    %1267 = vmatprep.subr.bf16.mxu0 0
    %1268 = vmatpush1.bf16.msra.mxu0 0
    %1269 = vmatprep.subr.bf16.mxu0 0
    %1270 = vmatpush1.bf16.msra.mxu0 0
    %1271 = vmatprep.subr.bf16.mxu0 0
    %1272 = vmatpush1.bf16.msra.mxu0 0
    %1273 = vmatprep.subr.bf16.mxu0 0
    %1274 = vmatpush1.bf16.msra.mxu0 0
    %1275 = vmatprep.subr.bf16.mxu0 0
    %1276 = vmatpush1.bf16.msra.mxu0 0
    %1277 = vmatprep.mubr.bf16.mxu0 0
    %1278 = vmatmul.mubr.bf16.gmra.mrb[0].mxu0 %v1200
    %v1279 = vpop.f32.mrb[0].mxu0
    %v1280 = vadd.f32 %v1237, %v1279
    %v1281 = vpop.f32.mrb[0].mxu0
    %v1282 = vadd.f32 %v1239, %v1281
    %v1283 = vpop.f32.mrb[0].mxu0
    %v1284 = vadd.f32 %v1241, %v1283
    %v1285 = vpop.f32.mrb[0].mxu0
    %v1286 = vadd.f32 %v1243, %v1285
    %1287 = vdwg.mxu0
    %1288 = vmatprep.subr.bf16.mxu0 %v1102
    %1289 = vmatpush1.bf16.msra.mxu0 %v1101
    %1290 = vmatprep.subr.bf16.mxu0 %v1106
    %1291 = vmatpush1.bf16.msra.mxu0 %v1105
    %1292 = vmatprep.subr.bf16.mxu0 %v1110
    %1293 = vmatpush1.bf16.msra.mxu0 %v1109
    %1294 = vmatprep.subr.bf16.mxu0 %v1114
    %1295 = vmatpush1.bf16.msra.mxu0 %v1113
    %1296 = vmatprep.subr.bf16.mxu0 %v1118
    %1297 = vmatpush1.bf16.msra.mxu0 %v1117
    %1298 = vmatprep.subr.bf16.mxu0 %v1122
    %1299 = vmatpush1.bf16.msra.mxu0 %v1121
    %1300 = vmatprep.subr.bf16.mxu0 %v1126
    %1301 = vmatpush1.bf16.msra.mxu0 %v1125
    %1302 = vmatprep.subr.bf16.mxu0 %v1130
    %1303 = vmatpush1.bf16.msra.mxu0 %v1129
    %1304 = vmatprep.subr.bf16.mxu0 %v1134
    %1305 = vmatpush1.bf16.msra.mxu0 %v1133
    %1306 = vmatprep.subr.bf16.mxu0 %v1138
    %1307 = vmatpush1.bf16.msra.mxu0 %v1137
    %1308 = vmatprep.subr.bf16.mxu0 %v1142
    %1309 = vmatpush1.bf16.msra.mxu0 %v1141
    %1310 = vmatprep.subr.bf16.mxu0 %v1146
    %1311 = vmatpush1.bf16.msra.mxu0 %v1145
    %1312 = vmatprep.subr.bf16.mxu0 %v1150
    %1313 = vmatpush1.bf16.msra.mxu0 %v1149
    %1314 = vmatprep.subr.bf16.mxu0 %v1154
    %1315 = vmatpush1.bf16.msra.mxu0 %v1153
    %1316 = vmatprep.subr.bf16.mxu0 %v1158
    %1317 = vmatpush1.bf16.msra.mxu0 %v1157
    %1318 = vmatprep.subr.bf16.mxu0 %v1162
    %1319 = vmatpush1.bf16.msra.mxu0 %v1161
    %1320 = vmatprep.mubr.bf16.mxu0 %v1194
    %1321 = vmatmul.mubr.bf16.gmra.mrb[0].mxu0 %v1193
    %v1322 = vpop.f32.mrb[0].mxu0
    %v1323 = vadd.f32 %v1176, %v1322
    %v1324 = vpop.f32.mrb[0].mxu0
    %v1325 = vadd.f32 %v1176, %v1324
    %v1326 = vpop.f32.mrb[0].mxu0
    %v1327 = vadd.f32 %v1181, %v1326
    %v1328 = vpop.f32.mrb[0].mxu0
    %v1329 = vadd.f32 %v1181, %v1328
    %1330 = vdwg.mxu0
    %1331 = vmatprep.subr.bf16.mxu0 %v1166
    %1332 = vmatpush1.bf16.msra.mxu0 %v1165
    %1333 = vmatprep.subr.bf16.mxu0 %v1170
    %1334 = vmatpush1.bf16.msra.mxu0 %v1169
    %1335 = vmatprep.subr.bf16.mxu0 0
    %1336 = vmatpush1.bf16.msra.mxu0 0
    %1337 = vmatprep.subr.bf16.mxu0 0
    %1338 = vmatpush1.bf16.msra.mxu0 0
    %1339 = vmatprep.subr.bf16.mxu0 0
    %1340 = vmatpush1.bf16.msra.mxu0 0
    %1341 = vmatprep.subr.bf16.mxu0 0
    %1342 = vmatpush1.bf16.msra.mxu0 0
    %1343 = vmatprep.subr.bf16.mxu0 0
    %1344 = vmatpush1.bf16.msra.mxu0 0
    %1345 = vmatprep.subr.bf16.mxu0 0
    %1346 = vmatpush1.bf16.msra.mxu0 0
    %1347 = vmatprep.subr.bf16.mxu0 0
    %1348 = vmatpush1.bf16.msra.mxu0 0
    %1349 = vmatprep.subr.bf16.mxu0 0
    %1350 = vmatpush1.bf16.msra.mxu0 0
    %1351 = vmatprep.subr.bf16.mxu0 0
    %1352 = vmatpush1.bf16.msra.mxu0 0
    %1353 = vmatprep.subr.bf16.mxu0 0
    %1354 = vmatpush1.bf16.msra.mxu0 0
    %1355 = vmatprep.subr.bf16.mxu0 0
    %1356 = vmatpush1.bf16.msra.mxu0 0
    %1357 = vmatprep.subr.bf16.mxu0 0
    %1358 = vmatpush1.bf16.msra.mxu0 0
    %1359 = vmatprep.subr.bf16.mxu0 0
    %1360 = vmatpush1.bf16.msra.mxu0 0
    %1361 = vmatprep.subr.bf16.mxu0 0
    %1362 = vmatpush1.bf16.msra.mxu0 0
    %1363 = vmatprep.mubr.bf16.mxu0 0
    %1364 = vmatmul.mubr.bf16.gmra.mrb[0].mxu0 %v1200
    %v1365 = vpop.f32.mrb[0].mxu0
    %v1366 = vadd.f32 %v1323, %v1365
    %v1367 = vpop.f32.mrb[0].mxu0
    %v1368 = vadd.f32 %v1325, %v1367
    %v1369 = vpop.f32.mrb[0].mxu0
    %v1370 = vadd.f32 %v1327, %v1369
    %v1371 = vpop.f32.mrb[0].mxu0
    %v1372 = vadd.f32 %v1329, %v1371
    %1373 = vdwg.mxu0
    %v1374 = vmax.f32 %v1280, 0.0
    %v1375 = vmax.f32 %v1282, 0.0
    %v1376 = vmax.f32 %v1366, 0.0
    %v1377 = vmax.f32 %v1368, 0.0
    %v1378 = vmax.f32 %v1284, 0.0
    %v1379 = vmax.f32 %v1286, 0.0
    %v1380 = vmax.f32 %v1370, 0.0
    %v1381 = vmax.f32 %v1372, 0.0
    %v1382 = vpack.c.bf16 %v1378, %v1374
    %v1383 = vpack.c.bf16 %v1379, %v1375
    %v1384 = vpack.c.bf16 %v1380, %v1376
    %v1385 = vpack.c.bf16 %v1381, %v1377
    %1386 = vst [vmem:[#allocation3] sm:$0xff] %v1382
    %1387 = vst [vmem:[#allocation3 + $0x8] sm:$0xff] %v1383
    %1388 = vst [vmem:[#allocation3 + $0x10] sm:$0xff] %v1384
    %1389 = vst.msk [vmem:[#allocation3 + $0x18] sm:$0xff] %vm657, %v1385
    %vm1390 = vcmask 1048080
    %1391 = vst.msk [vmem:[#allocation3 + $0x18] sm:$0xff] %vm1390, 0
    %1392 = vst.msk [vmem:[#allocation3 + $0x20] sm:$0xff] %vm642, 0
    %v1393 = vld [vmem:[#allocation3] sm:$0xff]
    %v1394 = vld [vmem:[#allocation3 + $0x8] sm:$0xff]
    %v1395 = vld [vmem:[#allocation3 + $0x10] sm:$0xff]
    %v1396 = vld [vmem:[#allocation3 + $0x18] sm:$0xff]
    %1397 = vst [vmem:[#allocation5] sm:$0xff] %v1393
    %1398 = vst [vmem:[#allocation5 + $0x8] sm:$0xff] %v1394
    %1399 = vst [vmem:[#allocation5 + $0x10] sm:$0xff] %v1395
    %vm1400 = vcmask 277504
    %1401 = vst.msk [vmem:[#allocation5 + $0x18] sm:$0xff] %vm1400, %v1396
    %v1402 = vld [vmem:[#allocation3] sm:$0xff]
    %v1403 = vld [vmem:[#allocation3 + $0x8] sm:$0xff]
    %v1404 = vld [vmem:[#allocation3 + $0x10] sm:$0xff]
    %v1405 = vld [vmem:[#allocation3 + $0x18] sm:$0xff]
    %1410 = vrot.lane.b32.xlu0 %v1402, 127
    %v1411 = vpop.permute.xlu0 %1410
    %1412 = vrot.lane.b32.xlu0 %v1403, 127
    %v1413 = vpop.permute.xlu0 %1412
    %1414 = vrot.lane.b32.xlu0 %v1404, 127
    %v1415 = vpop.permute.xlu0 %1414
    %1416 = vrot.lane.b32.xlu0 %v1405, 127
    %v1417 = vpop.permute.xlu0 %1416
    %v1418 = vsel %vm104, %v1411, %v1413
    %v1419 = vsel %vm104, %v1413, %v1415
    %v1420 = vsel %vm104, %v1415, %v1417
    %1425 = vst [vmem:[#allocation5 + $0x28] sm:$0xff] %v1418
    %1426 = vst [vmem:[#allocation5 + $0x30] sm:$0xff] %v1419
    %1427 = vst [vmem:[#allocation5 + $0x38] sm:$0xff] %v1420
    %1428 = vst.msk [vmem:[#allocation5 + $0x40] sm:$0xff] %vm1400, %v1417
    %v1429 = vld [vmem:[#allocation3] sm:$0xff]
    %v1430 = vld [vmem:[#allocation3 + $0x8] sm:$0xff]
    %v1431 = vld [vmem:[#allocation3 + $0x10] sm:$0xff]
    %v1432 = vld [vmem:[#allocation3 + $0x18] sm:$0xff]
    %1437 = vrot.lane.b32.xlu0 %v1429, 126
    %v1438 = vpop.permute.xlu0 %1437
    %1439 = vrot.lane.b32.xlu0 %v1430, 126
    %v1440 = vpop.permute.xlu0 %1439
    %1441 = vrot.lane.b32.xlu0 %v1431, 126
    %v1442 = vpop.permute.xlu0 %1441
    %1443 = vrot.lane.b32.xlu0 %v1432, 126
    %v1444 = vpop.permute.xlu0 %1443
    %v1445 = vsel %vm144, %v1438, %v1440
    %v1446 = vsel %vm144, %v1440, %v1442
    %v1447 = vsel %vm144, %v1442, %v1444
    %1452 = vst [vmem:[#allocation5 + $0x50] sm:$0xff] %v1445
    %1453 = vst [vmem:[#allocation5 + $0x58] sm:$0xff] %v1446
    %1454 = vst [vmem:[#allocation5 + $0x60] sm:$0xff] %v1447
    %1455 = vst.msk [vmem:[#allocation5 + $0x68] sm:$0xff] %vm1400, %v1444
    %v1456 = vld [vmem:[#allocation3] sm:$0xff]
    %v1457 = vld [vmem:[#allocation3 + $0x8] sm:$0xff]
    %v1458 = vld [vmem:[#allocation3 + $0x10] sm:$0xff]
    %v1459 = vld [vmem:[#allocation3 + $0x18] sm:$0xff]
    %1464 = vrot.lane.b32.xlu0 %v1456, 112
    %v1465 = vpop.permute.xlu0 %1464
    %1466 = vrot.lane.b32.xlu0 %v1457, 112
    %v1467 = vpop.permute.xlu0 %1466
    %1468 = vrot.lane.b32.xlu0 %v1458, 112
    %v1469 = vpop.permute.xlu0 %1468
    %1470 = vrot.lane.b32.xlu0 %v1459, 112
    %v1471 = vpop.permute.xlu0 %1470
    %v1472 = vsel %vm184, %v1465, %v1467
    %v1473 = vsel %vm184, %v1467, %v1469
    %v1474 = vsel %vm184, %v1469, %v1471
    %1479 = vst [vmem:[#allocation5 + $0x78] sm:$0xff] %v1472
    %1480 = vst [vmem:[#allocation5 + $0x80] sm:$0xff] %v1473
    %1481 = vst [vmem:[#allocation5 + $0x88] sm:$0xff] %v1474
    %1482 = vst.msk [vmem:[#allocation5 + $0x90] sm:$0xff] %vm1400, %v1471
    %v1483 = vld [vmem:[#allocation3] sm:$0xff]
    %v1484 = vld [vmem:[#allocation3 + $0x8] sm:$0xff]
    %v1485 = vld [vmem:[#allocation3 + $0x10] sm:$0xff]
    %v1486 = vld [vmem:[#allocation3 + $0x18] sm:$0xff]
    %1491 = vrot.lane.b32.xlu0 %v1483, 111
    %v1492 = vpop.permute.xlu0 %1491
    %1493 = vrot.lane.b32.xlu0 %v1484, 111
    %v1494 = vpop.permute.xlu0 %1493
    %1495 = vrot.lane.b32.xlu0 %v1485, 111
    %v1496 = vpop.permute.xlu0 %1495
    %1497 = vrot.lane.b32.xlu0 %v1486, 111
    %v1498 = vpop.permute.xlu0 %1497
    %v1499 = vsel %vm224, %v1492, %v1494
    %v1500 = vsel %vm224, %v1494, %v1496
    %v1501 = vsel %vm224, %v1496, %v1498
    %1506 = vst [vmem:[#allocation5 + $0xa0] sm:$0xff] %v1499
    %1507 = vst [vmem:[#allocation5 + $0xa8] sm:$0xff] %v1500
    %1508 = vst [vmem:[#allocation5 + $0xb0] sm:$0xff] %v1501
    %1509 = vst.msk [vmem:[#allocation5 + $0xb8] sm:$0xff] %vm1400, %v1498
    %v1510 = vld [vmem:[#allocation3] sm:$0xff]
    %v1511 = vld [vmem:[#allocation3 + $0x8] sm:$0xff]
    %v1512 = vld [vmem:[#allocation3 + $0x10] sm:$0xff]
    %v1513 = vld [vmem:[#allocation3 + $0x18] sm:$0xff]
    %1518 = vrot.lane.b32.xlu0 %v1510, 110
    %v1519 = vpop.permute.xlu0 %1518
    %1520 = vrot.lane.b32.xlu0 %v1511, 110
    %v1521 = vpop.permute.xlu0 %1520
    %1522 = vrot.lane.b32.xlu0 %v1512, 110
    %v1523 = vpop.permute.xlu0 %1522
    %1524 = vrot.lane.b32.xlu0 %v1513, 110
    %v1525 = vpop.permute.xlu0 %1524
    %v1526 = vsel %vm263, %v1519, %v1521
    %v1527 = vsel %vm263, %v1521, %v1523
    %v1528 = vsel %vm263, %v1523, %v1525
    %1533 = vst [vmem:[#allocation5 + $0xc8] sm:$0xff] %v1526
    %1534 = vst [vmem:[#allocation5 + $0xd0] sm:$0xff] %v1527
    %1535 = vst [vmem:[#allocation5 + $0xd8] sm:$0xff] %v1528
    %1536 = vst.msk [vmem:[#allocation5 + $0xe0] sm:$0xff] %vm1400, %v1525
    %v1537 = vld [vmem:[#allocation3] sm:$0xff]
    %v1538 = vld [vmem:[#allocation3 + $0x8] sm:$0xff]
    %v1539 = vld [vmem:[#allocation3 + $0x10] sm:$0xff]
    %v1540 = vld [vmem:[#allocation3 + $0x18] sm:$0xff]
    %1545 = vrot.lane.b32.xlu0 %v1537, 96
    %v1546 = vpop.permute.xlu0 %1545
    %1547 = vrot.lane.b32.xlu0 %v1538, 96
    %v1548 = vpop.permute.xlu0 %1547
    %1549 = vrot.lane.b32.xlu0 %v1539, 96
    %v1550 = vpop.permute.xlu0 %1549
    %1551 = vrot.lane.b32.xlu0 %v1540, 96
    %v1552 = vpop.permute.xlu0 %1551
    %v1553 = vsel %vm314, %v1546, %v1548
    %v1554 = vsel %vm314, %v1548, %v1550
    %v1555 = vsel %vm314, %v1550, %v1552
    %1560 = vst [vmem:[#allocation5 + $0xf0] sm:$0xff] %v1553
    %1561 = vst [vmem:[#allocation5 + $0xf8] sm:$0xff] %v1554
    %1562 = vst [vmem:[#allocation5 + $0x100] sm:$0xff] %v1555
    %1563 = vst.msk [vmem:[#allocation5 + $0x108] sm:$0xff] %vm1400, %v1552
    %v1564 = vld [vmem:[#allocation3] sm:$0xff]
    %v1565 = vld [vmem:[#allocation3 + $0x8] sm:$0xff]
    %v1566 = vld [vmem:[#allocation3 + $0x10] sm:$0xff]
    %v1567 = vld [vmem:[#allocation3 + $0x18] sm:$0xff]
    %1572 = vrot.lane.b32.xlu0 %v1564, 95
    %v1573 = vpop.permute.xlu0 %1572
    %1574 = vrot.lane.b32.xlu0 %v1565, 95
    %v1575 = vpop.permute.xlu0 %1574
    %1576 = vrot.lane.b32.xlu0 %v1566, 95
    %v1577 = vpop.permute.xlu0 %1576
    %1578 = vrot.lane.b32.xlu0 %v1567, 95
    %v1579 = vpop.permute.xlu0 %1578
    %v1580 = vsel %vm367, %v1573, %v1575
    %v1581 = vsel %vm367, %v1575, %v1577
    %v1582 = vsel %vm367, %v1577, %v1579
    %1587 = vst [vmem:[#allocation5 + $0x118] sm:$0xff] %v1580
    %1588 = vst [vmem:[#allocation5 + $0x120] sm:$0xff] %v1581
    %1589 = vst [vmem:[#allocation5 + $0x128] sm:$0xff] %v1582
    %1590 = vst.msk [vmem:[#allocation5 + $0x130] sm:$0xff] %vm1400, %v1579
    %v1591 = vld [vmem:[#allocation3] sm:$0xff]
    %v1592 = vld [vmem:[#allocation3 + $0x8] sm:$0xff]
    %v1593 = vld [vmem:[#allocation3 + $0x10] sm:$0xff]
    %v1594 = vld [vmem:[#allocation3 + $0x18] sm:$0xff]
    %1599 = vrot.lane.b32.xlu0 %v1591, 94
    %v1600 = vpop.permute.xlu0 %1599
    %1601 = vrot.lane.b32.xlu0 %v1592, 94
    %v1602 = vpop.permute.xlu0 %1601
    %1603 = vrot.lane.b32.xlu0 %v1593, 94
    %v1604 = vpop.permute.xlu0 %1603
    %1605 = vrot.lane.b32.xlu0 %v1594, 94
    %v1606 = vpop.permute.xlu0 %1605
    %v1607 = vsel %vm418, %v1600, %v1602
    %v1608 = vsel %vm418, %v1602, %v1604
    %v1609 = vsel %vm418, %v1604, %v1606
    %1614 = vst [vmem:[#allocation5 + $0x140] sm:$0xff] %v1607
    %1615 = vst [vmem:[#allocation5 + $0x148] sm:$0xff] %v1608
    %1616 = vst [vmem:[#allocation5 + $0x150] sm:$0xff] %v1609
    %1617 = vst.msk [vmem:[#allocation5 + $0x158] sm:$0xff] %vm1400, %v1606
    %v1618 = vld [vmem:[%s5] sm:$0xff]
    %v1619 = vld [vmem:[#allocation5] sm:$0xff]
    %v1620 = vld [vmem:[#allocation5 + $0x8] sm:$0xff]
    %v1621 = vld [vmem:[#allocation5 + $0x10] sm:$0xff]
    %v1622 = vld [vmem:[#allocation5 + $0x18] sm:$0xff]
    %v1623 = vld [vmem:[#allocation5 + $0x28] sm:$0xff]
    %v1624 = vld [vmem:[#allocation5 + $0x30] sm:$0xff]
    %v1625 = vld [vmem:[#allocation5 + $0x38] sm:$0xff]
    %v1626 = vld [vmem:[#allocation5 + $0x40] sm:$0xff]
    %v1627 = vld [vmem:[#allocation5 + $0x50] sm:$0xff]
    %v1628 = vld [vmem:[#allocation5 + $0x58] sm:$0xff]
    %v1629 = vld [vmem:[#allocation5 + $0x60] sm:$0xff]
    %v1630 = vld [vmem:[#allocation5 + $0x68] sm:$0xff]
    %v1631 = vld [vmem:[#allocation5 + $0x78] sm:$0xff]
    %v1632 = vld [vmem:[#allocation5 + $0x80] sm:$0xff]
    %v1633 = vld [vmem:[#allocation5 + $0x88] sm:$0xff]
    %v1634 = vld [vmem:[#allocation5 + $0x90] sm:$0xff]
    %v1635 = vld [vmem:[#allocation5 + $0xa0] sm:$0xff]
    %v1636 = vld [vmem:[#allocation5 + $0xa8] sm:$0xff]
    %v1637 = vld [vmem:[#allocation5 + $0xb0] sm:$0xff]
    %v1638 = vld [vmem:[#allocation5 + $0xb8] sm:$0xff]
    %v1639 = vld [vmem:[#allocation5 + $0xc8] sm:$0xff]
    %v1640 = vld [vmem:[#allocation5 + $0xd0] sm:$0xff]
    %v1641 = vld [vmem:[#allocation5 + $0xd8] sm:$0xff]
    %v1642 = vld [vmem:[#allocation5 + $0xe0] sm:$0xff]
    %v1643 = vld [vmem:[#allocation5 + $0xf0] sm:$0xff]
    %v1644 = vld [vmem:[#allocation5 + $0xf8] sm:$0xff]
    %v1645 = vld [vmem:[#allocation5 + $0x100] sm:$0xff]
    %v1646 = vld [vmem:[#allocation5 + $0x108] sm:$0xff]
    %v1647 = vld [vmem:[#allocation5 + $0x118] sm:$0xff]
    %v1648 = vld [vmem:[#allocation5 + $0x120] sm:$0xff]
    %v1649 = vld [vmem:[#allocation5 + $0x128] sm:$0xff]
    %v1650 = vld [vmem:[#allocation5 + $0x130] sm:$0xff]
    %v1651 = vld [vmem:[#allocation5 + $0x140] sm:$0xff]
    %v1652 = vld [vmem:[#allocation5 + $0x148] sm:$0xff]
    %v1653 = vld [vmem:[#allocation5 + $0x150] sm:$0xff]
    %v1654 = vld [vmem:[#allocation5 + $0x158] sm:$0xff]
    %v1655 = vld [vmem:[%s6] sm:$0xff]
    %1657 = vset.pattern.permute.xlu0 0
    %1658 = vperm.xlu0 %1657, %v1655
    %v1659 = vpop.permute.xlu0 %1658
    %v1662 = vunpack.c.l.b16 %v1618
    %v1663 = vunpack.c.h.b16 %v1618
    %v1664 = vpack.c.b16 %v1662, %v1662
    %v1665 = vpack.c.b16 %v1663, %v1663
    %vm1667 = vcmask 130048
    %v1669 = vsel %vm1667, %v1665, 0
    %1671 = vmatprep.subr.bf16.mxu0 %v1620
    %1672 = vmatpush1.bf16.msra.mxu0 %v1619
    %1673 = vmatprep.subr.bf16.mxu0 %v1624
    %1674 = vmatpush1.bf16.msra.mxu0 %v1623
    %1675 = vmatprep.subr.bf16.mxu0 %v1628
    %1676 = vmatpush1.bf16.msra.mxu0 %v1627
    %1677 = vmatprep.subr.bf16.mxu0 %v1632
    %1678 = vmatpush1.bf16.msra.mxu0 %v1631
    %1679 = vmatprep.subr.bf16.mxu0 %v1636
    %1680 = vmatpush1.bf16.msra.mxu0 %v1635
    %1681 = vmatprep.subr.bf16.mxu0 %v1640
    %1682 = vmatpush1.bf16.msra.mxu0 %v1639
    %1683 = vmatprep.subr.bf16.mxu0 %v1644
    %1684 = vmatpush1.bf16.msra.mxu0 %v1643
    %1685 = vmatprep.subr.bf16.mxu0 %v1648
    %1686 = vmatpush1.bf16.msra.mxu0 %v1647
    %1687 = vmatprep.subr.bf16.mxu0 %v1652
    %1688 = vmatpush1.bf16.msra.mxu0 %v1651
    %1689 = vmatprep.subr.bf16.mxu0 0
    %1690 = vmatpush1.bf16.msra.mxu0 0
    %1691 = vmatprep.subr.bf16.mxu0 0
    %1692 = vmatpush1.bf16.msra.mxu0 0
    %1693 = vmatprep.subr.bf16.mxu0 0
    %1694 = vmatpush1.bf16.msra.mxu0 0
    %1695 = vmatprep.subr.bf16.mxu0 0
    %1696 = vmatpush1.bf16.msra.mxu0 0
    %1697 = vmatprep.subr.bf16.mxu0 0
    %1698 = vmatpush1.bf16.msra.mxu0 0
    %1699 = vmatprep.subr.bf16.mxu0 0
    %1700 = vmatpush1.bf16.msra.mxu0 0
    %1701 = vmatprep.subr.bf16.mxu0 0
    %1702 = vmatpush1.bf16.msra.mxu0 0
    %1703 = vmatprep.mubr.bf16.mxu0 %v1669
    %1704 = vmatmul.mubr.bf16.gmra.mrb[0].mxu0 %v1664
    %v1705 = vpop.f32.mrb[0].mxu0
    %v1706 = vadd.f32 %v1659, %v1705
    %v1707 = vpop.f32.mrb[0].mxu0
    %v1708 = vadd.f32 %v1659, %v1707
    %v1709 = vpop.f32.mrb[0].mxu0
    %v1710 = vpop.f32.mrb[0].mxu0
    %1711 = vdwg.mxu0
    %1712 = vmatprep.subr.bf16.mxu0 %v1622
    %1713 = vmatpush1.bf16.msra.mxu0 %v1621
    %1714 = vmatprep.subr.bf16.mxu0 %v1626
    %1715 = vmatpush1.bf16.msra.mxu0 %v1625
    %1716 = vmatprep.subr.bf16.mxu0 %v1630
    %1717 = vmatpush1.bf16.msra.mxu0 %v1629
    %1718 = vmatprep.subr.bf16.mxu0 %v1634
    %1719 = vmatpush1.bf16.msra.mxu0 %v1633
    %1720 = vmatprep.subr.bf16.mxu0 %v1638
    %1721 = vmatpush1.bf16.msra.mxu0 %v1637
    %1722 = vmatprep.subr.bf16.mxu0 %v1642
    %1723 = vmatpush1.bf16.msra.mxu0 %v1641
    %1724 = vmatprep.subr.bf16.mxu0 %v1646
    %1725 = vmatpush1.bf16.msra.mxu0 %v1645
    %1726 = vmatprep.subr.bf16.mxu0 %v1650
    %1727 = vmatpush1.bf16.msra.mxu0 %v1649
    %1728 = vmatprep.subr.bf16.mxu0 %v1654
    %1729 = vmatpush1.bf16.msra.mxu0 %v1653
    %1730 = vmatprep.subr.bf16.mxu0 0
    %1731 = vmatpush1.bf16.msra.mxu0 0
    %1732 = vmatprep.subr.bf16.mxu0 0
    %1733 = vmatpush1.bf16.msra.mxu0 0
    %1734 = vmatprep.subr.bf16.mxu0 0
    %1735 = vmatpush1.bf16.msra.mxu0 0
    %1736 = vmatprep.subr.bf16.mxu0 0
    %1737 = vmatpush1.bf16.msra.mxu0 0
    %1738 = vmatprep.subr.bf16.mxu0 0
    %1739 = vmatpush1.bf16.msra.mxu0 0
    %1740 = vmatprep.subr.bf16.mxu0 0
    %1741 = vmatpush1.bf16.msra.mxu0 0
    %1742 = vmatprep.subr.bf16.mxu0 0
    %1743 = vmatpush1.bf16.msra.mxu0 0
    %1744 = vmatprep.mubr.bf16.mxu0 %v1669
    %1745 = vmatmul.mubr.bf16.gmra.mrb[0].mxu0 %v1664
    %v1746 = vpop.f32.mrb[0].mxu0
    %v1747 = vadd.f32 %v1659, %v1746
    %v1748 = vpop.f32.mrb[0].mxu0
    %v1749 = vadd.f32 %v1659, %v1748
    %v1750 = vpop.f32.mrb[0].mxu0
    %v1751 = vpop.f32.mrb[0].mxu0
    %1752 = vdwg.mxu0
    %v1753 = vmax.f32 %v1706, 0.0
    %v1754 = vmax.f32 %v1708, 0.0
    %v1755 = vmax.f32 %v1747, 0.0
    %v1756 = vmax.f32 %v1749, 0.0
    %v1757 = vpack.c.bf16 %v1753, %v1753
    %v1758 = vpack.c.bf16 %v1754, %v1754
    %v1759 = vpack.c.bf16 %v1755, %v1755
    %v1760 = vpack.c.bf16 %v1756, %v1756
    %v1765 = vunpack.c.l.b16 %v1757
    %v1766 = vunpack.c.l.b16 %v1758
    %v1767 = vunpack.c.l.b16 %v1759
    %v1768 = vunpack.c.l.b16 %v1760
    %v1769 = vpack.c.b16 %v1766, %v1765
    %v1770 = vpack.c.b16 %v1768, %v1767
    %1773 = vst [vmem:[#allocation4] sm:$0xff] %v1769
    %vm1774 = vcmask 1043456
    %vm1775 = vcmask 277508
    %vm1776 = vmor %vm1775, %vm1774
    %1777 = vst.msk [vmem:[#allocation4 + $0x8] sm:$0xff] %vm1776, %v1770
    %vm1778 = vcmask 1043728
    %vm1779 = vcmask 31748
    %vm1780 = vmor %vm1779, %vm1778
    %1781 = vst.msk [vmem:[#allocation4 + $0xc] sm:$0xff] %vm1780, 0
    %v1782 = vld [vmem:[#allocation4] sm:$0x11]
    %v1785 = vunpack.c.l.s4 1966171168
    %v1786 = vunpack.c.0.s8 %v1785
    %v1787 = vlaneseq
    %v1788 = vshrl.u32 %v1787, 7
    %v1789 = vsub.s32 %v1786, %v1788
    %v1790 = vrot.slane %v1782, %v1789
    %v1792 = vunpack.c.l.s4 1966171168
    %v1793 = vunpack.c.0.s8 %v1792
    %v1794 = vlaneseq
    %v1795 = vshrl.u32 %v1794, 7
    %v1796 = vsub.s32 %v1793, %v1795
    %v1797 = vrot.slane %v1790, %v1796
    %vm1799 = vcmask 1040384
    %vm1800 = vsmask.f32 256
    %vm1801 = vmand %vm1799, %vm1800
    %vm1802 = vcmask 254977
    %vm1803 = vsmask.f32 1280
    %vm1804 = vmand %vm1802, %vm1803
    %vm1805 = vmor %vm1804, %vm1801
    %v1806 = vld [vmem:[#allocation6] sm:$0x3]
    %v1807 = vsel %vm1805, %v1797, %v1806
    %1808 = vst [vmem:[#allocation6] sm:$0x3] %v1807
    %v1809 = vld [vmem:[#allocation4] sm:$0x11]
    %v1812 = vunpack.c.l.s4 1966171168
    %v1813 = vunpack.c.0.s8 %v1812
    %v1814 = vlaneseq
    %v1815 = vshrl.u32 %v1814, 7
    %v1816 = vsub.s32 %v1813, %v1815
    %v1817 = vrot.slane %v1809, %v1816
    %v1819 = vunpack.c.l.s4 1966171168
    %v1820 = vunpack.c.0.s8 %v1819
    %v1821 = vlaneseq
    %v1822 = vshrl.u32 %v1821, 7
    %v1823 = vsub.s32 %v1820, %v1822
    %v1824 = vrot.slane %v1817, %v1823
    %v1826 = vshrl.u32 %v1824, 16
    %v1828 = vrot.slane %v1826, 7
    %v1829 = vrot.slane %v1828, 1
    %1830 = vrot.lane.b32.xlu0 %v1829, 32
    %v1831 = vpop.permute.xlu0 %1830
    %v1832 = vrot.slane %v1831, 7
    %vm1833 = vcmask 261120
    %v1834 = vsel %vm1833, %v1832, %v1831
    %vm1836 = vcmask 1040640
    %vm1837 = vmand %vm1836, %vm1800
    %vm1838 = vcmask 517121
    %vm1839 = vmand %vm1838, %vm1803
    %vm1840 = vmor %vm1839, %vm1837
    %v1841 = vld [vmem:[#allocation6 + $0x1] sm:$0x3]
    %v1842 = vsel %vm1840, %v1834, %v1841
    %1843 = vst [vmem:[#allocation6 + $0x1] sm:$0x3] %v1842
    %v1844 = vld [vmem:[#allocation4] sm:$0x22]
    %v1847 = vunpack.c.l.s4 1966171168
    %v1848 = vunpack.c.0.s8 %v1847
    %v1849 = vlaneseq
    %v1850 = vshrl.u32 %v1849, 7
    %v1851 = vsub.s32 %v1848, %v1850
    %v1852 = vrot.slane %v1844, %v1851
    %v1853 = vcombine.high %v1852, %v1852
    %v1855 = vunpack.c.l.s4 1966171168
    %v1856 = vunpack.c.0.s8 %v1855
    %v1857 = vlaneseq
    %v1858 = vshrl.u32 %v1857, 7
    %v1859 = vsub.s32 %v1856, %v1858
    %v1860 = vrot.slane %v1853, %v1859
    %1861 = vrot.lane.b32.xlu0 %v1860, 64
    %v1862 = vpop.permute.xlu0 %1861
    %v1863 = vrot.slane %v1862, 7
    %vm1864 = vcmask 523264
    %v1865 = vsel %vm1864, %v1863, %v1862
    %vm1867 = vcmask 1040896
    %vm1868 = vmand %vm1867, %vm1800
    %vm1869 = vcmask 779265
    %vm1870 = vmand %vm1869, %vm1803
    %vm1871 = vmor %vm1870, %vm1868
    %v1872 = vld [vmem:[#allocation6 + $0x2] sm:$0x3]
    %v1873 = vsel %vm1871, %v1865, %v1872
    %1874 = vst [vmem:[#allocation6 + $0x2] sm:$0x3] %v1873
    %v1875 = vld [vmem:[#allocation4] sm:$0x22]
    %v1878 = vunpack.c.l.s4 1966171168
    %v1879 = vunpack.c.0.s8 %v1878
    %v1880 = vlaneseq
    %v1881 = vshrl.u32 %v1880, 7
    %v1882 = vsub.s32 %v1879, %v1881
    %v1883 = vrot.slane %v1875, %v1882
    %v1884 = vcombine.high %v1883, %v1883
    %v1886 = vunpack.c.l.s4 1966171168
    %v1887 = vunpack.c.0.s8 %v1886
    %v1888 = vlaneseq
    %v1889 = vshrl.u32 %v1888, 7
    %v1890 = vsub.s32 %v1887, %v1889
    %v1891 = vrot.slane %v1884, %v1890
    %v1893 = vshrl.u32 %v1891, 16
    %v1895 = vrot.slane %v1893, 7
    %v1896 = vrot.slane %v1895, 1
    %1897 = vrot.lane.b32.xlu0 %v1896, 96
    %v1898 = vpop.permute.xlu0 %1897
    %v1899 = vrot.slane %v1898, 7
    %v1900 = vsel %vm314, %v1899, %v1898
    %vm1902 = vcmask 1041152
    %vm1903 = vmand %vm1902, %vm1800
    %vm1904 = vcmask 1041409
    %vm1905 = vmand %vm1904, %vm1803
    %vm1906 = vmor %vm1905, %vm1903
    %v1907 = vld [vmem:[#allocation6 + $0x3] sm:$0x3]
    %v1908 = vsel %vm1906, %v1900, %v1907
    %1909 = vst [vmem:[#allocation6 + $0x3] sm:$0x3] %v1908
    %v1910 = vld [vmem:[#allocation4] sm:$0x44]
    %v1913 = vunpack.c.l.s4 1966171168
    %v1914 = vunpack.c.0.s8 %v1913
    %v1915 = vlaneseq
    %v1916 = vshrl.u32 %v1915, 7
    %v1917 = vsub.s32 %v1914, %v1916
    %v1918 = vrot.slane %v1910, %v1917
    %v1920 = vunpack.c.l.s4 1966171168
    %v1921 = vunpack.c.0.s8 %v1920
    %v1922 = vlaneseq
    %v1923 = vshrl.u32 %v1922, 7
    %v1924 = vsub.s32 %v1921, %v1923
    %v1925 = vrot.slane %v1918, %v1924
    %v1926 = vcombine.high %v1925, %v1925
    %v1928 = vld [vmem:[#allocation6 + $0x5] sm:$0x3]
    %v1929 = vsel %vm1805, %v1926, %v1928
    %1930 = vst [vmem:[#allocation6 + $0x5] sm:$0x3] %v1929
    %v1931 = vld [vmem:[#allocation4] sm:$0x44]
    %v1934 = vunpack.c.l.s4 1966171168
    %v1935 = vunpack.c.0.s8 %v1934
    %v1936 = vlaneseq
    %v1937 = vshrl.u32 %v1936, 7
    %v1938 = vsub.s32 %v1935, %v1937
    %v1939 = vrot.slane %v1931, %v1938
    %v1941 = vunpack.c.l.s4 1966171168
    %v1942 = vunpack.c.0.s8 %v1941
    %v1943 = vlaneseq
    %v1944 = vshrl.u32 %v1943, 7
    %v1945 = vsub.s32 %v1942, %v1944
    %v1946 = vrot.slane %v1939, %v1945
    %v1947 = vcombine.high %v1946, %v1946
    %v1949 = vshrl.u32 %v1947, 16
    %v1951 = vrot.slane %v1949, 7
    %v1952 = vrot.slane %v1951, 1
    %1953 = vrot.lane.b32.xlu0 %v1952, 32
    %v1954 = vpop.permute.xlu0 %1953
    %v1955 = vrot.slane %v1954, 7
    %v1956 = vsel %vm1833, %v1955, %v1954
    %v1958 = vld [vmem:[#allocation6 + $0x6] sm:$0x3]
    %v1959 = vsel %vm1840, %v1956, %v1958
    %1960 = vst [vmem:[#allocation6 + $0x6] sm:$0x3] %v1959
    %v1961 = vld [vmem:[#allocation4] sm:$0x88]
    %v1964 = vunpack.c.l.s4 1966171168
    %v1965 = vunpack.c.0.s8 %v1964
    %v1966 = vlaneseq
    %v1967 = vshrl.u32 %v1966, 7
    %v1968 = vsub.s32 %v1965, %v1967
    %v1969 = vrot.slane %v1961, %v1968
    %v1970 = vcombine.high %v1969, %v1969
    %v1972 = vunpack.c.l.s4 1966171168
    %v1973 = vunpack.c.0.s8 %v1972
    %v1974 = vlaneseq
    %v1975 = vshrl.u32 %v1974, 7
    %v1976 = vsub.s32 %v1973, %v1975
    %v1977 = vrot.slane %v1970, %v1976
    %v1978 = vcombine.high %v1977, %v1977
    %1979 = vrot.lane.b32.xlu0 %v1978, 64
    %v1980 = vpop.permute.xlu0 %1979
    %v1981 = vrot.slane %v1980, 7
    %v1982 = vsel %vm1864, %v1981, %v1980
    %v1984 = vld [vmem:[#allocation6 + $0x7] sm:$0x3]
    %v1985 = vsel %vm1871, %v1982, %v1984
    %1986 = vst [vmem:[#allocation6 + $0x7] sm:$0x3] %v1985
    %v1987 = vld [vmem:[#allocation4] sm:$0x88]
    %v1990 = vunpack.c.l.s4 1966171168
    %v1991 = vunpack.c.0.s8 %v1990
    %v1992 = vlaneseq
    %v1993 = vshrl.u32 %v1992, 7
    %v1994 = vsub.s32 %v1991, %v1993
    %v1995 = vrot.slane %v1987, %v1994
    %v1996 = vcombine.high %v1995, %v1995
    %v1998 = vunpack.c.l.s4 1966171168
    %v1999 = vunpack.c.0.s8 %v1998
    %v2000 = vlaneseq
    %v2001 = vshrl.u32 %v2000, 7
    %v2002 = vsub.s32 %v1999, %v2001
    %v2003 = vrot.slane %v1996, %v2002
    %v2004 = vcombine.high %v2003, %v2003
    %v2006 = vshrl.u32 %v2004, 16
    %v2008 = vrot.slane %v2006, 7
    %v2009 = vrot.slane %v2008, 1
    %2010 = vrot.lane.b32.xlu0 %v2009, 96
    %v2011 = vpop.permute.xlu0 %2010
    %v2012 = vrot.slane %v2011, 7
    %v2013 = vsel %vm314, %v2012, %v2011
    %v2015 = vld [vmem:[#allocation6 + $0x8] sm:$0x3]
    %v2016 = vsel %vm1906, %v2013, %v2015
    %2017 = vst [vmem:[#allocation6 + $0x8] sm:$0x3] %v2016
    %v2018 = vld [vmem:[#allocation4 + $0x8] sm:$0x11]
    %v2021 = vunpack.c.l.s4 1966171168
    %v2022 = vunpack.c.0.s8 %v2021
    %v2023 = vlaneseq
    %v2024 = vshrl.u32 %v2023, 7
    %v2025 = vsub.s32 %v2022, %v2024
    %v2026 = vrot.slane %v2018, %v2025
    %v2028 = vunpack.c.l.s4 1966171168
    %v2029 = vunpack.c.0.s8 %v2028
    %v2030 = vlaneseq
    %v2031 = vshrl.u32 %v2030, 7
    %v2032 = vsub.s32 %v2029, %v2031
    %v2033 = vrot.slane %v2026, %v2032
    %v2035 = vshll.u32 %v2033, 16
    %2037 = vrot.lane.b32.xlu0 %v2035, 126
    %v2038 = vpop.permute.xlu0 %2037
    %v2039 = vrot.slane %v2038, 1
    %v2040 = vsel %vm144, %v2038, %v2039
    %vm2042 = vsmask.f32 7938
    %vm2043 = vmand %vm1799, %vm2042
    %vm2044 = vsmask.f32 7942
    %vm2045 = vmand %vm1802, %vm2044
    %vm2046 = vmor %vm2045, %vm2043
    %v2047 = vld [vmem:[#allocation6] sm:$0x3]
    %v2048 = vsel %vm2046, %v2040, %v2047
    %2049 = vst [vmem:[#allocation6] sm:$0x3] %v2048
    %v2050 = vld [vmem:[#allocation4 + $0x8] sm:$0x11]
    %v2053 = vunpack.c.l.s4 1966171168
    %v2054 = vunpack.c.0.s8 %v2053
    %v2055 = vlaneseq
    %v2056 = vshrl.u32 %v2055, 7
    %v2057 = vsub.s32 %v2054, %v2056
    %v2058 = vrot.slane %v2050, %v2057
    %v2060 = vunpack.c.l.s4 1966171168
    %v2061 = vunpack.c.0.s8 %v2060
    %v2062 = vlaneseq
    %v2063 = vshrl.u32 %v2062, 7
    %v2064 = vsub.s32 %v2061, %v2063
    %v2065 = vrot.slane %v2058, %v2064
    %2066 = vrot.lane.b32.xlu0 %v2065, 30
    %v2067 = vpop.permute.xlu0 %2066
    %v2068 = vrot.slane %v2067, 7
    %vm2069 = vcmask 244736
    %v2070 = vsel %vm2069, %v2068, %v2067
    %vm2072 = vmand %vm1836, %vm2042
    %vm2073 = vmand %vm1838, %vm2044
    %vm2074 = vmor %vm2073, %vm2072
    %v2075 = vld [vmem:[#allocation6 + $0x1] sm:$0x3]
    %v2076 = vsel %vm2074, %v2070, %v2075
    %2077 = vst [vmem:[#allocation6 + $0x1] sm:$0x3] %v2076
    %v2078 = vld [vmem:[#allocation4 + $0x8] sm:$0x22]
    %v2081 = vunpack.c.l.s4 1966171168
    %v2082 = vunpack.c.0.s8 %v2081
    %v2083 = vlaneseq
    %v2084 = vshrl.u32 %v2083, 7
    %v2085 = vsub.s32 %v2082, %v2084
    %v2086 = vrot.slane %v2078, %v2085
    %v2087 = vcombine.high %v2086, %v2086
    %v2089 = vunpack.c.l.s4 1966171168
    %v2090 = vunpack.c.0.s8 %v2089
    %v2091 = vlaneseq
    %v2092 = vshrl.u32 %v2091, 7
    %v2093 = vsub.s32 %v2090, %v2092
    %v2094 = vrot.slane %v2087, %v2093
    %v2096 = vshll.u32 %v2094, 16
    %2098 = vrot.lane.b32.xlu0 %v2096, 62
    %v2099 = vpop.permute.xlu0 %2098
    %v2100 = vrot.slane %v2099, 7
    %vm2101 = vcmask 506880
    %v2102 = vsel %vm2101, %v2100, %v2099
    %vm2104 = vmand %vm1867, %vm2042
    %vm2105 = vmand %vm1869, %vm2044
    %vm2106 = vmor %vm2105, %vm2104
    %v2107 = vld [vmem:[#allocation6 + $0x2] sm:$0x3]
    %v2108 = vsel %vm2106, %v2102, %v2107
    %2109 = vst [vmem:[#allocation6 + $0x2] sm:$0x3] %v2108
    %v2110 = vld [vmem:[#allocation4 + $0x8] sm:$0x22]
    %v2113 = vunpack.c.l.s4 1966171168
    %v2114 = vunpack.c.0.s8 %v2113
    %v2115 = vlaneseq
    %v2116 = vshrl.u32 %v2115, 7
    %v2117 = vsub.s32 %v2114, %v2116
    %v2118 = vrot.slane %v2110, %v2117
    %v2119 = vcombine.high %v2118, %v2118
    %v2121 = vunpack.c.l.s4 1966171168
    %v2122 = vunpack.c.0.s8 %v2121
    %v2123 = vlaneseq
    %v2124 = vshrl.u32 %v2123, 7
    %v2125 = vsub.s32 %v2122, %v2124
    %v2126 = vrot.slane %v2119, %v2125
    %2127 = vrot.lane.b32.xlu0 %v2126, 94
    %v2128 = vpop.permute.xlu0 %2127
    %v2129 = vrot.slane %v2128, 7
    %v2130 = vsel %vm418, %v2129, %v2128
    %vm2132 = vmand %vm1902, %vm2042
    %vm2133 = vmand %vm1904, %vm2044
    %vm2134 = vmor %vm2133, %vm2132
    %v2135 = vld [vmem:[#allocation6 + $0x3] sm:$0x3]
    %v2136 = vsel %vm2134, %v2130, %v2135
    %2137 = vst [vmem:[#allocation6 + $0x3] sm:$0x3] %v2136
    %v2138 = vld [vmem:[#allocation4 + $0x8] sm:$0x44]
    %v2141 = vunpack.c.l.s4 1966171168
    %v2142 = vunpack.c.0.s8 %v2141
    %v2143 = vlaneseq
    %v2144 = vshrl.u32 %v2143, 7
    %v2145 = vsub.s32 %v2142, %v2144
    %v2146 = vrot.slane %v2138, %v2145
    %v2148 = vunpack.c.l.s4 1966171168
    %v2149 = vunpack.c.0.s8 %v2148
    %v2150 = vlaneseq
    %v2151 = vshrl.u32 %v2150, 7
    %v2152 = vsub.s32 %v2149, %v2151
    %v2153 = vrot.slane %v2146, %v2152
    %v2154 = vcombine.high %v2153, %v2153
    %v2156 = vshll.u32 %v2154, 16
    %2158 = vrot.lane.b32.xlu0 %v2156, 126
    %v2159 = vpop.permute.xlu0 %2158
    %v2160 = vrot.slane %v2159, 1
    %v2161 = vsel %vm144, %v2159, %v2160
    %v2163 = vld [vmem:[#allocation6 + $0x5] sm:$0x3]
    %v2164 = vsel %vm2046, %v2161, %v2163
    %2165 = vst [vmem:[#allocation6 + $0x5] sm:$0x3] %v2164
    %v2166 = vld [vmem:[#allocation4 + $0x8] sm:$0x44]
    %v2169 = vunpack.c.l.s4 1966171168
    %v2170 = vunpack.c.0.s8 %v2169
    %v2171 = vlaneseq
    %v2172 = vshrl.u32 %v2171, 7
    %v2173 = vsub.s32 %v2170, %v2172
    %v2174 = vrot.slane %v2166, %v2173
    %v2176 = vunpack.c.l.s4 1966171168
    %v2177 = vunpack.c.0.s8 %v2176
    %v2178 = vlaneseq
    %v2179 = vshrl.u32 %v2178, 7
    %v2180 = vsub.s32 %v2177, %v2179
    %v2181 = vrot.slane %v2174, %v2180
    %v2182 = vcombine.high %v2181, %v2181
    %2183 = vrot.lane.b32.xlu0 %v2182, 30
    %v2184 = vpop.permute.xlu0 %2183
    %v2185 = vrot.slane %v2184, 7
    %v2186 = vsel %vm2069, %v2185, %v2184
    %v2188 = vld [vmem:[#allocation6 + $0x6] sm:$0x3]
    %v2189 = vsel %vm2074, %v2186, %v2188
    %2190 = vst [vmem:[#allocation6 + $0x6] sm:$0x3] %v2189
    %v2191 = vld [vmem:[#allocation4 + $0x8] sm:$0x88]
    %v2194 = vunpack.c.l.s4 1966171168
    %v2195 = vunpack.c.0.s8 %v2194
    %v2196 = vlaneseq
    %v2197 = vshrl.u32 %v2196, 7
    %v2198 = vsub.s32 %v2195, %v2197
    %v2199 = vrot.slane %v2191, %v2198
    %v2200 = vcombine.high %v2199, %v2199
    %v2202 = vunpack.c.l.s4 1966171168
    %v2203 = vunpack.c.0.s8 %v2202
    %v2204 = vlaneseq
    %v2205 = vshrl.u32 %v2204, 7
    %v2206 = vsub.s32 %v2203, %v2205
    %v2207 = vrot.slane %v2200, %v2206
    %v2208 = vcombine.high %v2207, %v2207
    %v2210 = vshll.u32 %v2208, 16
    %2212 = vrot.lane.b32.xlu0 %v2210, 62
    %v2213 = vpop.permute.xlu0 %2212
    %v2214 = vrot.slane %v2213, 7
    %v2215 = vsel %vm2101, %v2214, %v2213
    %v2217 = vld [vmem:[#allocation6 + $0x7] sm:$0x3]
    %v2218 = vsel %vm2106, %v2215, %v2217
    %2219 = vst [vmem:[#allocation6 + $0x7] sm:$0x3] %v2218
    %v2220 = vld [vmem:[#allocation4 + $0x8] sm:$0x88]
    %v2223 = vunpack.c.l.s4 1966171168
    %v2224 = vunpack.c.0.s8 %v2223
    %v2225 = vlaneseq
    %v2226 = vshrl.u32 %v2225, 7
    %v2227 = vsub.s32 %v2224, %v2226
    %v2228 = vrot.slane %v2220, %v2227
    %v2229 = vcombine.high %v2228, %v2228
    %v2231 = vunpack.c.l.s4 1966171168
    %v2232 = vunpack.c.0.s8 %v2231
    %v2233 = vlaneseq
    %v2234 = vshrl.u32 %v2233, 7
    %v2235 = vsub.s32 %v2232, %v2234
    %v2236 = vrot.slane %v2229, %v2235
    %v2237 = vcombine.high %v2236, %v2236
    %2238 = vrot.lane.b32.xlu0 %v2237, 94
    %v2239 = vpop.permute.xlu0 %2238
    %v2240 = vrot.slane %v2239, 7
    %v2241 = vsel %vm418, %v2240, %v2239
    %v2243 = vld [vmem:[#allocation6 + $0x8] sm:$0x3]
    %v2244 = vsel %vm2134, %v2241, %v2243
    %2245 = vst [vmem:[#allocation6 + $0x8] sm:$0x3] %v2244
    %s2246 = smul.u32 4, 160
    %s2247 = smul.u32 %s2246, 1
    %s2248 = sshll.u32 %s2247, 4
    %2249 = dma.done [#allocation8], %s2248
    %v2250 = vld [vmem:[#allocation6] sm:$0xff]
    %v2251 = vld [vmem:[#allocation6 + $0x8] sm:$0x3]
    %v2252 = vld [vmem:[#allocation7] sm:$0xff]
    %v2253 = vld [vmem:[#allocation7 + $0x8] sm:$0xff]
    %v2254 = vld [vmem:[#allocation7 + $0x10] sm:$0xff]
    %v2255 = vld [vmem:[#allocation7 + $0x18] sm:$0xff]
    %v2256 = vld [vmem:[#allocation7 + $0x20] sm:$0xff]
    %v2257 = vld [vmem:[#allocation7 + $0x28] sm:$0xff]
    %v2258 = vld [vmem:[#allocation7 + $0x30] sm:$0xff]
    %v2259 = vld [vmem:[#allocation7 + $0x38] sm:$0xff]
    %v2260 = vld [vmem:[#allocation7 + $0x40] sm:$0xff]
    %v2261 = vld [vmem:[#allocation7 + $0x48] sm:$0xff]
    %v2262 = vld [vmem:[#allocation7 + $0x50] sm:$0xff]
    %v2263 = vld [vmem:[#allocation7 + $0x58] sm:$0xff]
    %v2264 = vld [vmem:[#allocation7 + $0x60] sm:$0xff]
    %v2265 = vld [vmem:[#allocation7 + $0x68] sm:$0xff]
    %v2266 = vld [vmem:[#allocation7 + $0x70] sm:$0xff]
    %v2267 = vld [vmem:[#allocation7 + $0x78] sm:$0xff]
    %v2268 = vld [vmem:[#allocation7 + $0x80] sm:$0xff]
    %v2269 = vld [vmem:[#allocation7 + $0x88] sm:$0xff]
    %v2270 = vld [vmem:[#allocation7 + $0x90] sm:$0xff]
    %v2271 = vld [vmem:[#allocation7 + $0x98] sm:$0xff]
    %v2272 = vld [vmem:[#allocation7 + $0xa0] sm:$0xff]
    %v2273 = vld [vmem:[#allocation7 + $0xa8] sm:$0xff]
    %v2274 = vld [vmem:[#allocation7 + $0xb0] sm:$0xff]
    %v2275 = vld [vmem:[#allocation7 + $0xb8] sm:$0xff]
    %v2276 = vld [vmem:[#allocation7 + $0xc0] sm:$0xff]
    %v2277 = vld [vmem:[#allocation7 + $0xc8] sm:$0xff]
    %v2278 = vld [vmem:[#allocation7 + $0xd0] sm:$0xff]
    %v2279 = vld [vmem:[#allocation7 + $0xd8] sm:$0xff]
    %v2280 = vld [vmem:[#allocation7 + $0xe0] sm:$0xff]
    %v2281 = vld [vmem:[#allocation7 + $0xe8] sm:$0xff]
    %v2282 = vld [vmem:[#allocation7 + $0xf0] sm:$0xff]
    %v2283 = vld [vmem:[#allocation7 + $0xf8] sm:$0xff]
    %v2284 = vld [vmem:[#allocation7 + $0x100] sm:$0xff]
    %v2285 = vld [vmem:[#allocation7 + $0x108] sm:$0xff]
    %v2286 = vld [vmem:[#allocation7 + $0x110] sm:$0xff]
    %v2287 = vld [vmem:[#allocation7 + $0x118] sm:$0xff]
    %v2288 = vld [vmem:[#allocation7 + $0x120] sm:$0xff]
    %v2289 = vld [vmem:[#allocation7 + $0x128] sm:$0xff]
    %v2290 = vld [vmem:[#allocation7 + $0x130] sm:$0xff]
    %v2291 = vld [vmem:[#allocation7 + $0x138] sm:$0xff]
    %v2292 = vld [vmem:[#allocation7 + $0x140] sm:$0xff]
    %v2293 = vld [vmem:[#allocation7 + $0x148] sm:$0xff]
    %v2294 = vld [vmem:[#allocation7 + $0x150] sm:$0xff]
    %v2295 = vld [vmem:[#allocation7 + $0x158] sm:$0xff]
    %v2296 = vld [vmem:[#allocation7 + $0x160] sm:$0xff]
    %v2297 = vld [vmem:[#allocation7 + $0x168] sm:$0xff]
    %v2298 = vld [vmem:[#allocation7 + $0x170] sm:$0xff]
    %v2299 = vld [vmem:[#allocation7 + $0x178] sm:$0xff]
    %v2300 = vld [vmem:[#allocation7 + $0x180] sm:$0xff]
    %v2301 = vld [vmem:[#allocation7 + $0x188] sm:$0xff]
    %v2302 = vld [vmem:[#allocation7 + $0x190] sm:$0xff]
    %v2303 = vld [vmem:[#allocation7 + $0x198] sm:$0xff]
    %v2304 = vld [vmem:[#allocation7 + $0x1a0] sm:$0xff]
    %v2305 = vld [vmem:[#allocation7 + $0x1a8] sm:$0xff]
    %v2306 = vld [vmem:[#allocation7 + $0x1b0] sm:$0xff]
    %v2307 = vld [vmem:[#allocation7 + $0x1b8] sm:$0xff]
    %v2308 = vld [vmem:[#allocation7 + $0x1c0] sm:$0xff]
    %v2309 = vld [vmem:[#allocation7 + $0x1c8] sm:$0xff]
    %v2310 = vld [vmem:[#allocation7 + $0x1d0] sm:$0xff]
    %v2311 = vld [vmem:[#allocation7 + $0x1d8] sm:$0xff]
    %v2312 = vld [vmem:[#allocation7 + $0x1e0] sm:$0xff]
    %v2313 = vld [vmem:[#allocation7 + $0x1e8] sm:$0xff]
    %v2314 = vld [vmem:[#allocation7 + $0x1f0] sm:$0xff]
    %v2315 = vld [vmem:[#allocation7 + $0x1f8] sm:$0xff]
    %v2316 = vld [vmem:[#allocation7 + $0x200] sm:$0xff]
    %v2317 = vld [vmem:[#allocation7 + $0x208] sm:$0xff]
    %v2318 = vld [vmem:[#allocation7 + $0x210] sm:$0xff]
    %v2319 = vld [vmem:[#allocation7 + $0x218] sm:$0xff]
    %v2320 = vld [vmem:[#allocation7 + $0x220] sm:$0xff]
    %v2321 = vld [vmem:[#allocation7 + $0x228] sm:$0xff]
    %v2322 = vld [vmem:[#allocation7 + $0x230] sm:$0xff]
    %v2323 = vld [vmem:[#allocation7 + $0x238] sm:$0xff]
    %v2324 = vld [vmem:[#allocation7 + $0x240] sm:$0xff]
    %v2325 = vld [vmem:[#allocation7 + $0x248] sm:$0xff]
    %v2326 = vld [vmem:[#allocation7 + $0x250] sm:$0xff]
    %v2327 = vld [vmem:[#allocation7 + $0x258] sm:$0xff]
    %v2328 = vld [vmem:[#allocation7 + $0x260] sm:$0xff]
    %v2329 = vld [vmem:[#allocation7 + $0x268] sm:$0xff]
    %v2330 = vld [vmem:[#allocation7 + $0x270] sm:$0xff]
    %v2331 = vld [vmem:[#allocation7 + $0x278] sm:$0xff]
    %v2332 = vld [vmem:[%s8] sm:$0x1]
    %v2334 = vlaneseq
    %v2335 = vshrl.u32 %v2334, 7
    %v2336 = vsub.s32 0, %v2335
    %v2337 = vrot.slane %v2332, %v2336
    %v2341 = vcombine.high %v2250, %v2250
    %v2343 = vunpack.c.l.s4 1966171168
    %v2344 = vunpack.c.0.s8 %v2343
    %v2345 = vlaneseq
    %v2346 = vshrl.u32 %v2345, 7
    %v2347 = vsub.s32 %v2344, %v2346
    %v2348 = vrot.slane %v2250, %v2347
    %v2350 = vunpack.c.l.s4 1966171168
    %v2351 = vunpack.c.0.s8 %v2350
    %v2352 = vlaneseq
    %v2353 = vshrl.u32 %v2352, 7
    %v2354 = vsub.s32 %v2351, %v2353
    %v2355 = vrot.slane %v2341, %v2354
    %v2356 = vcombine.high %v2348, %v2348
    %v2357 = vcombine.high %v2355, %v2355
    %v2359 = vunpack.c.l.s4 1966171168
    %v2360 = vunpack.c.0.s8 %v2359
    %v2361 = vlaneseq
    %v2362 = vshrl.u32 %v2361, 7
    %v2363 = vsub.s32 %v2360, %v2362
    %v2364 = vrot.slane %v2348, %v2363
    %v2366 = vunpack.c.l.s4 1966171168
    %v2367 = vunpack.c.0.s8 %v2366
    %v2368 = vlaneseq
    %v2369 = vshrl.u32 %v2368, 7
    %v2370 = vsub.s32 %v2367, %v2369
    %v2371 = vrot.slane %v2355, %v2370
    %v2373 = vunpack.c.l.s4 1966171168
    %v2374 = vunpack.c.0.s8 %v2373
    %v2375 = vlaneseq
    %v2376 = vshrl.u32 %v2375, 7
    %v2377 = vsub.s32 %v2374, %v2376
    %v2378 = vrot.slane %v2356, %v2377
    %v2380 = vunpack.c.l.s4 1966171168
    %v2381 = vunpack.c.0.s8 %v2380
    %v2382 = vlaneseq
    %v2383 = vshrl.u32 %v2382, 7
    %v2384 = vsub.s32 %v2381, %v2383
    %v2385 = vrot.slane %v2357, %v2384
    %v2386 = vcombine.high %v2364, %v2364
    %v2387 = vcombine.high %v2371, %v2371
    %v2388 = vcombine.high %v2378, %v2378
    %v2389 = vcombine.high %v2385, %v2385
    %v2391 = vunpack.c.l.s4 1966171168
    %v2392 = vunpack.c.0.s8 %v2391
    %v2393 = vlaneseq
    %v2394 = vshrl.u32 %v2393, 7
    %v2395 = vsub.s32 %v2392, %v2394
    %v2396 = vrot.slane %v2251, %v2395
    %v2397 = vcombine.high %v2396, %v2396
    %v2399 = vunpack.c.l.s4 1966171168
    %v2400 = vunpack.c.0.s8 %v2399
    %v2401 = vlaneseq
    %v2402 = vshrl.u32 %v2401, 7
    %v2403 = vsub.s32 %v2400, %v2402
    %v2404 = vrot.slane %v2396, %v2403
    %v2406 = vunpack.c.l.s4 1966171168
    %v2407 = vunpack.c.0.s8 %v2406
    %v2408 = vlaneseq
    %v2409 = vshrl.u32 %v2408, 7
    %v2410 = vsub.s32 %v2407, %v2409
    %v2411 = vrot.slane %v2397, %v2410
    %2422 = vmatprep.subr.bf16.mxu0 0
    %2423 = vmatpush1.bf16.msra.mxu0 %v2252
    %2424 = vmatprep.subr.bf16.mxu0 0
    %2425 = vmatpush1.bf16.msra.mxu0 %v2253
    %2426 = vmatprep.subr.bf16.mxu0 0
    %2427 = vmatpush1.bf16.msra.mxu0 %v2254
    %2428 = vmatprep.subr.bf16.mxu0 0
    %2429 = vmatpush1.bf16.msra.mxu0 %v2255
    %2430 = vmatprep.subr.bf16.mxu0 0
    %2431 = vmatpush1.bf16.msra.mxu0 %v2256
    %2432 = vmatprep.subr.bf16.mxu0 0
    %2433 = vmatpush1.bf16.msra.mxu0 %v2257
    %2434 = vmatprep.subr.bf16.mxu0 0
    %2435 = vmatpush1.bf16.msra.mxu0 %v2258
    %2436 = vmatprep.subr.bf16.mxu0 0
    %2437 = vmatpush1.bf16.msra.mxu0 %v2259
    %2438 = vmatprep.subr.bf16.mxu0 0
    %2439 = vmatpush1.bf16.msra.mxu0 %v2260
    %2440 = vmatprep.subr.bf16.mxu0 0
    %2441 = vmatpush1.bf16.msra.mxu0 %v2261
    %2442 = vmatprep.subr.bf16.mxu0 0
    %2443 = vmatpush1.bf16.msra.mxu0 %v2262
    %2444 = vmatprep.subr.bf16.mxu0 0
    %2445 = vmatpush1.bf16.msra.mxu0 %v2263
    %2446 = vmatprep.subr.bf16.mxu0 0
    %2447 = vmatpush1.bf16.msra.mxu0 %v2264
    %2448 = vmatprep.subr.bf16.mxu0 0
    %2449 = vmatpush1.bf16.msra.mxu0 %v2265
    %2450 = vmatprep.subr.bf16.mxu0 0
    %2451 = vmatpush1.bf16.msra.mxu0 %v2266
    %2452 = vmatprep.subr.bf16.mxu0 0
    %2453 = vmatpush1.bf16.msra.mxu0 %v2267
    %2454 = vmatprep.mubr.bf16.mxu0 %v2378
    %2455 = vmatmul.mubr.bf16.gmra.mrb[0].mxu0 %v2364
    %v2456 = vpop.f32.mrb[0].mxu0
    %v2457 = vadd.f32 %v2337, %v2456
    %v2458 = vpop.f32.mrb[0].mxu0
    %v2459 = vpop.f32.mrb[0].mxu0
    %v2460 = vpop.f32.mrb[0].mxu0
    %2461 = vdwg.mxu0
    %2462 = vmatprep.subr.bf16.mxu0 0
    %2463 = vmatpush1.bf16.msra.mxu0 %v2268
    %2464 = vmatprep.subr.bf16.mxu0 0
    %2465 = vmatpush1.bf16.msra.mxu0 %v2269
    %2466 = vmatprep.subr.bf16.mxu0 0
    %2467 = vmatpush1.bf16.msra.mxu0 %v2270
    %2468 = vmatprep.subr.bf16.mxu0 0
    %2469 = vmatpush1.bf16.msra.mxu0 %v2271
    %2470 = vmatprep.subr.bf16.mxu0 0
    %2471 = vmatpush1.bf16.msra.mxu0 %v2272
    %2472 = vmatprep.subr.bf16.mxu0 0
    %2473 = vmatpush1.bf16.msra.mxu0 %v2273
    %2474 = vmatprep.subr.bf16.mxu0 0
    %2475 = vmatpush1.bf16.msra.mxu0 %v2274
    %2476 = vmatprep.subr.bf16.mxu0 0
    %2477 = vmatpush1.bf16.msra.mxu0 %v2275
    %2478 = vmatprep.subr.bf16.mxu0 0
    %2479 = vmatpush1.bf16.msra.mxu0 %v2276
    %2480 = vmatprep.subr.bf16.mxu0 0
    %2481 = vmatpush1.bf16.msra.mxu0 %v2277
    %2482 = vmatprep.subr.bf16.mxu0 0
    %2483 = vmatpush1.bf16.msra.mxu0 %v2278
    %2484 = vmatprep.subr.bf16.mxu0 0
    %2485 = vmatpush1.bf16.msra.mxu0 %v2279
    %2486 = vmatprep.subr.bf16.mxu0 0
    %2487 = vmatpush1.bf16.msra.mxu0 %v2280
    %2488 = vmatprep.subr.bf16.mxu0 0
    %2489 = vmatpush1.bf16.msra.mxu0 %v2281
    %2490 = vmatprep.subr.bf16.mxu0 0
    %2491 = vmatpush1.bf16.msra.mxu0 %v2282
    %2492 = vmatprep.subr.bf16.mxu0 0
    %2493 = vmatpush1.bf16.msra.mxu0 %v2283
    %2494 = vmatprep.mubr.bf16.mxu0 %v2388
    %2495 = vmatmul.mubr.bf16.gmra.mrb[0].mxu0 %v2386
    %v2496 = vpop.f32.mrb[0].mxu0
    %v2497 = vadd.f32 %v2457, %v2496
    %v2498 = vpop.f32.mrb[0].mxu0
    %v2499 = vpop.f32.mrb[0].mxu0
    %v2500 = vpop.f32.mrb[0].mxu0
    %2501 = vdwg.mxu0
    %2502 = vmatprep.subr.bf16.mxu0 0
    %2503 = vmatpush1.bf16.msra.mxu0 %v2284
    %2504 = vmatprep.subr.bf16.mxu0 0
    %2505 = vmatpush1.bf16.msra.mxu0 %v2285
    %2506 = vmatprep.subr.bf16.mxu0 0
    %2507 = vmatpush1.bf16.msra.mxu0 %v2286
    %2508 = vmatprep.subr.bf16.mxu0 0
    %2509 = vmatpush1.bf16.msra.mxu0 %v2287
    %2510 = vmatprep.subr.bf16.mxu0 0
    %2511 = vmatpush1.bf16.msra.mxu0 %v2288
    %2512 = vmatprep.subr.bf16.mxu0 0
    %2513 = vmatpush1.bf16.msra.mxu0 %v2289
    %2514 = vmatprep.subr.bf16.mxu0 0
    %2515 = vmatpush1.bf16.msra.mxu0 %v2290
    %2516 = vmatprep.subr.bf16.mxu0 0
    %2517 = vmatpush1.bf16.msra.mxu0 %v2291
    %2518 = vmatprep.subr.bf16.mxu0 0
    %2519 = vmatpush1.bf16.msra.mxu0 %v2292
    %2520 = vmatprep.subr.bf16.mxu0 0
    %2521 = vmatpush1.bf16.msra.mxu0 %v2293
    %2522 = vmatprep.subr.bf16.mxu0 0
    %2523 = vmatpush1.bf16.msra.mxu0 %v2294
    %2524 = vmatprep.subr.bf16.mxu0 0
    %2525 = vmatpush1.bf16.msra.mxu0 %v2295
    %2526 = vmatprep.subr.bf16.mxu0 0
    %2527 = vmatpush1.bf16.msra.mxu0 %v2296
    %2528 = vmatprep.subr.bf16.mxu0 0
    %2529 = vmatpush1.bf16.msra.mxu0 %v2297
    %2530 = vmatprep.subr.bf16.mxu0 0
    %2531 = vmatpush1.bf16.msra.mxu0 %v2298
    %2532 = vmatprep.subr.bf16.mxu0 0
    %2533 = vmatpush1.bf16.msra.mxu0 %v2299
    %2534 = vmatprep.mubr.bf16.mxu0 %v2385
    %2535 = vmatmul.mubr.bf16.gmra.mrb[0].mxu0 %v2371
    %v2536 = vpop.f32.mrb[0].mxu0
    %v2537 = vadd.f32 %v2497, %v2536
    %v2538 = vpop.f32.mrb[0].mxu0
    %v2539 = vpop.f32.mrb[0].mxu0
    %v2540 = vpop.f32.mrb[0].mxu0
    %2541 = vdwg.mxu0
    %2542 = vmatprep.subr.bf16.mxu0 0
    %2543 = vmatpush1.bf16.msra.mxu0 %v2300
    %2544 = vmatprep.subr.bf16.mxu0 0
    %2545 = vmatpush1.bf16.msra.mxu0 %v2301
    %2546 = vmatprep.subr.bf16.mxu0 0
    %2547 = vmatpush1.bf16.msra.mxu0 %v2302
    %2548 = vmatprep.subr.bf16.mxu0 0
    %2549 = vmatpush1.bf16.msra.mxu0 %v2303
    %2550 = vmatprep.subr.bf16.mxu0 0
    %2551 = vmatpush1.bf16.msra.mxu0 %v2304
    %2552 = vmatprep.subr.bf16.mxu0 0
    %2553 = vmatpush1.bf16.msra.mxu0 %v2305
    %2554 = vmatprep.subr.bf16.mxu0 0
    %2555 = vmatpush1.bf16.msra.mxu0 %v2306
    %2556 = vmatprep.subr.bf16.mxu0 0
    %2557 = vmatpush1.bf16.msra.mxu0 %v2307
    %2558 = vmatprep.subr.bf16.mxu0 0
    %2559 = vmatpush1.bf16.msra.mxu0 %v2308
    %2560 = vmatprep.subr.bf16.mxu0 0
    %2561 = vmatpush1.bf16.msra.mxu0 %v2309
    %2562 = vmatprep.subr.bf16.mxu0 0
    %2563 = vmatpush1.bf16.msra.mxu0 %v2310
    %2564 = vmatprep.subr.bf16.mxu0 0
    %2565 = vmatpush1.bf16.msra.mxu0 %v2311
    %2566 = vmatprep.subr.bf16.mxu0 0
    %2567 = vmatpush1.bf16.msra.mxu0 %v2312
    %2568 = vmatprep.subr.bf16.mxu0 0
    %2569 = vmatpush1.bf16.msra.mxu0 %v2313
    %2570 = vmatprep.subr.bf16.mxu0 0
    %2571 = vmatpush1.bf16.msra.mxu0 %v2314
    %2572 = vmatprep.subr.bf16.mxu0 0
    %2573 = vmatpush1.bf16.msra.mxu0 %v2315
    %2574 = vmatprep.mubr.bf16.mxu0 %v2389
    %2575 = vmatmul.mubr.bf16.gmra.mrb[0].mxu0 %v2387
    %v2576 = vpop.f32.mrb[0].mxu0
    %v2577 = vadd.f32 %v2537, %v2576
    %v2578 = vpop.f32.mrb[0].mxu0
    %v2579 = vpop.f32.mrb[0].mxu0
    %v2580 = vpop.f32.mrb[0].mxu0
    %2581 = vdwg.mxu0
    %2582 = vmatprep.subr.bf16.mxu0 0
    %2583 = vmatpush1.bf16.msra.mxu0 %v2316
    %2584 = vmatprep.subr.bf16.mxu0 0
    %2585 = vmatpush1.bf16.msra.mxu0 %v2317
    %2586 = vmatprep.subr.bf16.mxu0 0
    %2587 = vmatpush1.bf16.msra.mxu0 %v2318
    %2588 = vmatprep.subr.bf16.mxu0 0
    %2589 = vmatpush1.bf16.msra.mxu0 %v2319
    %2590 = vmatprep.subr.bf16.mxu0 0
    %2591 = vmatpush1.bf16.msra.mxu0 %v2320
    %2592 = vmatprep.subr.bf16.mxu0 0
    %2593 = vmatpush1.bf16.msra.mxu0 %v2321
    %2594 = vmatprep.subr.bf16.mxu0 0
    %2595 = vmatpush1.bf16.msra.mxu0 %v2322
    %2596 = vmatprep.subr.bf16.mxu0 0
    %2597 = vmatpush1.bf16.msra.mxu0 %v2323
    %2598 = vmatprep.subr.bf16.mxu0 0
    %2599 = vmatpush1.bf16.msra.mxu0 %v2324
    %2600 = vmatprep.subr.bf16.mxu0 0
    %2601 = vmatpush1.bf16.msra.mxu0 %v2325
    %2602 = vmatprep.subr.bf16.mxu0 0
    %2603 = vmatpush1.bf16.msra.mxu0 %v2326
    %2604 = vmatprep.subr.bf16.mxu0 0
    %2605 = vmatpush1.bf16.msra.mxu0 %v2327
    %2606 = vmatprep.subr.bf16.mxu0 0
    %2607 = vmatpush1.bf16.msra.mxu0 %v2328
    %2608 = vmatprep.subr.bf16.mxu0 0
    %2609 = vmatpush1.bf16.msra.mxu0 %v2329
    %2610 = vmatprep.subr.bf16.mxu0 0
    %2611 = vmatpush1.bf16.msra.mxu0 %v2330
    %2612 = vmatprep.subr.bf16.mxu0 0
    %2613 = vmatpush1.bf16.msra.mxu0 %v2331
    %2614 = vmatprep.mubr.bf16.mxu0 %v2411
    %2615 = vmatmul.mubr.bf16.gmra.mrb[0].mxu0 %v2404
    %v2616 = vpop.f32.mrb[0].mxu0
    %v2617 = vadd.f32 %v2577, %v2616
    %v2618 = vpop.f32.mrb[0].mxu0
    %v2619 = vpop.f32.mrb[0].mxu0
    %v2620 = vpop.f32.mrb[0].mxu0
    %2621 = vdwg.mxu0
    %v2622 = vmax.f32 %v2617, 0.0
    %v2623 = vpack.c.bf16 %v2622, %v2622
    %v2624 = vld [vmem:[%s9] sm:$0xf]
    %v2625 = vld [vmem:[%s9 + $0x4] sm:$0xf]
    %v2626 = vld [vmem:[%s9 + $0x8] sm:$0xf]
    %v2627 = vld [vmem:[%s9 + $0xc] sm:$0xf]
    %v2628 = vld [vmem:[%s9 + $0x10] sm:$0xf]
    %v2629 = vld [vmem:[%s9 + $0x14] sm:$0xf]
    %v2630 = vld [vmem:[%s9 + $0x18] sm:$0xf]
    %v2631 = vld [vmem:[%s9 + $0x1c] sm:$0xf]
    %v2632 = vld [vmem:[%s9 + $0x20] sm:$0xf]
    %v2633 = vld [vmem:[%s9 + $0x24] sm:$0xf]
    %v2634 = vld [vmem:[%s9 + $0x28] sm:$0xf]
    %v2635 = vld [vmem:[%s9 + $0x2c] sm:$0xf]
    %v2636 = vld [vmem:[%s9 + $0x30] sm:$0xf]
    %v2637 = vld [vmem:[%s9 + $0x34] sm:$0xf]
    %v2638 = vld [vmem:[%s9 + $0x38] sm:$0xf]
    %v2639 = vld [vmem:[%s9 + $0x3c] sm:$0xf]
    %v2640 = vld [vmem:[%s10] sm:$0x1]
    %v2642 = vlaneseq
    %v2643 = vshrl.u32 %v2642, 7
    %v2644 = vsub.s32 0, %v2643
    %v2645 = vrot.slane %v2640, %v2644
    %v2663 = vunpack.c.l.b16 %v2624
    %v2664 = vunpack.c.l.b16 %v2625
    %v2665 = vunpack.c.l.b16 %v2626
    %v2666 = vunpack.c.l.b16 %v2627
    %v2667 = vunpack.c.l.b16 %v2628
    %v2668 = vunpack.c.l.b16 %v2629
    %v2669 = vunpack.c.l.b16 %v2630
    %v2670 = vunpack.c.l.b16 %v2631
    %v2671 = vunpack.c.l.b16 %v2632
    %v2672 = vunpack.c.l.b16 %v2633
    %v2673 = vunpack.c.l.b16 %v2634
    %v2674 = vunpack.c.l.b16 %v2635
    %v2675 = vunpack.c.l.b16 %v2636
    %v2676 = vunpack.c.l.b16 %v2637
    %v2677 = vunpack.c.l.b16 %v2638
    %v2678 = vunpack.c.l.b16 %v2639
    %v2679 = vpack.c.b16 %v2664, %v2663
    %v2680 = vpack.c.b16 %v2666, %v2665
    %v2681 = vpack.c.b16 %v2668, %v2667
    %v2682 = vpack.c.b16 %v2670, %v2669
    %v2683 = vpack.c.b16 %v2672, %v2671
    %v2684 = vpack.c.b16 %v2674, %v2673
    %v2685 = vpack.c.b16 %v2676, %v2675
    %v2686 = vpack.c.b16 %v2678, %v2677
    %2695 = vmatprep.subr.bf16.mxu0 0
    %2696 = vmatpush1.bf16.msra.mxu0 %v2679
    %2697 = vmatprep.subr.bf16.mxu0 0
    %2698 = vmatpush1.bf16.msra.mxu0 %v2680
    %2699 = vmatprep.subr.bf16.mxu0 0
    %2700 = vmatpush1.bf16.msra.mxu0 %v2681
    %2701 = vmatprep.subr.bf16.mxu0 0
    %2702 = vmatpush1.bf16.msra.mxu0 %v2682
    %2703 = vmatprep.subr.bf16.mxu0 0
    %2704 = vmatpush1.bf16.msra.mxu0 %v2683
    %2705 = vmatprep.subr.bf16.mxu0 0
    %2706 = vmatpush1.bf16.msra.mxu0 %v2684
    %2707 = vmatprep.subr.bf16.mxu0 0
    %2708 = vmatpush1.bf16.msra.mxu0 %v2685
    %2709 = vmatprep.subr.bf16.mxu0 0
    %2710 = vmatpush1.bf16.msra.mxu0 %v2686
    %2711 = vmatprep.subr.bf16.mxu0 0
    %2712 = vmatpush1.bf16.msra.mxu0 0
    %2713 = vmatprep.subr.bf16.mxu0 0
    %2714 = vmatpush1.bf16.msra.mxu0 0
    %2715 = vmatprep.subr.bf16.mxu0 0
    %2716 = vmatpush1.bf16.msra.mxu0 0
    %2717 = vmatprep.subr.bf16.mxu0 0
    %2718 = vmatpush1.bf16.msra.mxu0 0
    %2719 = vmatprep.subr.bf16.mxu0 0
    %2720 = vmatpush1.bf16.msra.mxu0 0
    %2721 = vmatprep.subr.bf16.mxu0 0
    %2722 = vmatpush1.bf16.msra.mxu0 0
    %2723 = vmatprep.subr.bf16.mxu0 0
    %2724 = vmatpush1.bf16.msra.mxu0 0
    %2725 = vmatprep.subr.bf16.mxu0 0
    %2726 = vmatpush1.bf16.msra.mxu0 0
    %2727 = vmatprep.mubr.bf16.mxu0 0
    %2728 = vmatmul.mubr.bf16.gmra.mrb[0].mxu0 %v2623
    %v2729 = vpop.f32.mrb[0].mxu0
    %v2730 = vadd.f32 %v2645, %v2729
    %v2731 = vpop.f32.mrb[0].mxu0
    %v2732 = vpop.f32.mrb[0].mxu0
    %v2733 = vpop.f32.mrb[0].mxu0
    %2734 = vdwg.mxu0
    %v2735 = vsel %vm488, %v2730, -inf
    %2736 = vmax.xlane.f32.xlu0 %v2735
    %v2737 = vpop.xlane.xlu0 %2736
    %v2738 = vsub.f32 %v2730, %v2737
    %v2739 = vmul.f32 %v2738, 1.442695
    %v2740 = vpow.pop %v2739
    %v2741 = vsel %vm488, %v2740, 0.0
    %2742 = vadd.xlane.f32.xlu0 %v2741
    %v2743 = vpop.xlane.xlu0 %2742
    %v2744 = vrcp.pop %v2743
    %v2745 = vmul.f32 %v2740, %v2744
    %2746 = vst [vmem:[#allocation9] sm:$0x3] %v2745
    // Predicated region
    $region46: #{cnn_forward.1} parent=1 // pred_check
      _
    $region47: #{cnn_forward.1} parent=1 // pred_check_branch
      %2748 = sbr.rel (0) target = $region49
    $region48: #{cnn_forward.1} parent=1 // pred_region
      %s2750 = ssub.s32 32, 32
      %2751 = vsyncadd [#allocation10], %s2750
      %s2753 = sshll.u32 [#allocation9], 4
      %s2754 = int_to_ptr.vmem [resolvable:$true] %s2753
      %2756 = dma.vmem_to_hbm [thread:$0]  %s2754, 32, %s11, [#allocation10]
    $region49: #{cnn_forward.1} parent=1 // pred_fallthru
      _
    // Predicated region
    $region50: #{cnn_forward.1} parent=1 // pred_check
      _
    $region51: #{cnn_forward.1} parent=1 // pred_check_branch
      %2758 = sbr.rel (0) target = $region53
    $region52: #{cnn_forward.1} parent=1 // pred_region
      %2759 = dma.done [#allocation10], 32
    $region53: #{cnn_forward.1} parent=1 // pred_fallthru
      _
    %2760 = vsyncpa [#allocation10], 1
  %2761 = vsyncmov [#allocation8]
  %s2762 = vpop.sfrf %2761
  %p2763 = scmp.eq.s32.totalorder %s2762, 0
  %p2764 = pneg %p2763
  %2766 = shalt.err (%p2764)

</llo_original>
